<compile_context>
chip_gen: v6e
topology: v6e:2x2x1
jax: 0.10.0
libtpu: 0.0.40
codegen_flags: <defaults>
</compile_context>

<pallas_src>
import functools

import jax
import jax.numpy as jnp
from jax.experimental import pallas as pl
from jax.experimental.pallas import tpu as pltpu  # noqa: F401  (TPU backend)

COMPUTE_DTYPE = jnp.bfloat16  # MXU operand dtype; accumulation is always f32.


# ----------------------------------------------------------------------------
# Kernels (gridless: every operand is a single whole-array VMEM block)
# ----------------------------------------------------------------------------
def _gemm_bias_relu_kernel(a_ref, b_ref, bias_ref, o_ref):
    """o = relu(a @ b + bias); f32 accumulate, stored in o_ref.dtype (bf16)."""
    acc = jnp.dot(a_ref[...], b_ref[...], preferred_element_type=jnp.float32)
    o_ref[...] = jnp.maximum(acc + bias_ref[...], 0.0).astype(o_ref.dtype)


def _fc_fused_kernel(x_ref, w1_ref, b1_ref, w2_ref, b2_ref, o_ref):
    """q = relu(x @ W1 + b1) @ W2 + b2 — single MXU pass over K = 3200."""
    h = jnp.maximum(
        jnp.dot(x_ref[...], w1_ref[...], preferred_element_type=jnp.float32)
        + b1_ref[...], 0.0)                                   # fc1 + ReLU (f32)
    q = jnp.dot(h.astype(w2_ref.dtype), w2_ref[...],
                preferred_element_type=jnp.float32)           # fc2
    o_ref[...] = (q + b2_ref[...]).astype(o_ref.dtype)


# ----------------------------------------------------------------------------
# pallas_call wrappers (no grid / BlockSpecs: everything fits VMEM with margin)
# ----------------------------------------------------------------------------
def gemm_bias_relu(a, b, bias, out_dtype):
    m, n = a.shape[0], b.shape[1]
    return pl.pallas_call(
        _gemm_bias_relu_kernel,
        out_shape=jax.ShapeDtypeStruct((m, n), out_dtype),
    )(a, b, bias)


def fc_fused(x, w1, b1, w2, b2):
    m, n2 = x.shape[0], w2.shape[1]
    return pl.pallas_call(
        _fc_fused_kernel,
        out_shape=jax.ShapeDtypeStruct((m, n2), jnp.float32),
    )(x, w1, b1, w2, b2)


# ----------------------------------------------------------------------------
# XLA-side glue: single-op im2col (patch order handled by construction)
# ----------------------------------------------------------------------------
def _patches_nhwc(x_nhwc, k, s):
    """Single-op im2col: (B, H, W, C) -> ((B*OH*OW, C*k*k), OH, OW)."""
    p = jax.lax.conv_general_dilated_patches(
        x_nhwc, (k, k), (s, s), "VALID",
        dimension_numbers=("NHWC", "HWIO", "NHWC"))           # (B, OH, OW, C*k*k)
    b, oh, ow, f = p.shape
    return p.reshape(b * oh * ow, f), oh, ow


def _conv_weight_patch_matrix(w_oihw):
    """OIHW conv weight -> (C*k*k, C_out) matrix whose row order matches
    _patches_nhwc's feature order exactly (derived via the same patches op)."""
    o, i, kh, kw = w_oihw.shape
    w_img = jnp.transpose(w_oihw, (0, 2, 3, 1))               # (O, kh, kw, I) "image"
    p = jax.lax.conv_general_dilated_patches(
        w_img, (kh, kw), (1, 1), "VALID",
        dimension_numbers=("NHWC", "HWIO", "NHWC"))           # (O, 1, 1, I*kh*kw)
    return p.reshape(o, i * kh * kw).T                        # (I*kh*kw, O)


# ----------------------------------------------------------------------------
# Parameters
# ----------------------------------------------------------------------------
def init_params(key, action_size):
    """Same shapes/init style as the PyTorch module (Linear weights (out, in))."""
    ks = jax.random.split(key, 8)

    def uniform(k, shape, fan_in):
        bound = 1.0 / jnp.sqrt(float(fan_in))
        return jax.random.uniform(k, shape, jnp.float32, -bound, bound)

    return {
        "conv1_w": uniform(ks[0], (16, 3, 8, 8), 3 * 8 * 8),
        "conv1_b": uniform(ks[1], (16,), 3 * 8 * 8),
        "conv2_w": uniform(ks[2], (32, 16, 4, 4), 16 * 4 * 4),
        "conv2_b": uniform(ks[3], (32,), 16 * 4 * 4),
        "fc1_w": uniform(ks[4], (256, 10 * 10 * 32), 10 * 10 * 32),
        "fc1_b": uniform(ks[5], (256,), 10 * 10 * 32),
        "fc2_w": uniform(ks[6], (action_size, 256), 256),
        "fc2_b": uniform(ks[7], (action_size,), 256),
    }


def prepare_params(params, compute_dtype=COMPUTE_DTYPE):
    """One-time layout + dtype prep (NOT in the per-forward hot path)."""
    a, h2 = params["fc2_w"].shape                 # (action_size, 256)
    n2_pad = ((a + 127) // 128) * 128             # lane-dense fc2 output block

    # fc1 rows permuted so the position-major / channel-minor flatten that the
    # NHWC conv2 GEMM produces FOR FREE contracts correctly:
    #   flat[b, p*32 + c] == pytorch_flat[b, c*100 + p]
    c2_out = params["conv2_w"].shape[0]           # 32
    spatial = params["fc1_w"].shape[1] // c2_out  # 100
    w1t = params["fc1_w"].T                       # (3200, 256), rows = c*100 + p
    w1_perm = (w1t.reshape(c2_out, spatial, -1)
                  .transpose(1, 0, 2)
                  .reshape(c2_out * spatial, -1))  # rows = p*32 + c

    fc2_w_pad = jnp.zeros((h2, n2_pad), jnp.float32).at[:, :a].set(params["fc2_w"].T)
    fc2_b_pad = jnp.zeros((n2_pad,), jnp.float32).at[:a].set(params["fc2_b"])

    return {
        "conv1_wmT": _conv_weight_patch_matrix(params["conv1_w"]).astype(compute_dtype),  # (192, 16)
        "conv1_b": params["conv1_b"].reshape(1, -1).astype(jnp.float32),                  # (1, 16)
        "conv2_wmT": _conv_weight_patch_matrix(params["conv2_w"]).astype(compute_dtype),  # (256, 32)
        "conv2_b": params["conv2_b"].reshape(1, -1).astype(jnp.float32),                  # (1, 32)
        "fc1_w": w1_perm.astype(compute_dtype),                                           # (3200, 256)
        "fc1_b": params["fc1_b"].reshape(1, -1).astype(jnp.float32),                      # (1, 256)
        "fc2_w": fc2_w_pad.astype(compute_dtype),                                         # (256, 128)
        "fc2_b": fc2_b_pad.reshape(1, -1).astype(jnp.float32),                            # (1, 128)
    }


# ----------------------------------------------------------------------------
# Forward pass
# ----------------------------------------------------------------------------
@functools.partial(jax.jit, static_argnames=("action_size",))
def qnetwork_forward(prep, x, *, action_size):
    """x: (B, 3, 96, 96) float32 NCHW -> (B, action_size) float32."""
    B = x.shape[0]

    # Cast to bf16 ONCE (before im2col duplicates the windows) and go NHWC so
    # every downstream reshape is contiguous / copy-free.
    xb = jnp.transpose(x, (0, 2, 3, 1)).astype(COMPUTE_DTYPE)        # (B, 96, 96, 3)

    # conv1: single patches op + gridless GEMM, bf16 output.
    cols1, oh1, ow1 = _patches_nhwc(xb, k=8, s=4)                    # (B*529, 192)
    a1 = gemm_bias_relu(cols1, prep["conv1_wmT"], prep["conv1_b"],
                        COMPUTE_DTYPE)                               # (B*529, 16)

    # conv2: consumes conv1's output via a free reshape, same structure.
    cols2, oh2, ow2 = _patches_nhwc(a1.reshape(B, oh1, ow1, -1),
                                    k=4, s=2)                        # (B*100, 256)
    a2 = gemm_bias_relu(cols2, prep["conv2_wmT"], prep["conv2_b"],
                        COMPUTE_DTYPE)                               # (B*100, 32)

    # Contiguous reshape; the matching row permutation of fc1_w was done once
    # in prepare_params, so no per-forward flatten transpose is needed.
    flat = a2.reshape(B, oh2 * ow2 * a2.shape[1])                    # (B, 3200)

    # fc1 + ReLU + fc2 in one gridless kernel (single K=3200 MXU pass).
    q_pad = fc_fused(flat, prep["fc1_w"], prep["fc1_b"],
                     prep["fc2_w"], prep["fc2_b"])                   # (B, 128) f32
    return q_pad[:, :action_size]


# ----------------------------------------------------------------------------
# Pure-JAX reference (mirrors the PyTorch forward)
# ----------------------------------------------------------------------------
def qnetwork_reference(params, x, compute_dtype=jnp.float32):
    """With compute_dtype=bfloat16 this quantizes matmul operands at exactly the
    same points as the Pallas path (f32 accumulation, f32 bias/ReLU)."""
    c = lambda a: a.astype(compute_dtype)

    def conv(h, w, b, stride):
        y = jax.lax.conv_general_dilated(
            c(h), c(w), window_strides=(stride, stride), padding="VALID",
            dimension_numbers=("NCHW", "OIHW", "NCHW"),
            preferred_element_type=jnp.float32)
        return jnp.maximum(y + b[None, :, None, None], 0.0)

    h = conv(x, params["conv1_w"], params["conv1_b"], 4)
    h = conv(h, params["conv2_w"], params["conv2_b"], 2)
    h = h.reshape(x.shape[0], -1)
    h = jnp.maximum(
        jnp.dot(c(h), c(params["fc1_w"].T), preferred_element_type=jnp.float32)
        + params["fc1_b"], 0.0)
    return (jnp.dot(c(h), c(params["fc2_w"].T), preferred_element_type=jnp.float32)
            + params["fc2_b"])


if __name__ == "__main__":
    # 96x96x3 input is architecturally required: conv stack -> 10*10*32 = 3200,
    # which is what fc1 / the hard-coded view(-1, 3200) expect.
    batch = 2
    action_size = 5

    key = jax.random.PRNGKey(0)
    pkey, xkey = jax.random.split(key)
    params = init_params(pkey, action_size)
    x = jax.random.uniform(xkey, (batch, 3, 96, 96), jnp.float32)

    prep = prepare_params(params)  # one-time weight layout / bf16 prep
    q = jax.block_until_ready(qnetwork_forward(prep, x, action_size=action_size))
    assert q.shape == (batch, action_size)

    # Strict check vs a reference with identical bf16 quantization points.
    q_ref_bf16 = jax.block_until_ready(
        qnetwork_reference(params, x, compute_dtype=COMPUTE_DTYPE))
    assert jnp.allclose(q, q_ref_bf16, rtol=2e-3, atol=2e-3), \
        "mismatch vs bf16-consistent reference"

    # Sanity check vs full-f32 PyTorch-style numerics (loose tol covers bf16 weights).
    q_ref_f32 = jax.block_until_ready(qnetwork_reference(params, x))
    assert jnp.allclose(q, q_ref_f32, rtol=2e-2, atol=2e-2), \
        "mismatch vs f32 reference"

    print("KERNEL_OK")
</pallas_src>

<mosaic_0001>
module attributes {stable_mosaic.version = 11 : i64} {
  func.func @_gemm_bias_relu_kernel(%arg0: memref<1058x192xbf16, #tpu.memory_space<vmem>>, %arg1: memref<192x16xbf16, #tpu.memory_space<vmem>>, %arg2: memref<1x16xf32, #tpu.memory_space<vmem>>, %arg3: memref<1058x16xbf16, #tpu.memory_space<vmem>>) attributes {dimension_semantics = [], scalar_prefetch = 0 : i64, scratch_operands = 0 : i64, tpu.core_type = #tpu.core_type<tc>} {
    %c0 = arith.constant 0 : index
    %c0_0 = arith.constant 0 : index
    %0 = vector.load %arg0[%c0, %c0_0] : memref<1058x192xbf16, #tpu.memory_space<vmem>>, vector<1058x192xbf16>
    %c0_1 = arith.constant 0 : index
    %c0_2 = arith.constant 0 : index
    %1 = vector.load %arg1[%c0_1, %c0_2] : memref<192x16xbf16, #tpu.memory_space<vmem>>, vector<192x16xbf16>
    %cst = arith.constant dense<0.000000e+00> : vector<1058x16xf32>
    %2 = tpu.matmul %0, %1, %cst {dimension_numbers = #tpu.dot_dimension_numbers<[1], [0], [0], [1], [0, 0, 1, 1], [], []>} : vector<1058x192xbf16>, vector<192x16xbf16>, vector<1058x16xf32> -> vector<1058x16xf32>
    %c0_3 = arith.constant 0 : index
    %c0_4 = arith.constant 0 : index
    %3 = vector.load %arg2[%c0_3, %c0_4] : memref<1x16xf32, #tpu.memory_space<vmem>>, vector<1x16xf32>
    %4 = vector.broadcast %3 : vector<1x16xf32> to vector<1058x16xf32>
    %5 = arith.addf %2, %4 : vector<1058x16xf32>
    %cst_5 = arith.constant 0.000000e+00 : f32
    %6 = vector.broadcast %cst_5 : f32 to vector<1058x16xf32>
    %7 = arith.maximumf %5, %6 : vector<1058x16xf32>
    %8 = arith.truncf %7 : vector<1058x16xf32> to vector<1058x16xbf16>
    %c0_6 = arith.constant 0 : index
    %c0_7 = arith.constant 0 : index
    %9 = vector.load %arg3[%c0_6, %c0_7] : memref<1058x16xbf16, #tpu.memory_space<vmem>>, vector<1058x16xbf16>
    tpu.vector_store %arg3[%c0_6, %c0_7], %8 {strides = array<i32>} : memref<1058x16xbf16, #tpu.memory_space<vmem>>, vector<1058x16xbf16>,
    return
  }
}

module attributes {stable_mosaic.version = 11 : i64} {
  func.func @_gemm_bias_relu_kernel(%arg0: memref<200x256xbf16, #tpu.memory_space<vmem>>, %arg1: memref<256x32xbf16, #tpu.memory_space<vmem>>, %arg2: memref<1x32xf32, #tpu.memory_space<vmem>>, %arg3: memref<200x32xbf16, #tpu.memory_space<vmem>>) attributes {dimension_semantics = [], scalar_prefetch = 0 : i64, scratch_operands = 0 : i64, tpu.core_type = #tpu.core_type<tc>} {
    %c0 = arith.constant 0 : index
    %c0_0 = arith.constant 0 : index
    %0 = vector.load %arg0[%c0, %c0_0] : memref<200x256xbf16, #tpu.memory_space<vmem>>, vector<200x256xbf16>
    %c0_1 = arith.constant 0 : index
    %c0_2 = arith.constant 0 : index
    %1 = vector.load %arg1[%c0_1, %c0_2] : memref<256x32xbf16, #tpu.memory_space<vmem>>, vector<256x32xbf16>
    %cst = arith.constant dense<0.000000e+00> : vector<200x32xf32>
    %2 = tpu.matmul %0, %1, %cst {dimension_numbers = #tpu.dot_dimension_numbers<[1], [0], [0], [1], [0, 0, 1, 1], [], []>} : vector<200x256xbf16>, vector<256x32xbf16>, vector<200x32xf32> -> vector<200x32xf32>
    %c0_3 = arith.constant 0 : index
    %c0_4 = arith.constant 0 : index
    %3 = vector.load %arg2[%c0_3, %c0_4] : memref<1x32xf32, #tpu.memory_space<vmem>>, vector<1x32xf32>
    %4 = vector.broadcast %3 : vector<1x32xf32> to vector<200x32xf32>
    %5 = arith.addf %2, %4 : vector<200x32xf32>
    %cst_5 = arith.constant 0.000000e+00 : f32
    %6 = vector.broadcast %cst_5 : f32 to vector<200x32xf32>
    %7 = arith.maximumf %5, %6 : vector<200x32xf32>
    %8 = arith.truncf %7 : vector<200x32xf32> to vector<200x32xbf16>
    %c0_6 = arith.constant 0 : index
    %c0_7 = arith.constant 0 : index
    %9 = vector.load %arg3[%c0_6, %c0_7] : memref<200x32xbf16, #tpu.memory_space<vmem>>, vector<200x32xbf16>
    tpu.vector_store %arg3[%c0_6, %c0_7], %8 {strides = array<i32>} : memref<200x32xbf16, #tpu.memory_space<vmem>>, vector<200x32xbf16>,
    return
  }
}

module attributes {stable_mosaic.version = 11 : i64} {
  func.func @_fc_fused_kernel(%arg0: memref<2x3200xbf16, #tpu.memory_space<vmem>>, %arg1: memref<3200x256xbf16, #tpu.memory_space<vmem>>, %arg2: memref<1x256xf32, #tpu.memory_space<vmem>>, %arg3: memref<256x128xbf16, #tpu.memory_space<vmem>>, %arg4: memref<1x128xf32, #tpu.memory_space<vmem>>, %arg5: memref<2x128xf32, #tpu.memory_space<vmem>>) attributes {dimension_semantics = [], scalar_prefetch = 0 : i64, scratch_operands = 0 : i64, tpu.core_type = #tpu.core_type<tc>} {
    %c0 = arith.constant 0 : index
    %c0_0 = arith.constant 0 : index
    %0 = vector.load %arg0[%c0, %c0_0] : memref<2x3200xbf16, #tpu.memory_space<vmem>>, vector<2x3200xbf16>
    %c0_1 = arith.constant 0 : index
    %c0_2 = arith.constant 0 : index
    %1 = vector.load %arg1[%c0_1, %c0_2] : memref<3200x256xbf16, #tpu.memory_space<vmem>>, vector<3200x256xbf16>
    %cst = arith.constant dense<0.000000e+00> : vector<2x256xf32>
    %2 = tpu.matmul %0, %1, %cst {dimension_numbers = #tpu.dot_dimension_numbers<[1], [0], [0], [1], [0, 0, 1, 1], [], []>} : vector<2x3200xbf16>, vector<3200x256xbf16>, vector<2x256xf32> -> vector<2x256xf32>
    %c0_3 = arith.constant 0 : index
    %c0_4 = arith.constant 0 : index
    %3 = vector.load %arg2[%c0_3, %c0_4] : memref<1x256xf32, #tpu.memory_space<vmem>>, vector<1x256xf32>
    %4 = vector.broadcast %3 : vector<1x256xf32> to vector<2x256xf32>
    %5 = arith.addf %2, %4 : vector<2x256xf32>
    %cst_5 = arith.constant 0.000000e+00 : f32
    %6 = vector.broadcast %cst_5 : f32 to vector<2x256xf32>
    %7 = arith.maximumf %5, %6 : vector<2x256xf32>
    %8 = arith.truncf %7 : vector<2x256xf32> to vector<2x256xbf16>
    %c0_6 = arith.constant 0 : index
    %c0_7 = arith.constant 0 : index
    %9 = vector.load %arg3[%c0_6, %c0_7] : memref<256x128xbf16, #tpu.memory_space<vmem>>, vector<256x128xbf16>
    %cst_8 = arith.constant dense<0.000000e+00> : vector<2x128xf32>
    %10 = tpu.matmul %8, %9, %cst_8 {dimension_numbers = #tpu.dot_dimension_numbers<[1], [0], [0], [1], [0, 0, 1, 1], [], []>} : vector<2x256xbf16>, vector<256x128xbf16>, vector<2x128xf32> -> vector<2x128xf32>
    %c0_9 = arith.constant 0 : index
    %c0_10 = arith.constant 0 : index
    %11 = vector.load %arg4[%c0_9, %c0_10] : memref<1x128xf32, #tpu.memory_space<vmem>>, vector<1x128xf32>
    %12 = vector.broadcast %11 : vector<1x128xf32> to vector<2x128xf32>
    %13 = arith.addf %10, %12 : vector<2x128xf32>
    %c0_11 = arith.constant 0 : index
    %c0_12 = arith.constant 0 : index
    %14 = vector.load %arg5[%c0_11, %c0_12] : memref<2x128xf32, #tpu.memory_space<vmem>>, vector<2x128xf32>
    tpu.vector_store %arg5[%c0_11, %c0_12], %13 {strides = array<i32>} : memref<2x128xf32, #tpu.memory_space<vmem>>, vector<2x128xf32>,
    return
  }
}

</mosaic_0001>

<llo_original>
// kernel: qnetwork_forward.3
$region0: #{qnetwork_forward.3}
  #allocation0 [shape = 'u32[]', space=smem, size = 0x4, offset = 0x4, fixed_abs, tag = 'smem constant byte address 0x4 - core index']
  #allocation1 [shape = 'u32[144,128]{1,0:T(1,128)}', space=vmem, size = 0x12000, scoped, tag = 'internal scratch']
  %s0 = inlined_call_operand.vmem [shape: bf16[1058,192], index: 0, kind: input, shape index: {}]
  %s1 = inlined_call_operand.vmem [shape: bf16[192,16], index: 1, kind: input, shape index: {}]
  %s2 = inlined_call_operand.vmem [shape: f32[1,16], index: 2, kind: input, shape index: {}]
  %s3 = inlined_call_operand.vmem [shape: bf16[1058,16], index: 3, kind: output, shape index: {}]
  %s4 = sld [smem:[#allocation0]]
  $region22: #{qnetwork_forward.3} parent=0
    _
  %s6 = ssub.s32 1, %s4
  %s7 = scalar_select 0, %s6, %s4
  // Predicated region
  $region2: #{qnetwork_forward.3} parent=0 // pred_check
    _
  $region3: #{qnetwork_forward.3} parent=0 // pred_check_branch
    %9 = sbr.rel (0) target = $region5
  $region4: #{qnetwork_forward.3} parent=0 // pred_region
    _
  $region5: #{qnetwork_forward.3} parent=0 // pred_fallthru
    _
  // Predicated region
  $region6: #{qnetwork_forward.3} parent=0 // pred_check
    _
  $region7: #{qnetwork_forward.3} parent=0 // pred_check_branch
    %11 = sbr.rel (0) target = $region9
  $region8: #{qnetwork_forward.3} parent=0 // pred_region
    _
  $region9: #{qnetwork_forward.3} parent=0 // pred_fallthru
    _
  // Predicated region
  $region10: #{qnetwork_forward.3} parent=0 // pred_check
    _
  $region11: #{qnetwork_forward.3} parent=0 // pred_check_branch
    %13 = sbr.rel (0) target = $region13
  $region12: #{qnetwork_forward.3} parent=0 // pred_region
    _
  $region13: #{qnetwork_forward.3} parent=0 // pred_fallthru
    _
  %v15 = vld [vmem:[%s0] sm:$0xff]
  %v16 = vld [vmem:[%s0 + $0x8] sm:$0xff]
  %v17 = vld [vmem:[%s0 + $0x10] sm:$0xff]
  %v18 = vld [vmem:[%s0 + $0x18] sm:$0xff]
  %v19 = vld [vmem:[%s0 + $0x20] sm:$0xff]
  %v20 = vld [vmem:[%s0 + $0x28] sm:$0xff]
  %v21 = vld [vmem:[%s0 + $0x30] sm:$0xff]
  %v22 = vld [vmem:[%s0 + $0x38] sm:$0xff]
  %v23 = vld [vmem:[%s0 + $0x40] sm:$0xff]
  %v24 = vld [vmem:[%s0 + $0x48] sm:$0xff]
  %v25 = vld [vmem:[%s0 + $0x50] sm:$0xff]
  %v26 = vld [vmem:[%s0 + $0x58] sm:$0xff]
  %v27 = vld [vmem:[%s0 + $0x60] sm:$0xff]
  %v28 = vld [vmem:[%s0 + $0x68] sm:$0xff]
  %v29 = vld [vmem:[%s0 + $0x70] sm:$0xff]
  %v30 = vld [vmem:[%s0 + $0x78] sm:$0xff]
  %v31 = vld [vmem:[%s0 + $0x80] sm:$0xff]
  %v32 = vld [vmem:[%s0 + $0x88] sm:$0xff]
  %v33 = vld [vmem:[%s0 + $0x90] sm:$0xff]
  %v34 = vld [vmem:[%s0 + $0x98] sm:$0xff]
  %v35 = vld [vmem:[%s0 + $0xa0] sm:$0xff]
  %v36 = vld [vmem:[%s0 + $0xa8] sm:$0xff]
  %v37 = vld [vmem:[%s0 + $0xb0] sm:$0xff]
  %v38 = vld [vmem:[%s0 + $0xb8] sm:$0xff]
  %v39 = vld [vmem:[%s0 + $0xc0] sm:$0xff]
  %v40 = vld [vmem:[%s0 + $0xc8] sm:$0xff]
  %v41 = vld [vmem:[%s0 + $0xd0] sm:$0xff]
  %v42 = vld [vmem:[%s0 + $0xd8] sm:$0xff]
  %v43 = vld [vmem:[%s0 + $0xe0] sm:$0xff]
  %v44 = vld [vmem:[%s0 + $0xe8] sm:$0xff]
  %v45 = vld [vmem:[%s0 + $0xf0] sm:$0xff]
  %v46 = vld [vmem:[%s0 + $0xf8] sm:$0xff]
  %v47 = vld [vmem:[%s0 + $0x100] sm:$0xff]
  %v48 = vld [vmem:[%s0 + $0x108] sm:$0xff]
  %v49 = vld [vmem:[%s0 + $0x110] sm:$0xff]
  %v50 = vld [vmem:[%s0 + $0x118] sm:$0xff]
  %v51 = vld [vmem:[%s0 + $0x120] sm:$0xff]
  %v52 = vld [vmem:[%s0 + $0x128] sm:$0xff]
  %v53 = vld [vmem:[%s0 + $0x130] sm:$0xff]
  %v54 = vld [vmem:[%s0 + $0x138] sm:$0xff]
  %v55 = vld [vmem:[%s0 + $0x140] sm:$0xff]
  %v56 = vld [vmem:[%s0 + $0x148] sm:$0xff]
  %v57 = vld [vmem:[%s0 + $0x150] sm:$0xff]
  %v58 = vld [vmem:[%s0 + $0x158] sm:$0xff]
  %v59 = vld [vmem:[%s0 + $0x160] sm:$0xff]
  %v60 = vld [vmem:[%s0 + $0x168] sm:$0xff]
  %v61 = vld [vmem:[%s0 + $0x170] sm:$0xff]
  %v62 = vld [vmem:[%s0 + $0x178] sm:$0xff]
  %v63 = vld [vmem:[%s0 + $0x180] sm:$0xff]
  %v64 = vld [vmem:[%s0 + $0x188] sm:$0xff]
  %v65 = vld [vmem:[%s0 + $0x190] sm:$0xff]
  %v66 = vld [vmem:[%s0 + $0x198] sm:$0xff]
  %v67 = vld [vmem:[%s0 + $0x1a0] sm:$0xff]
  %v68 = vld [vmem:[%s0 + $0x1a8] sm:$0xff]
  %v69 = vld [vmem:[%s0 + $0x1b0] sm:$0xff]
  %v70 = vld [vmem:[%s0 + $0x1b8] sm:$0xff]
  %v71 = vld [vmem:[%s0 + $0x1c0] sm:$0xff]
  %v72 = vld [vmem:[%s0 + $0x1c8] sm:$0xff]
  %v73 = vld [vmem:[%s0 + $0x1d0] sm:$0xff]
  %v74 = vld [vmem:[%s0 + $0x1d8] sm:$0xff]
  %v75 = vld [vmem:[%s0 + $0x1e0] sm:$0xff]
  %v76 = vld [vmem:[%s0 + $0x1e8] sm:$0xff]
  %v77 = vld [vmem:[%s0 + $0x1f0] sm:$0xff]
  %v78 = vld [vmem:[%s0 + $0x1f8] sm:$0xff]
  %v79 = vld [vmem:[%s0 + $0x200] sm:$0xff]
  %v80 = vld [vmem:[%s0 + $0x208] sm:$0xff]
  %v81 = vld [vmem:[%s0 + $0x210] sm:$0xff]
  %v82 = vld [vmem:[%s0 + $0x218] sm:$0xff]
  %v83 = vld [vmem:[%s0 + $0x220] sm:$0xff]
  %v84 = vld [vmem:[%s0 + $0x228] sm:$0xff]
  %v85 = vld [vmem:[%s0 + $0x230] sm:$0xff]
  %v86 = vld [vmem:[%s0 + $0x238] sm:$0xff]
  %v87 = vld [vmem:[%s0 + $0x240] sm:$0xff]
  %v88 = vld [vmem:[%s0 + $0x248] sm:$0xff]
  %v89 = vld [vmem:[%s0 + $0x250] sm:$0xff]
  %v90 = vld [vmem:[%s0 + $0x258] sm:$0xff]
  %v91 = vld [vmem:[%s0 + $0x260] sm:$0xff]
  %v92 = vld [vmem:[%s0 + $0x268] sm:$0xff]
  %v93 = vld [vmem:[%s0 + $0x270] sm:$0xff]
  %v94 = vld [vmem:[%s0 + $0x278] sm:$0xff]
  %v95 = vld [vmem:[%s0 + $0x280] sm:$0xff]
  %v96 = vld [vmem:[%s0 + $0x288] sm:$0xff]
  %v97 = vld [vmem:[%s0 + $0x290] sm:$0xff]
  %v98 = vld [vmem:[%s0 + $0x298] sm:$0xff]
  %v99 = vld [vmem:[%s0 + $0x2a0] sm:$0xff]
  %v100 = vld [vmem:[%s0 + $0x2a8] sm:$0xff]
  %v101 = vld [vmem:[%s0 + $0x2b0] sm:$0xff]
  %v102 = vld [vmem:[%s0 + $0x2b8] sm:$0xff]
  %v103 = vld [vmem:[%s0 + $0x2c0] sm:$0xff]
  %v104 = vld [vmem:[%s0 + $0x2c8] sm:$0xff]
  %v105 = vld [vmem:[%s0 + $0x2d0] sm:$0xff]
  %v106 = vld [vmem:[%s0 + $0x2d8] sm:$0xff]
  %v107 = vld [vmem:[%s0 + $0x2e0] sm:$0xff]
  %v108 = vld [vmem:[%s0 + $0x2e8] sm:$0xff]
  %v109 = vld [vmem:[%s0 + $0x2f0] sm:$0xff]
  %v110 = vld [vmem:[%s0 + $0x2f8] sm:$0xff]
  %v111 = vld [vmem:[%s0 + $0x300] sm:$0xff]
  %v112 = vld [vmem:[%s0 + $0x308] sm:$0xff]
  %v113 = vld [vmem:[%s0 + $0x310] sm:$0xff]
  %v114 = vld [vmem:[%s0 + $0x318] sm:$0xff]
  %v115 = vld [vmem:[%s0 + $0x320] sm:$0xff]
  %v116 = vld [vmem:[%s0 + $0x328] sm:$0xff]
  %v117 = vld [vmem:[%s0 + $0x330] sm:$0xff]
  %v118 = vld [vmem:[%s0 + $0x338] sm:$0xff]
  %v119 = vld [vmem:[%s0 + $0x340] sm:$0xff]
  %v120 = vld [vmem:[%s0 + $0x348] sm:$0xff]
  %v121 = vld [vmem:[%s0 + $0x350] sm:$0xff]
  %v122 = vld [vmem:[%s0 + $0x358] sm:$0xff]
  %v123 = vld [vmem:[%s0 + $0x360] sm:$0xff]
  %v124 = vld [vmem:[%s0 + $0x368] sm:$0xff]
  %v125 = vld [vmem:[%s0 + $0x370] sm:$0xff]
  %v126 = vld [vmem:[%s0 + $0x378] sm:$0xff]
  %v127 = vld [vmem:[%s0 + $0x380] sm:$0xff]
  %v128 = vld [vmem:[%s0 + $0x388] sm:$0xff]
  %v129 = vld [vmem:[%s0 + $0x390] sm:$0xff]
  %v130 = vld [vmem:[%s0 + $0x398] sm:$0xff]
  %v131 = vld [vmem:[%s0 + $0x3a0] sm:$0xff]
  %v132 = vld [vmem:[%s0 + $0x3a8] sm:$0xff]
  %v133 = vld [vmem:[%s0 + $0x3b0] sm:$0xff]
  %v134 = vld [vmem:[%s0 + $0x3b8] sm:$0xff]
  %v135 = vld [vmem:[%s0 + $0x3c0] sm:$0xff]
  %v136 = vld [vmem:[%s0 + $0x3c8] sm:$0xff]
  %v137 = vld [vmem:[%s0 + $0x3d0] sm:$0xff]
  %v138 = vld [vmem:[%s0 + $0x3d8] sm:$0xff]
  %v139 = vld [vmem:[%s0 + $0x3e0] sm:$0xff]
  %v140 = vld [vmem:[%s0 + $0x3e8] sm:$0xff]
  %v141 = vld [vmem:[%s0 + $0x3f0] sm:$0xff]
  %v142 = vld [vmem:[%s0 + $0x3f8] sm:$0xff]
  %v143 = vld [vmem:[%s0 + $0x400] sm:$0xff]
  %v144 = vld [vmem:[%s0 + $0x408] sm:$0xff]
  %v145 = vld [vmem:[%s0 + $0x410] sm:$0xff]
  %v146 = vld [vmem:[%s0 + $0x418] sm:$0xff]
  %v147 = vld [vmem:[%s0 + $0x420] sm:$0x11]
  %v148 = vld [vmem:[%s1] sm:$0xf]
  %v149 = vld [vmem:[%s1 + $0x4] sm:$0xf]
  %v150 = vld [vmem:[%s1 + $0x8] sm:$0xf]
  %v151 = vld [vmem:[%s1 + $0xc] sm:$0xf]
  %v152 = vld [vmem:[%s1 + $0x10] sm:$0xf]
  %v153 = vld [vmem:[%s1 + $0x14] sm:$0xf]
  %v154 = vld [vmem:[%s1 + $0x18] sm:$0xf]
  %v155 = vld [vmem:[%s1 + $0x1c] sm:$0xf]
  %v156 = vld [vmem:[%s1 + $0x20] sm:$0xf]
  %v157 = vld [vmem:[%s1 + $0x24] sm:$0xf]
  %v158 = vld [vmem:[%s1 + $0x28] sm:$0xf]
  %v159 = vld [vmem:[%s1 + $0x2c] sm:$0xf]
  %v160 = vld [vmem:[%s1 + $0x30] sm:$0xf]
  %v161 = vld [vmem:[%s1 + $0x34] sm:$0xf]
  %v162 = vld [vmem:[%s1 + $0x38] sm:$0xf]
  %v163 = vld [vmem:[%s1 + $0x3c] sm:$0xf]
  %v164 = vld [vmem:[%s1 + $0x40] sm:$0xf]
  %v165 = vld [vmem:[%s1 + $0x44] sm:$0xf]
  %v166 = vld [vmem:[%s1 + $0x48] sm:$0xf]
  %v167 = vld [vmem:[%s1 + $0x4c] sm:$0xf]
  %v168 = vld [vmem:[%s1 + $0x50] sm:$0xf]
  %v169 = vld [vmem:[%s1 + $0x54] sm:$0xf]
  %v170 = vld [vmem:[%s1 + $0x58] sm:$0xf]
  %v171 = vld [vmem:[%s1 + $0x5c] sm:$0xf]
  %v172 = vld [vmem:[%s2] sm:$0x1]
  %v174 = vlaneseq
  %v175 = vshrl.u32 %v174, 7
  %v176 = vsub.s32 0, %v175
  %v177 = vrot.slane %v172, %v176
  %v312 = vunpack.c.l.b16 %v15
  %v313 = vunpack.c.h.b16 %v15
  %v314 = vunpack.c.l.b16 %v16
  %v315 = vunpack.c.h.b16 %v16
  %v316 = vunpack.c.l.b16 %v17
  %v317 = vunpack.c.h.b16 %v17
  %v318 = vunpack.c.l.b16 %v18
  %v319 = vunpack.c.h.b16 %v18
  %v320 = vunpack.c.l.b16 %v19
  %v321 = vunpack.c.h.b16 %v19
  %v322 = vunpack.c.l.b16 %v20
  %v323 = vunpack.c.h.b16 %v20
  %v324 = vunpack.c.l.b16 %v21
  %v325 = vunpack.c.h.b16 %v21
  %v326 = vunpack.c.l.b16 %v22
  %v327 = vunpack.c.h.b16 %v22
  %v328 = vunpack.c.l.b16 %v23
  %v329 = vunpack.c.h.b16 %v23
  %v330 = vunpack.c.l.b16 %v24
  %v331 = vunpack.c.h.b16 %v24
  %v332 = vunpack.c.l.b16 %v25
  %v333 = vunpack.c.h.b16 %v25
  %v334 = vunpack.c.l.b16 %v26
  %v335 = vunpack.c.h.b16 %v26
  %v336 = vunpack.c.l.b16 %v27
  %v337 = vunpack.c.h.b16 %v27
  %v338 = vunpack.c.l.b16 %v28
  %v339 = vunpack.c.h.b16 %v28
  %v340 = vunpack.c.l.b16 %v29
  %v341 = vunpack.c.h.b16 %v29
  %v342 = vunpack.c.l.b16 %v30
  %v343 = vunpack.c.h.b16 %v30
  %v344 = vunpack.c.l.b16 %v31
  %v345 = vunpack.c.h.b16 %v31
  %v346 = vunpack.c.l.b16 %v32
  %v347 = vunpack.c.h.b16 %v32
  %v348 = vunpack.c.l.b16 %v33
  %v349 = vunpack.c.h.b16 %v33
  %v350 = vunpack.c.l.b16 %v34
  %v351 = vunpack.c.h.b16 %v34
  %v352 = vunpack.c.l.b16 %v35
  %v353 = vunpack.c.h.b16 %v35
  %v354 = vunpack.c.l.b16 %v36
  %v355 = vunpack.c.h.b16 %v36
  %v356 = vunpack.c.l.b16 %v37
  %v357 = vunpack.c.h.b16 %v37
  %v358 = vunpack.c.l.b16 %v38
  %v359 = vunpack.c.h.b16 %v38
  %v360 = vunpack.c.l.b16 %v39
  %v361 = vunpack.c.h.b16 %v39
  %v362 = vunpack.c.l.b16 %v40
  %v363 = vunpack.c.h.b16 %v40
  %v364 = vunpack.c.l.b16 %v41
  %v365 = vunpack.c.h.b16 %v41
  %v366 = vunpack.c.l.b16 %v42
  %v367 = vunpack.c.h.b16 %v42
  %v368 = vunpack.c.l.b16 %v43
  %v369 = vunpack.c.h.b16 %v43
  %v370 = vunpack.c.l.b16 %v44
  %v371 = vunpack.c.h.b16 %v44
  %v372 = vunpack.c.l.b16 %v45
  %v373 = vunpack.c.h.b16 %v45
  %v374 = vunpack.c.l.b16 %v46
  %v375 = vunpack.c.h.b16 %v46
  %v376 = vunpack.c.l.b16 %v47
  %v377 = vunpack.c.h.b16 %v47
  %v378 = vunpack.c.l.b16 %v48
  %v379 = vunpack.c.h.b16 %v48
  %v380 = vunpack.c.l.b16 %v49
  %v381 = vunpack.c.h.b16 %v49
  %v382 = vunpack.c.l.b16 %v50
  %v383 = vunpack.c.h.b16 %v50
  %v384 = vunpack.c.l.b16 %v51
  %v385 = vunpack.c.h.b16 %v51
  %v386 = vunpack.c.l.b16 %v52
  %v387 = vunpack.c.h.b16 %v52
  %v388 = vunpack.c.l.b16 %v53
  %v389 = vunpack.c.h.b16 %v53
  %v390 = vunpack.c.l.b16 %v54
  %v391 = vunpack.c.h.b16 %v54
  %v392 = vunpack.c.l.b16 %v55
  %v393 = vunpack.c.h.b16 %v55
  %v394 = vunpack.c.l.b16 %v56
  %v395 = vunpack.c.h.b16 %v56
  %v396 = vunpack.c.l.b16 %v57
  %v397 = vunpack.c.h.b16 %v57
  %v398 = vunpack.c.l.b16 %v58
  %v399 = vunpack.c.h.b16 %v58
  %v400 = vunpack.c.l.b16 %v59
  %v401 = vunpack.c.h.b16 %v59
  %v402 = vunpack.c.l.b16 %v60
  %v403 = vunpack.c.h.b16 %v60
  %v404 = vunpack.c.l.b16 %v61
  %v405 = vunpack.c.h.b16 %v61
  %v406 = vunpack.c.l.b16 %v62
  %v407 = vunpack.c.h.b16 %v62
  %v408 = vunpack.c.l.b16 %v63
  %v409 = vunpack.c.h.b16 %v63
  %v410 = vunpack.c.l.b16 %v64
  %v411 = vunpack.c.h.b16 %v64
  %v412 = vunpack.c.l.b16 %v65
  %v413 = vunpack.c.h.b16 %v65
  %v414 = vunpack.c.l.b16 %v66
  %v415 = vunpack.c.h.b16 %v66
  %v416 = vunpack.c.l.b16 %v67
  %v417 = vunpack.c.h.b16 %v67
  %v418 = vunpack.c.l.b16 %v68
  %v419 = vunpack.c.h.b16 %v68
  %v420 = vunpack.c.l.b16 %v69
  %v421 = vunpack.c.h.b16 %v69
  %v422 = vunpack.c.l.b16 %v70
  %v423 = vunpack.c.h.b16 %v70
  %v424 = vunpack.c.l.b16 %v71
  %v425 = vunpack.c.h.b16 %v71
  %v426 = vunpack.c.l.b16 %v72
  %v427 = vunpack.c.h.b16 %v72
  %v428 = vunpack.c.l.b16 %v73
  %v429 = vunpack.c.h.b16 %v73
  %v430 = vunpack.c.l.b16 %v74
  %v431 = vunpack.c.h.b16 %v74
  %v432 = vunpack.c.l.b16 %v75
  %v433 = vunpack.c.h.b16 %v75
  %v434 = vunpack.c.l.b16 %v76
  %v435 = vunpack.c.h.b16 %v76
  %v436 = vunpack.c.l.b16 %v77
  %v437 = vunpack.c.h.b16 %v77
  %v438 = vunpack.c.l.b16 %v78
  %v439 = vunpack.c.h.b16 %v78
  %v440 = vunpack.c.l.b16 %v79
  %v441 = vunpack.c.h.b16 %v79
  %v442 = vunpack.c.l.b16 %v80
  %v443 = vunpack.c.h.b16 %v80
  %v444 = vunpack.c.l.b16 %v81
  %v445 = vunpack.c.h.b16 %v81
  %v446 = vunpack.c.l.b16 %v82
  %v447 = vunpack.c.h.b16 %v82
  %v448 = vunpack.c.l.b16 %v83
  %v449 = vunpack.c.h.b16 %v83
  %v450 = vunpack.c.l.b16 %v84
  %v451 = vunpack.c.h.b16 %v84
  %v452 = vunpack.c.l.b16 %v85
  %v453 = vunpack.c.h.b16 %v85
  %v454 = vunpack.c.l.b16 %v86
  %v455 = vunpack.c.h.b16 %v86
  %v456 = vunpack.c.l.b16 %v87
  %v457 = vunpack.c.h.b16 %v87
  %v458 = vunpack.c.l.b16 %v88
  %v459 = vunpack.c.h.b16 %v88
  %v460 = vunpack.c.l.b16 %v89
  %v461 = vunpack.c.h.b16 %v89
  %v462 = vunpack.c.l.b16 %v90
  %v463 = vunpack.c.h.b16 %v90
  %v464 = vunpack.c.l.b16 %v91
  %v465 = vunpack.c.h.b16 %v91
  %v466 = vunpack.c.l.b16 %v92
  %v467 = vunpack.c.h.b16 %v92
  %v468 = vunpack.c.l.b16 %v93
  %v469 = vunpack.c.h.b16 %v93
  %v470 = vunpack.c.l.b16 %v94
  %v471 = vunpack.c.h.b16 %v94
  %v472 = vunpack.c.l.b16 %v95
  %v473 = vunpack.c.h.b16 %v95
  %v474 = vunpack.c.l.b16 %v96
  %v475 = vunpack.c.h.b16 %v96
  %v476 = vunpack.c.l.b16 %v97
  %v477 = vunpack.c.h.b16 %v97
  %v478 = vunpack.c.l.b16 %v98
  %v479 = vunpack.c.h.b16 %v98
  %v480 = vunpack.c.l.b16 %v99
  %v481 = vunpack.c.h.b16 %v99
  %v482 = vunpack.c.l.b16 %v100
  %v483 = vunpack.c.h.b16 %v100
  %v484 = vunpack.c.l.b16 %v101
  %v485 = vunpack.c.h.b16 %v101
  %v486 = vunpack.c.l.b16 %v102
  %v487 = vunpack.c.h.b16 %v102
  %v488 = vunpack.c.l.b16 %v103
  %v489 = vunpack.c.h.b16 %v103
  %v490 = vunpack.c.l.b16 %v104
  %v491 = vunpack.c.h.b16 %v104
  %v492 = vunpack.c.l.b16 %v105
  %v493 = vunpack.c.h.b16 %v105
  %v494 = vunpack.c.l.b16 %v106
  %v495 = vunpack.c.h.b16 %v106
  %v496 = vunpack.c.l.b16 %v107
  %v497 = vunpack.c.h.b16 %v107
  %v498 = vunpack.c.l.b16 %v108
  %v499 = vunpack.c.h.b16 %v108
  %v500 = vunpack.c.l.b16 %v109
  %v501 = vunpack.c.h.b16 %v109
  %v502 = vunpack.c.l.b16 %v110
  %v503 = vunpack.c.h.b16 %v110
  %v504 = vunpack.c.l.b16 %v111
  %v505 = vunpack.c.h.b16 %v111
  %v506 = vunpack.c.l.b16 %v112
  %v507 = vunpack.c.h.b16 %v112
  %v508 = vunpack.c.l.b16 %v113
  %v509 = vunpack.c.h.b16 %v113
  %v510 = vunpack.c.l.b16 %v114
  %v511 = vunpack.c.h.b16 %v114
  %v512 = vunpack.c.l.b16 %v115
  %v513 = vunpack.c.h.b16 %v115
  %v514 = vunpack.c.l.b16 %v116
  %v515 = vunpack.c.h.b16 %v116
  %v516 = vunpack.c.l.b16 %v117
  %v517 = vunpack.c.h.b16 %v117
  %v518 = vunpack.c.l.b16 %v118
  %v519 = vunpack.c.h.b16 %v118
  %v520 = vunpack.c.l.b16 %v119
  %v521 = vunpack.c.h.b16 %v119
  %v522 = vunpack.c.l.b16 %v120
  %v523 = vunpack.c.h.b16 %v120
  %v524 = vunpack.c.l.b16 %v121
  %v525 = vunpack.c.h.b16 %v121
  %v526 = vunpack.c.l.b16 %v122
  %v527 = vunpack.c.h.b16 %v122
  %v528 = vunpack.c.l.b16 %v123
  %v529 = vunpack.c.h.b16 %v123
  %v530 = vunpack.c.l.b16 %v124
  %v531 = vunpack.c.h.b16 %v124
  %v532 = vunpack.c.l.b16 %v125
  %v533 = vunpack.c.h.b16 %v125
  %v534 = vunpack.c.l.b16 %v126
  %v535 = vunpack.c.h.b16 %v126
  %v536 = vunpack.c.l.b16 %v127
  %v537 = vunpack.c.h.b16 %v127
  %v538 = vunpack.c.l.b16 %v128
  %v539 = vunpack.c.h.b16 %v128
  %v540 = vunpack.c.l.b16 %v129
  %v541 = vunpack.c.h.b16 %v129
  %v542 = vunpack.c.l.b16 %v130
  %v543 = vunpack.c.h.b16 %v130
  %v544 = vunpack.c.l.b16 %v131
  %v545 = vunpack.c.h.b16 %v131
  %v546 = vunpack.c.l.b16 %v132
  %v547 = vunpack.c.h.b16 %v132
  %v548 = vunpack.c.l.b16 %v133
  %v549 = vunpack.c.h.b16 %v133
  %v550 = vunpack.c.l.b16 %v134
  %v551 = vunpack.c.h.b16 %v134
  %v552 = vunpack.c.l.b16 %v135
  %v553 = vunpack.c.h.b16 %v135
  %v554 = vunpack.c.l.b16 %v136
  %v555 = vunpack.c.h.b16 %v136
  %v556 = vunpack.c.l.b16 %v137
  %v557 = vunpack.c.h.b16 %v137
  %v558 = vunpack.c.l.b16 %v138
  %v559 = vunpack.c.h.b16 %v138
  %v560 = vunpack.c.l.b16 %v139
  %v561 = vunpack.c.h.b16 %v139
  %v562 = vunpack.c.l.b16 %v140
  %v563 = vunpack.c.h.b16 %v140
  %v564 = vunpack.c.l.b16 %v141
  %v565 = vunpack.c.h.b16 %v141
  %v566 = vunpack.c.l.b16 %v142
  %v567 = vunpack.c.h.b16 %v142
  %v568 = vunpack.c.l.b16 %v143
  %v569 = vunpack.c.h.b16 %v143
  %v570 = vunpack.c.l.b16 %v144
  %v571 = vunpack.c.h.b16 %v144
  %v572 = vunpack.c.l.b16 %v145
  %v573 = vunpack.c.h.b16 %v145
  %v574 = vunpack.c.l.b16 %v146
  %v575 = vunpack.c.h.b16 %v146
  %v576 = vunpack.c.l.b16 %v147
  %v577 = vunpack.c.h.b16 %v147
  %v578 = vpack.c.b16 %v314, %v312
  %v579 = vpack.c.b16 %v315, %v313
  %v580 = vpack.c.b16 %v318, %v316
  %v581 = vpack.c.b16 %v319, %v317
  %v582 = vpack.c.b16 %v322, %v320
  %v583 = vpack.c.b16 %v323, %v321
  %v584 = vpack.c.b16 %v326, %v324
  %v585 = vpack.c.b16 %v327, %v325
  %v586 = vpack.c.b16 %v330, %v328
  %v587 = vpack.c.b16 %v331, %v329
  %v588 = vpack.c.b16 %v334, %v332
  %v589 = vpack.c.b16 %v335, %v333
  %v590 = vpack.c.b16 %v338, %v336
  %v591 = vpack.c.b16 %v339, %v337
  %v592 = vpack.c.b16 %v342, %v340
  %v593 = vpack.c.b16 %v343, %v341
  %v594 = vpack.c.b16 %v346, %v344
  %v595 = vpack.c.b16 %v347, %v345
  %v596 = vpack.c.b16 %v350, %v348
  %v597 = vpack.c.b16 %v351, %v349
  %v598 = vpack.c.b16 %v354, %v352
  %v599 = vpack.c.b16 %v355, %v353
  %v600 = vpack.c.b16 %v358, %v356
  %v601 = vpack.c.b16 %v359, %v357
  %v602 = vpack.c.b16 %v362, %v360
  %v603 = vpack.c.b16 %v363, %v361
  %v604 = vpack.c.b16 %v366, %v364
  %v605 = vpack.c.b16 %v367, %v365
  %v606 = vpack.c.b16 %v370, %v368
  %v607 = vpack.c.b16 %v371, %v369
  %v608 = vpack.c.b16 %v374, %v372
  %v609 = vpack.c.b16 %v375, %v373
  %v610 = vpack.c.b16 %v378, %v376
  %v611 = vpack.c.b16 %v379, %v377
  %v612 = vpack.c.b16 %v382, %v380
  %v613 = vpack.c.b16 %v383, %v381
  %v614 = vpack.c.b16 %v386, %v384
  %v615 = vpack.c.b16 %v387, %v385
  %v616 = vpack.c.b16 %v390, %v388
  %v617 = vpack.c.b16 %v391, %v389
  %v618 = vpack.c.b16 %v394, %v392
  %v619 = vpack.c.b16 %v395, %v393
  %v620 = vpack.c.b16 %v398, %v396
  %v621 = vpack.c.b16 %v399, %v397
  %v622 = vpack.c.b16 %v402, %v400
  %v623 = vpack.c.b16 %v403, %v401
  %v624 = vpack.c.b16 %v406, %v404
  %v625 = vpack.c.b16 %v407, %v405
  %v626 = vpack.c.b16 %v410, %v408
  %v627 = vpack.c.b16 %v411, %v409
  %v628 = vpack.c.b16 %v414, %v412
  %v629 = vpack.c.b16 %v415, %v413
  %v630 = vpack.c.b16 %v418, %v416
  %v631 = vpack.c.b16 %v419, %v417
  %v632 = vpack.c.b16 %v422, %v420
  %v633 = vpack.c.b16 %v423, %v421
  %v634 = vpack.c.b16 %v426, %v424
  %v635 = vpack.c.b16 %v427, %v425
  %v636 = vpack.c.b16 %v430, %v428
  %v637 = vpack.c.b16 %v431, %v429
  %v638 = vpack.c.b16 %v434, %v432
  %v639 = vpack.c.b16 %v435, %v433
  %v640 = vpack.c.b16 %v438, %v436
  %v641 = vpack.c.b16 %v439, %v437
  %v642 = vpack.c.b16 %v442, %v440
  %v643 = vpack.c.b16 %v443, %v441
  %v644 = vpack.c.b16 %v446, %v444
  %v645 = vpack.c.b16 %v447, %v445
  %v646 = vpack.c.b16 %v450, %v448
  %v647 = vpack.c.b16 %v451, %v449
  %v648 = vpack.c.b16 %v454, %v452
  %v649 = vpack.c.b16 %v455, %v453
  %v650 = vpack.c.b16 %v458, %v456
  %v651 = vpack.c.b16 %v459, %v457
  %v652 = vpack.c.b16 %v462, %v460
  %v653 = vpack.c.b16 %v463, %v461
  %v654 = vpack.c.b16 %v466, %v464
  %v655 = vpack.c.b16 %v467, %v465
  %v656 = vpack.c.b16 %v470, %v468
  %v657 = vpack.c.b16 %v471, %v469
  %v658 = vpack.c.b16 %v474, %v472
  %v659 = vpack.c.b16 %v475, %v473
  %v660 = vpack.c.b16 %v478, %v476
  %v661 = vpack.c.b16 %v479, %v477
  %v662 = vpack.c.b16 %v482, %v480
  %v663 = vpack.c.b16 %v483, %v481
  %v664 = vpack.c.b16 %v486, %v484
  %v665 = vpack.c.b16 %v487, %v485
  %v666 = vpack.c.b16 %v490, %v488
  %v667 = vpack.c.b16 %v491, %v489
  %v668 = vpack.c.b16 %v494, %v492
  %v669 = vpack.c.b16 %v495, %v493
  %v670 = vpack.c.b16 %v498, %v496
  %v671 = vpack.c.b16 %v499, %v497
  %v672 = vpack.c.b16 %v502, %v500
  %v673 = vpack.c.b16 %v503, %v501
  %v674 = vpack.c.b16 %v506, %v504
  %v675 = vpack.c.b16 %v507, %v505
  %v676 = vpack.c.b16 %v510, %v508
  %v677 = vpack.c.b16 %v511, %v509
  %v678 = vpack.c.b16 %v514, %v512
  %v679 = vpack.c.b16 %v515, %v513
  %v680 = vpack.c.b16 %v518, %v516
  %v681 = vpack.c.b16 %v519, %v517
  %v682 = vpack.c.b16 %v522, %v520
  %v683 = vpack.c.b16 %v523, %v521
  %v684 = vpack.c.b16 %v526, %v524
  %v685 = vpack.c.b16 %v527, %v525
  %v686 = vpack.c.b16 %v530, %v528
  %v687 = vpack.c.b16 %v531, %v529
  %v688 = vpack.c.b16 %v534, %v532
  %v689 = vpack.c.b16 %v535, %v533
  %v690 = vpack.c.b16 %v538, %v536
  %v691 = vpack.c.b16 %v539, %v537
  %v692 = vpack.c.b16 %v542, %v540
  %v693 = vpack.c.b16 %v543, %v541
  %v694 = vpack.c.b16 %v546, %v544
  %v695 = vpack.c.b16 %v547, %v545
  %v696 = vpack.c.b16 %v550, %v548
  %v697 = vpack.c.b16 %v551, %v549
  %v698 = vpack.c.b16 %v554, %v552
  %v699 = vpack.c.b16 %v555, %v553
  %v700 = vpack.c.b16 %v558, %v556
  %v701 = vpack.c.b16 %v559, %v557
  %v702 = vpack.c.b16 %v562, %v560
  %v703 = vpack.c.b16 %v563, %v561
  %v704 = vpack.c.b16 %v566, %v564
  %v705 = vpack.c.b16 %v567, %v565
  %v706 = vpack.c.b16 %v570, %v568
  %v707 = vpack.c.b16 %v571, %v569
  %v708 = vpack.c.b16 %v574, %v572
  %v709 = vpack.c.b16 %v575, %v573
  %v710 = vpack.c.b16 %v576, %v576
  %v711 = vpack.c.b16 %v577, %v577
  %v803 = vunpack.c.l.b16 %v148
  %v804 = vunpack.c.l.b16 %v149
  %v805 = vunpack.c.l.b16 %v150
  %v806 = vunpack.c.l.b16 %v151
  %v807 = vunpack.c.l.b16 %v152
  %v808 = vunpack.c.l.b16 %v153
  %v809 = vunpack.c.l.b16 %v154
  %v810 = vunpack.c.l.b16 %v155
  %v811 = vunpack.c.l.b16 %v156
  %v812 = vunpack.c.l.b16 %v157
  %v813 = vunpack.c.l.b16 %v158
  %v814 = vunpack.c.l.b16 %v159
  %v815 = vunpack.c.l.b16 %v160
  %v816 = vunpack.c.l.b16 %v161
  %v817 = vunpack.c.l.b16 %v162
  %v818 = vunpack.c.l.b16 %v163
  %v819 = vunpack.c.l.b16 %v164
  %v820 = vunpack.c.l.b16 %v165
  %v821 = vunpack.c.l.b16 %v166
  %v822 = vunpack.c.l.b16 %v167
  %v823 = vunpack.c.l.b16 %v168
  %v824 = vunpack.c.l.b16 %v169
  %v825 = vunpack.c.l.b16 %v170
  %v826 = vunpack.c.l.b16 %v171
  %v827 = vpack.c.b16 %v804, %v803
  %v828 = vpack.c.b16 %v806, %v805
  %v829 = vpack.c.b16 %v808, %v807
  %v830 = vpack.c.b16 %v810, %v809
  %v831 = vpack.c.b16 %v812, %v811
  %v832 = vpack.c.b16 %v814, %v813
  %v833 = vpack.c.b16 %v816, %v815
  %v834 = vpack.c.b16 %v818, %v817
  %v835 = vpack.c.b16 %v820, %v819
  %v836 = vpack.c.b16 %v822, %v821
  %v837 = vpack.c.b16 %v824, %v823
  %v838 = vpack.c.b16 %v826, %v825
  %vm851 = vcmask 523264
  %v853 = vsel %vm851, %v579, 0
  %v856 = vsel %vm851, %v581, 0
  %v859 = vsel %vm851, %v583, 0
  %v862 = vsel %vm851, %v585, 0
  %v865 = vsel %vm851, %v587, 0
  %v868 = vsel %vm851, %v589, 0
  %v871 = vsel %vm851, %v591, 0
  %v874 = vsel %vm851, %v593, 0
  %v877 = vsel %vm851, %v595, 0
  %v880 = vsel %vm851, %v597, 0
  %v883 = vsel %vm851, %v599, 0
  %v886 = vsel %vm851, %v601, 0
  %v889 = vsel %vm851, %v603, 0
  %v892 = vsel %vm851, %v605, 0
  %v895 = vsel %vm851, %v607, 0
  %v898 = vsel %vm851, %v609, 0
  %v901 = vsel %vm851, %v611, 0
  %v904 = vsel %vm851, %v613, 0
  %v907 = vsel %vm851, %v615, 0
  %v910 = vsel %vm851, %v617, 0
  %v913 = vsel %vm851, %v619, 0
  %v916 = vsel %vm851, %v621, 0
  %v919 = vsel %vm851, %v623, 0
  %v922 = vsel %vm851, %v625, 0
  %v925 = vsel %vm851, %v627, 0
  %v928 = vsel %vm851, %v629, 0
  %v931 = vsel %vm851, %v631, 0
  %v934 = vsel %vm851, %v633, 0
  %v937 = vsel %vm851, %v635, 0
  %v940 = vsel %vm851, %v637, 0
  %v943 = vsel %vm851, %v639, 0
  %v946 = vsel %vm851, %v641, 0
  %v949 = vsel %vm851, %v643, 0
  %v952 = vsel %vm851, %v645, 0
  %v955 = vsel %vm851, %v647, 0
  %v958 = vsel %vm851, %v649, 0
  %v961 = vsel %vm851, %v651, 0
  %v964 = vsel %vm851, %v653, 0
  %v967 = vsel %vm851, %v655, 0
  %v970 = vsel %vm851, %v657, 0
  %v973 = vsel %vm851, %v659, 0
  %v976 = vsel %vm851, %v661, 0
  %v979 = vsel %vm851, %v663, 0
  %v982 = vsel %vm851, %v665, 0
  %v985 = vsel %vm851, %v667, 0
  %v988 = vsel %vm851, %v669, 0
  %v991 = vsel %vm851, %v671, 0
  %v994 = vsel %vm851, %v673, 0
  %v997 = vsel %vm851, %v675, 0
  %v1000 = vsel %vm851, %v677, 0
  %v1003 = vsel %vm851, %v679, 0
  %v1006 = vsel %vm851, %v681, 0
  %v1009 = vsel %vm851, %v683, 0
  %v1012 = vsel %vm851, %v685, 0
  %v1015 = vsel %vm851, %v687, 0
  %v1018 = vsel %vm851, %v689, 0
  %v1021 = vsel %vm851, %v691, 0
  %v1024 = vsel %vm851, %v693, 0
  %v1027 = vsel %vm851, %v695, 0
  %v1030 = vsel %vm851, %v697, 0
  %v1033 = vsel %vm851, %v699, 0
  %v1036 = vsel %vm851, %v701, 0
  %v1039 = vsel %vm851, %v703, 0
  %v1042 = vsel %vm851, %v705, 0
  %v1045 = vsel %vm851, %v707, 0
  %v1048 = vsel %vm851, %v709, 0
  %v1051 = vsel %vm851, %v711, 0
  %1053 = vmatprep.subr.bf16.mxu0 0
  %1054 = vmatpush1.bf16.msra.mxu0 %v834
  %1055 = vmatprep.subr.bf16.mxu0 0
  %1056 = vmatpush1.bf16.msra.mxu0 %v833
  %1057 = vmatprep.subr.bf16.mxu0 0
  %1058 = vmatpush1.bf16.msra.mxu0 %v832
  %1059 = vmatprep.subr.bf16.mxu0 0
  %1060 = vmatpush1.bf16.msra.mxu0 %v831
  %1061 = vmatprep.subr.bf16.mxu0 0
  %1062 = vmatpush1.bf16.msra.mxu0 %v830
  %1063 = vmatprep.subr.bf16.mxu0 0
  %1064 = vmatpush1.bf16.msra.mxu0 %v829
  %1065 = vmatprep.subr.bf16.mxu0 0
  %1066 = vmatpush1.bf16.msra.mxu0 %v828
  %1067 = vmatprep.subr.bf16.mxu0 0
  %1068 = vmatpush1.bf16.msra.mxu0 %v827
  %1069 = vmatprep.subr.bf16.mxu0 0
  %1070 = vmatpush2.bf16.msra.mxu0 0
  %1071 = vmatprep.subr.bf16.mxu0 0
  %1072 = vmatpush2.bf16.msra.mxu0 0
  %1073 = vmatprep.subr.bf16.mxu0 0
  %1074 = vmatpush2.bf16.msra.mxu0 0
  %1075 = vmatprep.subr.bf16.mxu0 0
  %1076 = vmatpush2.bf16.msra.mxu0 0
  %1077 = vmatprep.subr.bf16.mxu0 0
  %1078 = vmatpush2.bf16.msra.mxu0 %v838
  %1079 = vmatprep.subr.bf16.mxu0 0
  %1080 = vmatpush2.bf16.msra.mxu0 %v837
  %1081 = vmatprep.subr.bf16.mxu0 0
  %1082 = vmatpush2.bf16.msra.mxu0 %v836
  %1083 = vmatprep.subr.bf16.mxu0 0
  %1084 = vmatpush2.bf16.msra.mxu0 %v835
  %1085 = vmatprep.mubr.bf16.mxu0 %v853
  %1086 = vmatmul.mubr.bf16.gmra.mxu0 %v578
  %v1087 = vpop.f32.mrf.mxu0
  %v1088 = vadd.f32 %v177, %v1087
  %v1089 = vpop.f32.mrf.mxu0
  %v1090 = vpop.f32.mrf.mxu0
  %v1091 = vadd.f32 %v177, %v1090
  %v1092 = vpop.f32.mrf.mxu0
  %1093 = vmatprep.mubr.bf16.mxu0 %v856
  %1094 = vmatmul.mubr.bf16.gmra.mxu0 %v580
  %v1095 = vpop.f32.mrf.mxu0
  %v1096 = vadd.f32 %v177, %v1095
  %v1097 = vpop.f32.mrf.mxu0
  %v1098 = vpop.f32.mrf.mxu0
  %v1099 = vadd.f32 %v177, %v1098
  %v1100 = vpop.f32.mrf.mxu0
  %1101 = vmatprep.mubr.bf16.mxu0 %v859
  %1102 = vmatmul.mubr.bf16.gmra.mxu0 %v582
  %v1103 = vpop.f32.mrf.mxu0
  %v1104 = vadd.f32 %v177, %v1103
  %v1105 = vpop.f32.mrf.mxu0
  %v1106 = vpop.f32.mrf.mxu0
  %v1107 = vadd.f32 %v177, %v1106
  %v1108 = vpop.f32.mrf.mxu0
  %1109 = vmatprep.mubr.bf16.mxu0 %v862
  %1110 = vmatmul.mubr.bf16.gmra.mxu0 %v584
  %v1111 = vpop.f32.mrf.mxu0
  %v1112 = vadd.f32 %v177, %v1111
  %v1113 = vpop.f32.mrf.mxu0
  %v1114 = vpop.f32.mrf.mxu0
  %v1115 = vadd.f32 %v177, %v1114
  %v1116 = vpop.f32.mrf.mxu0
  %1117 = vmatprep.mubr.bf16.mxu0 %v865
  %1118 = vmatmul.mubr.bf16.gmra.mxu0 %v586
  %v1119 = vpop.f32.mrf.mxu0
  %v1120 = vadd.f32 %v177, %v1119
  %v1121 = vpop.f32.mrf.mxu0
  %v1122 = vpop.f32.mrf.mxu0
  %v1123 = vadd.f32 %v177, %v1122
  %v1124 = vpop.f32.mrf.mxu0
  %1125 = vmatprep.mubr.bf16.mxu0 %v868
  %1126 = vmatmul.mubr.bf16.gmra.mxu0 %v588
  %v1127 = vpop.f32.mrf.mxu0
  %v1128 = vadd.f32 %v177, %v1127
  %v1129 = vpop.f32.mrf.mxu0
  %v1130 = vpop.f32.mrf.mxu0
  %v1131 = vadd.f32 %v177, %v1130
  %v1132 = vpop.f32.mrf.mxu0
  %1133 = vmatprep.mubr.bf16.mxu0 %v871
  %1134 = vmatmul.mubr.bf16.gmra.mxu0 %v590
  %v1135 = vpop.f32.mrf.mxu0
  %v1136 = vadd.f32 %v177, %v1135
  %v1137 = vpop.f32.mrf.mxu0
  %v1138 = vpop.f32.mrf.mxu0
  %v1139 = vadd.f32 %v177, %v1138
  %v1140 = vpop.f32.mrf.mxu0
  %1141 = vmatprep.mubr.bf16.mxu0 %v874
  %1142 = vmatmul.mubr.bf16.gmra.mxu0 %v592
  %v1143 = vpop.f32.mrf.mxu0
  %v1144 = vadd.f32 %v177, %v1143
  %v1145 = vpop.f32.mrf.mxu0
  %v1146 = vpop.f32.mrf.mxu0
  %v1147 = vadd.f32 %v177, %v1146
  %v1148 = vpop.f32.mrf.mxu0
  %1149 = vmatprep.mubr.bf16.mxu0 %v877
  %1150 = vmatmul.mubr.bf16.gmra.mxu0 %v594
  %v1151 = vpop.f32.mrf.mxu0
  %v1152 = vadd.f32 %v177, %v1151
  %v1153 = vpop.f32.mrf.mxu0
  %v1154 = vpop.f32.mrf.mxu0
  %v1155 = vadd.f32 %v177, %v1154
  %v1156 = vpop.f32.mrf.mxu0
  %1157 = vmatprep.mubr.bf16.mxu0 %v880
  %1158 = vmatmul.mubr.bf16.gmra.mxu0 %v596
  %v1159 = vpop.f32.mrf.mxu0
  %v1160 = vadd.f32 %v177, %v1159
  %v1161 = vpop.f32.mrf.mxu0
  %v1162 = vpop.f32.mrf.mxu0
  %v1163 = vadd.f32 %v177, %v1162
  %v1164 = vpop.f32.mrf.mxu0
  %1165 = vmatprep.mubr.bf16.mxu0 %v883
  %1166 = vmatmul.mubr.bf16.gmra.mxu0 %v598
  %v1167 = vpop.f32.mrf.mxu0
  %v1168 = vadd.f32 %v177, %v1167
  %v1169 = vpop.f32.mrf.mxu0
  %v1170 = vpop.f32.mrf.mxu0
  %v1171 = vadd.f32 %v177, %v1170
  %v1172 = vpop.f32.mrf.mxu0
  %1173 = vmatprep.mubr.bf16.mxu0 %v886
  %1174 = vmatmul.mubr.bf16.gmra.mxu0 %v600
  %v1175 = vpop.f32.mrf.mxu0
  %v1176 = vadd.f32 %v177, %v1175
  %v1177 = vpop.f32.mrf.mxu0
  %v1178 = vpop.f32.mrf.mxu0
  %v1179 = vadd.f32 %v177, %v1178
  %v1180 = vpop.f32.mrf.mxu0
  %1181 = vmatprep.mubr.bf16.mxu0 %v889
  %1182 = vmatmul.mubr.bf16.gmra.mxu0 %v602
  %v1183 = vpop.f32.mrf.mxu0
  %v1184 = vadd.f32 %v177, %v1183
  %v1185 = vpop.f32.mrf.mxu0
  %v1186 = vpop.f32.mrf.mxu0
  %v1187 = vadd.f32 %v177, %v1186
  %v1188 = vpop.f32.mrf.mxu0
  %1189 = vmatprep.mubr.bf16.mxu0 %v892
  %1190 = vmatmul.mubr.bf16.gmra.mxu0 %v604
  %v1191 = vpop.f32.mrf.mxu0
  %v1192 = vadd.f32 %v177, %v1191
  %v1193 = vpop.f32.mrf.mxu0
  %v1194 = vpop.f32.mrf.mxu0
  %v1195 = vadd.f32 %v177, %v1194
  %v1196 = vpop.f32.mrf.mxu0
  %1197 = vmatprep.mubr.bf16.mxu0 %v895
  %1198 = vmatmul.mubr.bf16.gmra.mxu0 %v606
  %v1199 = vpop.f32.mrf.mxu0
  %v1200 = vadd.f32 %v177, %v1199
  %v1201 = vpop.f32.mrf.mxu0
  %v1202 = vpop.f32.mrf.mxu0
  %v1203 = vadd.f32 %v177, %v1202
  %v1204 = vpop.f32.mrf.mxu0
  %1205 = vmatprep.mubr.bf16.mxu0 %v898
  %1206 = vmatmul.mubr.bf16.gmra.mxu0 %v608
  %v1207 = vpop.f32.mrf.mxu0
  %v1208 = vadd.f32 %v177, %v1207
  %v1209 = vpop.f32.mrf.mxu0
  %v1210 = vpop.f32.mrf.mxu0
  %v1211 = vadd.f32 %v177, %v1210
  %v1212 = vpop.f32.mrf.mxu0
  %1213 = vmatprep.mubr.bf16.mxu0 %v901
  %1214 = vmatmul.mubr.bf16.gmra.mxu0 %v610
  %v1215 = vpop.f32.mrf.mxu0
  %v1216 = vadd.f32 %v177, %v1215
  %v1217 = vpop.f32.mrf.mxu0
  %v1218 = vpop.f32.mrf.mxu0
  %v1219 = vadd.f32 %v177, %v1218
  %v1220 = vpop.f32.mrf.mxu0
  %1221 = vmatprep.mubr.bf16.mxu0 %v904
  %1222 = vmatmul.mubr.bf16.gmra.mxu0 %v612
  %v1223 = vpop.f32.mrf.mxu0
  %v1224 = vadd.f32 %v177, %v1223
  %v1225 = vpop.f32.mrf.mxu0
  %v1226 = vpop.f32.mrf.mxu0
  %v1227 = vadd.f32 %v177, %v1226
  %v1228 = vpop.f32.mrf.mxu0
  %1229 = vmatprep.mubr.bf16.mxu0 %v907
  %1230 = vmatmul.mubr.bf16.gmra.mxu0 %v614
  %v1231 = vpop.f32.mrf.mxu0
  %v1232 = vadd.f32 %v177, %v1231
  %v1233 = vpop.f32.mrf.mxu0
  %v1234 = vpop.f32.mrf.mxu0
  %v1235 = vadd.f32 %v177, %v1234
  %v1236 = vpop.f32.mrf.mxu0
  %1237 = vmatprep.mubr.bf16.mxu0 %v910
  %1238 = vmatmul.mubr.bf16.gmra.mxu0 %v616
  %v1239 = vpop.f32.mrf.mxu0
  %v1240 = vadd.f32 %v177, %v1239
  %v1241 = vpop.f32.mrf.mxu0
  %v1242 = vpop.f32.mrf.mxu0
  %v1243 = vadd.f32 %v177, %v1242
  %v1244 = vpop.f32.mrf.mxu0
  %1245 = vmatprep.mubr.bf16.mxu0 %v913
  %1246 = vmatmul.mubr.bf16.gmra.mxu0 %v618
  %v1247 = vpop.f32.mrf.mxu0
  %v1248 = vadd.f32 %v177, %v1247
  %v1249 = vpop.f32.mrf.mxu0
  %v1250 = vpop.f32.mrf.mxu0
  %v1251 = vadd.f32 %v177, %v1250
  %v1252 = vpop.f32.mrf.mxu0
  %1253 = vmatprep.mubr.bf16.mxu0 %v916
  %1254 = vmatmul.mubr.bf16.gmra.mxu0 %v620
  %v1255 = vpop.f32.mrf.mxu0
  %v1256 = vadd.f32 %v177, %v1255
  %v1257 = vpop.f32.mrf.mxu0
  %v1258 = vpop.f32.mrf.mxu0
  %v1259 = vadd.f32 %v177, %v1258
  %v1260 = vpop.f32.mrf.mxu0
  %1261 = vmatprep.mubr.bf16.mxu0 %v919
  %1262 = vmatmul.mubr.bf16.gmra.mxu0 %v622
  %v1263 = vpop.f32.mrf.mxu0
  %v1264 = vadd.f32 %v177, %v1263
  %v1265 = vpop.f32.mrf.mxu0
  %v1266 = vpop.f32.mrf.mxu0
  %v1267 = vadd.f32 %v177, %v1266
  %v1268 = vpop.f32.mrf.mxu0
  %1269 = vmatprep.mubr.bf16.mxu0 %v922
  %1270 = vmatmul.mubr.bf16.gmra.mxu0 %v624
  %v1271 = vpop.f32.mrf.mxu0
  %v1272 = vadd.f32 %v177, %v1271
  %v1273 = vpop.f32.mrf.mxu0
  %v1274 = vpop.f32.mrf.mxu0
  %v1275 = vadd.f32 %v177, %v1274
  %v1276 = vpop.f32.mrf.mxu0
  %1277 = vmatprep.mubr.bf16.mxu0 %v925
  %1278 = vmatmul.mubr.bf16.gmra.mxu0 %v626
  %v1279 = vpop.f32.mrf.mxu0
  %v1280 = vadd.f32 %v177, %v1279
  %v1281 = vpop.f32.mrf.mxu0
  %v1282 = vpop.f32.mrf.mxu0
  %v1283 = vadd.f32 %v177, %v1282
  %v1284 = vpop.f32.mrf.mxu0
  %1285 = vmatprep.mubr.bf16.mxu0 %v928
  %1286 = vmatmul.mubr.bf16.gmra.mxu0 %v628
  %v1287 = vpop.f32.mrf.mxu0
  %v1288 = vadd.f32 %v177, %v1287
  %v1289 = vpop.f32.mrf.mxu0
  %v1290 = vpop.f32.mrf.mxu0
  %v1291 = vadd.f32 %v177, %v1290
  %v1292 = vpop.f32.mrf.mxu0
  %1293 = vmatprep.mubr.bf16.mxu0 %v931
  %1294 = vmatmul.mubr.bf16.gmra.mxu0 %v630
  %v1295 = vpop.f32.mrf.mxu0
  %v1296 = vadd.f32 %v177, %v1295
  %v1297 = vpop.f32.mrf.mxu0
  %v1298 = vpop.f32.mrf.mxu0
  %v1299 = vadd.f32 %v177, %v1298
  %v1300 = vpop.f32.mrf.mxu0
  %1301 = vmatprep.mubr.bf16.mxu0 %v934
  %1302 = vmatmul.mubr.bf16.gmra.mxu0 %v632
  %v1303 = vpop.f32.mrf.mxu0
  %v1304 = vadd.f32 %v177, %v1303
  %v1305 = vpop.f32.mrf.mxu0
  %v1306 = vpop.f32.mrf.mxu0
  %v1307 = vadd.f32 %v177, %v1306
  %v1308 = vpop.f32.mrf.mxu0
  %1309 = vmatprep.mubr.bf16.mxu0 %v937
  %1310 = vmatmul.mubr.bf16.gmra.mxu0 %v634
  %v1311 = vpop.f32.mrf.mxu0
  %v1312 = vadd.f32 %v177, %v1311
  %v1313 = vpop.f32.mrf.mxu0
  %v1314 = vpop.f32.mrf.mxu0
  %v1315 = vadd.f32 %v177, %v1314
  %v1316 = vpop.f32.mrf.mxu0
  %1317 = vmatprep.mubr.bf16.mxu0 %v940
  %1318 = vmatmul.mubr.bf16.gmra.mxu0 %v636
  %v1319 = vpop.f32.mrf.mxu0
  %v1320 = vadd.f32 %v177, %v1319
  %v1321 = vpop.f32.mrf.mxu0
  %v1322 = vpop.f32.mrf.mxu0
  %v1323 = vadd.f32 %v177, %v1322
  %v1324 = vpop.f32.mrf.mxu0
  %1325 = vmatprep.mubr.bf16.mxu0 %v943
  %1326 = vmatmul.mubr.bf16.gmra.mxu0 %v638
  %v1327 = vpop.f32.mrf.mxu0
  %v1328 = vadd.f32 %v177, %v1327
  %v1329 = vpop.f32.mrf.mxu0
  %v1330 = vpop.f32.mrf.mxu0
  %v1331 = vadd.f32 %v177, %v1330
  %v1332 = vpop.f32.mrf.mxu0
  %1333 = vmatprep.mubr.bf16.mxu0 %v946
  %1334 = vmatmul.mubr.bf16.gmra.mxu0 %v640
  %v1335 = vpop.f32.mrf.mxu0
  %v1336 = vadd.f32 %v177, %v1335
  %v1337 = vpop.f32.mrf.mxu0
  %v1338 = vpop.f32.mrf.mxu0
  %v1339 = vadd.f32 %v177, %v1338
  %v1340 = vpop.f32.mrf.mxu0
  %1341 = vmatprep.mubr.bf16.mxu0 %v949
  %1342 = vmatmul.mubr.bf16.gmra.mxu0 %v642
  %v1343 = vpop.f32.mrf.mxu0
  %v1344 = vadd.f32 %v177, %v1343
  %v1345 = vpop.f32.mrf.mxu0
  %v1346 = vpop.f32.mrf.mxu0
  %v1347 = vadd.f32 %v177, %v1346
  %v1348 = vpop.f32.mrf.mxu0
  %1349 = vmatprep.mubr.bf16.mxu0 %v952
  %1350 = vmatmul.mubr.bf16.gmra.mxu0 %v644
  %v1351 = vpop.f32.mrf.mxu0
  %v1352 = vadd.f32 %v177, %v1351
  %v1353 = vpop.f32.mrf.mxu0
  %v1354 = vpop.f32.mrf.mxu0
  %v1355 = vadd.f32 %v177, %v1354
  %v1356 = vpop.f32.mrf.mxu0
  %1357 = vmatprep.mubr.bf16.mxu0 %v955
  %1358 = vmatmul.mubr.bf16.gmra.mxu0 %v646
  %v1359 = vpop.f32.mrf.mxu0
  %v1360 = vadd.f32 %v177, %v1359
  %v1361 = vpop.f32.mrf.mxu0
  %v1362 = vpop.f32.mrf.mxu0
  %v1363 = vadd.f32 %v177, %v1362
  %v1364 = vpop.f32.mrf.mxu0
  %1365 = vmatprep.mubr.bf16.mxu0 %v958
  %1366 = vmatmul.mubr.bf16.gmra.mxu0 %v648
  %v1367 = vpop.f32.mrf.mxu0
  %v1368 = vadd.f32 %v177, %v1367
  %v1369 = vpop.f32.mrf.mxu0
  %v1370 = vpop.f32.mrf.mxu0
  %v1371 = vadd.f32 %v177, %v1370
  %v1372 = vpop.f32.mrf.mxu0
  %1373 = vmatprep.mubr.bf16.mxu0 %v961
  %1374 = vmatmul.mubr.bf16.gmra.mxu0 %v650
  %v1375 = vpop.f32.mrf.mxu0
  %v1376 = vadd.f32 %v177, %v1375
  %v1377 = vpop.f32.mrf.mxu0
  %v1378 = vpop.f32.mrf.mxu0
  %v1379 = vadd.f32 %v177, %v1378
  %v1380 = vpop.f32.mrf.mxu0
  %1381 = vmatprep.mubr.bf16.mxu0 %v964
  %1382 = vmatmul.mubr.bf16.gmra.mxu0 %v652
  %v1383 = vpop.f32.mrf.mxu0
  %v1384 = vadd.f32 %v177, %v1383
  %v1385 = vpop.f32.mrf.mxu0
  %v1386 = vpop.f32.mrf.mxu0
  %v1387 = vadd.f32 %v177, %v1386
  %v1388 = vpop.f32.mrf.mxu0
  %1389 = vmatprep.mubr.bf16.mxu0 %v967
  %1390 = vmatmul.mubr.bf16.gmra.mxu0 %v654
  %v1391 = vpop.f32.mrf.mxu0
  %v1392 = vadd.f32 %v177, %v1391
  %v1393 = vpop.f32.mrf.mxu0
  %v1394 = vpop.f32.mrf.mxu0
  %v1395 = vadd.f32 %v177, %v1394
  %v1396 = vpop.f32.mrf.mxu0
  %1397 = vmatprep.mubr.bf16.mxu0 %v970
  %1398 = vmatmul.mubr.bf16.gmra.mxu0 %v656
  %v1399 = vpop.f32.mrf.mxu0
  %v1400 = vadd.f32 %v177, %v1399
  %v1401 = vpop.f32.mrf.mxu0
  %v1402 = vpop.f32.mrf.mxu0
  %v1403 = vadd.f32 %v177, %v1402
  %v1404 = vpop.f32.mrf.mxu0
  %1405 = vmatprep.mubr.bf16.mxu0 %v973
  %1406 = vmatmul.mubr.bf16.gmra.mxu0 %v658
  %v1407 = vpop.f32.mrf.mxu0
  %v1408 = vadd.f32 %v177, %v1407
  %v1409 = vpop.f32.mrf.mxu0
  %v1410 = vpop.f32.mrf.mxu0
  %v1411 = vadd.f32 %v177, %v1410
  %v1412 = vpop.f32.mrf.mxu0
  %1413 = vmatprep.mubr.bf16.mxu0 %v976
  %1414 = vmatmul.mubr.bf16.gmra.mxu0 %v660
  %v1415 = vpop.f32.mrf.mxu0
  %v1416 = vadd.f32 %v177, %v1415
  %v1417 = vpop.f32.mrf.mxu0
  %v1418 = vpop.f32.mrf.mxu0
  %v1419 = vadd.f32 %v177, %v1418
  %v1420 = vpop.f32.mrf.mxu0
  %1421 = vmatprep.mubr.bf16.mxu0 %v979
  %1422 = vmatmul.mubr.bf16.gmra.mxu0 %v662
  %v1423 = vpop.f32.mrf.mxu0
  %v1424 = vadd.f32 %v177, %v1423
  %v1425 = vpop.f32.mrf.mxu0
  %v1426 = vpop.f32.mrf.mxu0
  %v1427 = vadd.f32 %v177, %v1426
  %v1428 = vpop.f32.mrf.mxu0
  %1429 = vmatprep.mubr.bf16.mxu0 %v982
  %1430 = vmatmul.mubr.bf16.gmra.mxu0 %v664
  %v1431 = vpop.f32.mrf.mxu0
  %v1432 = vadd.f32 %v177, %v1431
  %v1433 = vpop.f32.mrf.mxu0
  %v1434 = vpop.f32.mrf.mxu0
  %v1435 = vadd.f32 %v177, %v1434
  %v1436 = vpop.f32.mrf.mxu0
  %1437 = vmatprep.mubr.bf16.mxu0 %v985
  %1438 = vmatmul.mubr.bf16.gmra.mxu0 %v666
  %v1439 = vpop.f32.mrf.mxu0
  %v1440 = vadd.f32 %v177, %v1439
  %v1441 = vpop.f32.mrf.mxu0
  %v1442 = vpop.f32.mrf.mxu0
  %v1443 = vadd.f32 %v177, %v1442
  %v1444 = vpop.f32.mrf.mxu0
  %1445 = vmatprep.mubr.bf16.mxu0 %v988
  %1446 = vmatmul.mubr.bf16.gmra.mxu0 %v668
  %v1447 = vpop.f32.mrf.mxu0
  %v1448 = vadd.f32 %v177, %v1447
  %v1449 = vpop.f32.mrf.mxu0
  %v1450 = vpop.f32.mrf.mxu0
  %v1451 = vadd.f32 %v177, %v1450
  %v1452 = vpop.f32.mrf.mxu0
  %1453 = vmatprep.mubr.bf16.mxu0 %v991
  %1454 = vmatmul.mubr.bf16.gmra.mxu0 %v670
  %v1455 = vpop.f32.mrf.mxu0
  %v1456 = vadd.f32 %v177, %v1455
  %v1457 = vpop.f32.mrf.mxu0
  %v1458 = vpop.f32.mrf.mxu0
  %v1459 = vadd.f32 %v177, %v1458
  %v1460 = vpop.f32.mrf.mxu0
  %1461 = vmatprep.mubr.bf16.mxu0 %v994
  %1462 = vmatmul.mubr.bf16.gmra.mxu0 %v672
  %v1463 = vpop.f32.mrf.mxu0
  %v1464 = vadd.f32 %v177, %v1463
  %v1465 = vpop.f32.mrf.mxu0
  %v1466 = vpop.f32.mrf.mxu0
  %v1467 = vadd.f32 %v177, %v1466
  %v1468 = vpop.f32.mrf.mxu0
  %1469 = vmatprep.mubr.bf16.mxu0 %v997
  %1470 = vmatmul.mubr.bf16.gmra.mxu0 %v674
  %v1471 = vpop.f32.mrf.mxu0
  %v1472 = vadd.f32 %v177, %v1471
  %v1473 = vpop.f32.mrf.mxu0
  %v1474 = vpop.f32.mrf.mxu0
  %v1475 = vadd.f32 %v177, %v1474
  %v1476 = vpop.f32.mrf.mxu0
  %1477 = vmatprep.mubr.bf16.mxu0 %v1000
  %1478 = vmatmul.mubr.bf16.gmra.mxu0 %v676
  %v1479 = vpop.f32.mrf.mxu0
  %v1480 = vadd.f32 %v177, %v1479
  %v1481 = vpop.f32.mrf.mxu0
  %v1482 = vpop.f32.mrf.mxu0
  %v1483 = vadd.f32 %v177, %v1482
  %v1484 = vpop.f32.mrf.mxu0
  %1485 = vmatprep.mubr.bf16.mxu0 %v1003
  %1486 = vmatmul.mubr.bf16.gmra.mxu0 %v678
  %v1487 = vpop.f32.mrf.mxu0
  %v1488 = vadd.f32 %v177, %v1487
  %v1489 = vpop.f32.mrf.mxu0
  %v1490 = vpop.f32.mrf.mxu0
  %v1491 = vadd.f32 %v177, %v1490
  %v1492 = vpop.f32.mrf.mxu0
  %1493 = vmatprep.mubr.bf16.mxu0 %v1006
  %1494 = vmatmul.mubr.bf16.gmra.mxu0 %v680
  %v1495 = vpop.f32.mrf.mxu0
  %v1496 = vadd.f32 %v177, %v1495
  %v1497 = vpop.f32.mrf.mxu0
  %v1498 = vpop.f32.mrf.mxu0
  %v1499 = vadd.f32 %v177, %v1498
  %v1500 = vpop.f32.mrf.mxu0
  %1501 = vmatprep.mubr.bf16.mxu0 %v1009
  %1502 = vmatmul.mubr.bf16.gmra.mxu0 %v682
  %v1503 = vpop.f32.mrf.mxu0
  %v1504 = vadd.f32 %v177, %v1503
  %v1505 = vpop.f32.mrf.mxu0
  %v1506 = vpop.f32.mrf.mxu0
  %v1507 = vadd.f32 %v177, %v1506
  %v1508 = vpop.f32.mrf.mxu0
  %1509 = vmatprep.mubr.bf16.mxu0 %v1012
  %1510 = vmatmul.mubr.bf16.gmra.mxu0 %v684
  %v1511 = vpop.f32.mrf.mxu0
  %v1512 = vadd.f32 %v177, %v1511
  %v1513 = vpop.f32.mrf.mxu0
  %v1514 = vpop.f32.mrf.mxu0
  %v1515 = vadd.f32 %v177, %v1514
  %v1516 = vpop.f32.mrf.mxu0
  %1517 = vmatprep.mubr.bf16.mxu0 %v1015
  %1518 = vmatmul.mubr.bf16.gmra.mxu0 %v686
  %v1519 = vpop.f32.mrf.mxu0
  %v1520 = vadd.f32 %v177, %v1519
  %v1521 = vpop.f32.mrf.mxu0
  %v1522 = vpop.f32.mrf.mxu0
  %v1523 = vadd.f32 %v177, %v1522
  %v1524 = vpop.f32.mrf.mxu0
  %1525 = vmatprep.mubr.bf16.mxu0 %v1018
  %1526 = vmatmul.mubr.bf16.gmra.mxu0 %v688
  %v1527 = vpop.f32.mrf.mxu0
  %v1528 = vadd.f32 %v177, %v1527
  %v1529 = vpop.f32.mrf.mxu0
  %v1530 = vpop.f32.mrf.mxu0
  %v1531 = vadd.f32 %v177, %v1530
  %v1532 = vpop.f32.mrf.mxu0
  %1533 = vmatprep.mubr.bf16.mxu0 %v1021
  %1534 = vmatmul.mubr.bf16.gmra.mxu0 %v690
  %v1535 = vpop.f32.mrf.mxu0
  %v1536 = vadd.f32 %v177, %v1535
  %v1537 = vpop.f32.mrf.mxu0
  %v1538 = vpop.f32.mrf.mxu0
  %v1539 = vadd.f32 %v177, %v1538
  %v1540 = vpop.f32.mrf.mxu0
  %1541 = vmatprep.mubr.bf16.mxu0 %v1024
  %1542 = vmatmul.mubr.bf16.gmra.mxu0 %v692
  %v1543 = vpop.f32.mrf.mxu0
  %v1544 = vadd.f32 %v177, %v1543
  %v1545 = vpop.f32.mrf.mxu0
  %v1546 = vpop.f32.mrf.mxu0
  %v1547 = vadd.f32 %v177, %v1546
  %v1548 = vpop.f32.mrf.mxu0
  %1549 = vmatprep.mubr.bf16.mxu0 %v1027
  %1550 = vmatmul.mubr.bf16.gmra.mxu0 %v694
  %v1551 = vpop.f32.mrf.mxu0
  %v1552 = vadd.f32 %v177, %v1551
  %v1553 = vpop.f32.mrf.mxu0
  %v1554 = vpop.f32.mrf.mxu0
  %v1555 = vadd.f32 %v177, %v1554
  %v1556 = vpop.f32.mrf.mxu0
  %1557 = vmatprep.mubr.bf16.mxu0 %v1030
  %1558 = vmatmul.mubr.bf16.gmra.mxu0 %v696
  %v1559 = vpop.f32.mrf.mxu0
  %v1560 = vadd.f32 %v177, %v1559
  %v1561 = vpop.f32.mrf.mxu0
  %v1562 = vpop.f32.mrf.mxu0
  %v1563 = vadd.f32 %v177, %v1562
  %v1564 = vpop.f32.mrf.mxu0
  %1565 = vmatprep.mubr.bf16.mxu0 %v1033
  %1566 = vmatmul.mubr.bf16.gmra.mxu0 %v698
  %v1567 = vpop.f32.mrf.mxu0
  %v1568 = vadd.f32 %v177, %v1567
  %v1569 = vpop.f32.mrf.mxu0
  %v1570 = vpop.f32.mrf.mxu0
  %v1571 = vadd.f32 %v177, %v1570
  %v1572 = vpop.f32.mrf.mxu0
  %1573 = vmatprep.mubr.bf16.mxu0 %v1036
  %1574 = vmatmul.mubr.bf16.gmra.mxu0 %v700
  %v1575 = vpop.f32.mrf.mxu0
  %v1576 = vadd.f32 %v177, %v1575
  %v1577 = vpop.f32.mrf.mxu0
  %v1578 = vpop.f32.mrf.mxu0
  %v1579 = vadd.f32 %v177, %v1578
  %v1580 = vpop.f32.mrf.mxu0
  %1581 = vmatprep.mubr.bf16.mxu0 %v1039
  %1582 = vmatmul.mubr.bf16.gmra.mxu0 %v702
  %v1583 = vpop.f32.mrf.mxu0
  %v1584 = vadd.f32 %v177, %v1583
  %v1585 = vpop.f32.mrf.mxu0
  %v1586 = vpop.f32.mrf.mxu0
  %v1587 = vadd.f32 %v177, %v1586
  %v1588 = vpop.f32.mrf.mxu0
  %1589 = vmatprep.mubr.bf16.mxu0 %v1042
  %1590 = vmatmul.mubr.bf16.gmra.mxu0 %v704
  %v1591 = vpop.f32.mrf.mxu0
  %v1592 = vadd.f32 %v177, %v1591
  %v1593 = vpop.f32.mrf.mxu0
  %v1594 = vpop.f32.mrf.mxu0
  %v1595 = vadd.f32 %v177, %v1594
  %v1596 = vpop.f32.mrf.mxu0
  %1597 = vmatprep.mubr.bf16.mxu0 %v1045
  %1598 = vmatmul.mubr.bf16.gmra.mxu0 %v706
  %v1599 = vpop.f32.mrf.mxu0
  %v1600 = vadd.f32 %v177, %v1599
  %v1601 = vpop.f32.mrf.mxu0
  %v1602 = vpop.f32.mrf.mxu0
  %v1603 = vadd.f32 %v177, %v1602
  %v1604 = vpop.f32.mrf.mxu0
  %1605 = vmatprep.mubr.bf16.mxu0 %v1048
  %1606 = vmatmul.mubr.bf16.gmra.mxu0 %v708
  %v1607 = vpop.f32.mrf.mxu0
  %v1608 = vadd.f32 %v177, %v1607
  %v1609 = vpop.f32.mrf.mxu0
  %v1610 = vpop.f32.mrf.mxu0
  %v1611 = vadd.f32 %v177, %v1610
  %v1612 = vpop.f32.mrf.mxu0
  %1613 = vmatprep.mubr.bf16.mxu0 %v1051
  %1614 = vmatmul.mubr.bf16.gmra.mxu0 %v710
  %v1615 = vpop.f32.mrf.mxu0
  %v1616 = vadd.f32 %v177, %v1615
  %v1617 = vpop.f32.mrf.mxu0
  %v1618 = vpop.f32.mrf.mxu0
  %v1619 = vpop.f32.mrf.mxu0
  %1620 = vdwg.mxu0
  %v1621 = vmax.f32 %v1088, 0.0
  %v1622 = vmax.f32 %v1091, 0.0
  %v1623 = vmax.f32 %v1096, 0.0
  %v1624 = vmax.f32 %v1099, 0.0
  %v1625 = vmax.f32 %v1104, 0.0
  %v1626 = vmax.f32 %v1107, 0.0
  %v1627 = vmax.f32 %v1112, 0.0
  %v1628 = vmax.f32 %v1115, 0.0
  %v1629 = vmax.f32 %v1120, 0.0
  %v1630 = vmax.f32 %v1123, 0.0
  %v1631 = vmax.f32 %v1128, 0.0
  %v1632 = vmax.f32 %v1131, 0.0
  %v1633 = vmax.f32 %v1136, 0.0
  %v1634 = vmax.f32 %v1139, 0.0
  %v1635 = vmax.f32 %v1144, 0.0
  %v1636 = vmax.f32 %v1147, 0.0
  %v1637 = vmax.f32 %v1152, 0.0
  %v1638 = vmax.f32 %v1155, 0.0
  %v1639 = vmax.f32 %v1160, 0.0
  %v1640 = vmax.f32 %v1163, 0.0
  %v1641 = vmax.f32 %v1168, 0.0
  %v1642 = vmax.f32 %v1171, 0.0
  %v1643 = vmax.f32 %v1176, 0.0
  %v1644 = vmax.f32 %v1179, 0.0
  %v1645 = vmax.f32 %v1184, 0.0
  %v1646 = vmax.f32 %v1187, 0.0
  %v1647 = vmax.f32 %v1192, 0.0
  %v1648 = vmax.f32 %v1195, 0.0
  %v1649 = vmax.f32 %v1200, 0.0
  %v1650 = vmax.f32 %v1203, 0.0
  %v1651 = vmax.f32 %v1208, 0.0
  %v1652 = vmax.f32 %v1211, 0.0
  %v1653 = vmax.f32 %v1216, 0.0
  %v1654 = vmax.f32 %v1219, 0.0
  %v1655 = vmax.f32 %v1224, 0.0
  %v1656 = vmax.f32 %v1227, 0.0
  %v1657 = vmax.f32 %v1232, 0.0
  %v1658 = vmax.f32 %v1235, 0.0
  %v1659 = vmax.f32 %v1240, 0.0
  %v1660 = vmax.f32 %v1243, 0.0
  %v1661 = vmax.f32 %v1248, 0.0
  %v1662 = vmax.f32 %v1251, 0.0
  %v1663 = vmax.f32 %v1256, 0.0
  %v1664 = vmax.f32 %v1259, 0.0
  %v1665 = vmax.f32 %v1264, 0.0
  %v1666 = vmax.f32 %v1267, 0.0
  %v1667 = vmax.f32 %v1272, 0.0
  %v1668 = vmax.f32 %v1275, 0.0
  %v1669 = vmax.f32 %v1280, 0.0
  %v1670 = vmax.f32 %v1283, 0.0
  %v1671 = vmax.f32 %v1288, 0.0
  %v1672 = vmax.f32 %v1291, 0.0
  %v1673 = vmax.f32 %v1296, 0.0
  %v1674 = vmax.f32 %v1299, 0.0
  %v1675 = vmax.f32 %v1304, 0.0
  %v1676 = vmax.f32 %v1307, 0.0
  %v1677 = vmax.f32 %v1312, 0.0
  %v1678 = vmax.f32 %v1315, 0.0
  %v1679 = vmax.f32 %v1320, 0.0
  %v1680 = vmax.f32 %v1323, 0.0
  %v1681 = vmax.f32 %v1328, 0.0
  %v1682 = vmax.f32 %v1331, 0.0
  %v1683 = vmax.f32 %v1336, 0.0
  %v1684 = vmax.f32 %v1339, 0.0
  %v1685 = vmax.f32 %v1344, 0.0
  %v1686 = vmax.f32 %v1347, 0.0
  %v1687 = vmax.f32 %v1352, 0.0
  %v1688 = vmax.f32 %v1355, 0.0
  %v1689 = vmax.f32 %v1360, 0.0
  %v1690 = vmax.f32 %v1363, 0.0
  %v1691 = vmax.f32 %v1368, 0.0
  %v1692 = vmax.f32 %v1371, 0.0
  %v1693 = vmax.f32 %v1376, 0.0
  %v1694 = vmax.f32 %v1379, 0.0
  %v1695 = vmax.f32 %v1384, 0.0
  %v1696 = vmax.f32 %v1387, 0.0
  %v1697 = vmax.f32 %v1392, 0.0
  %v1698 = vmax.f32 %v1395, 0.0
  %v1699 = vmax.f32 %v1400, 0.0
  %v1700 = vmax.f32 %v1403, 0.0
  %v1701 = vmax.f32 %v1408, 0.0
  %v1702 = vmax.f32 %v1411, 0.0
  %v1703 = vmax.f32 %v1416, 0.0
  %v1704 = vmax.f32 %v1419, 0.0
  %v1705 = vmax.f32 %v1424, 0.0
  %v1706 = vmax.f32 %v1427, 0.0
  %v1707 = vmax.f32 %v1432, 0.0
  %v1708 = vmax.f32 %v1435, 0.0
  %v1709 = vmax.f32 %v1440, 0.0
  %v1710 = vmax.f32 %v1443, 0.0
  %v1711 = vmax.f32 %v1448, 0.0
  %v1712 = vmax.f32 %v1451, 0.0
  %v1713 = vmax.f32 %v1456, 0.0
  %v1714 = vmax.f32 %v1459, 0.0
  %v1715 = vmax.f32 %v1464, 0.0
  %v1716 = vmax.f32 %v1467, 0.0
  %v1717 = vmax.f32 %v1472, 0.0
  %v1718 = vmax.f32 %v1475, 0.0
  %v1719 = vmax.f32 %v1480, 0.0
  %v1720 = vmax.f32 %v1483, 0.0
  %v1721 = vmax.f32 %v1488, 0.0
  %v1722 = vmax.f32 %v1491, 0.0
  %v1723 = vmax.f32 %v1496, 0.0
  %v1724 = vmax.f32 %v1499, 0.0
  %v1725 = vmax.f32 %v1504, 0.0
  %v1726 = vmax.f32 %v1507, 0.0
  %v1727 = vmax.f32 %v1512, 0.0
  %v1728 = vmax.f32 %v1515, 0.0
  %v1729 = vmax.f32 %v1520, 0.0
  %v1730 = vmax.f32 %v1523, 0.0
  %v1731 = vmax.f32 %v1528, 0.0
  %v1732 = vmax.f32 %v1531, 0.0
  %v1733 = vmax.f32 %v1536, 0.0
  %v1734 = vmax.f32 %v1539, 0.0
  %v1735 = vmax.f32 %v1544, 0.0
  %v1736 = vmax.f32 %v1547, 0.0
  %v1737 = vmax.f32 %v1552, 0.0
  %v1738 = vmax.f32 %v1555, 0.0
  %v1739 = vmax.f32 %v1560, 0.0
  %v1740 = vmax.f32 %v1563, 0.0
  %v1741 = vmax.f32 %v1568, 0.0
  %v1742 = vmax.f32 %v1571, 0.0
  %v1743 = vmax.f32 %v1576, 0.0
  %v1744 = vmax.f32 %v1579, 0.0
  %v1745 = vmax.f32 %v1584, 0.0
  %v1746 = vmax.f32 %v1587, 0.0
  %v1747 = vmax.f32 %v1592, 0.0
  %v1748 = vmax.f32 %v1595, 0.0
  %v1749 = vmax.f32 %v1600, 0.0
  %v1750 = vmax.f32 %v1603, 0.0
  %v1751 = vmax.f32 %v1608, 0.0
  %v1752 = vmax.f32 %v1611, 0.0
  %v1753 = vmax.f32 %v1616, 0.0
  %v1754 = vpack.c.bf16 %v1622, %v1621
  %v1755 = vpack.c.bf16 %v1624, %v1623
  %v1756 = vpack.c.bf16 %v1626, %v1625
  %v1757 = vpack.c.bf16 %v1628, %v1627
  %v1758 = vpack.c.bf16 %v1630, %v1629
  %v1759 = vpack.c.bf16 %v1632, %v1631
  %v1760 = vpack.c.bf16 %v1634, %v1633
  %v1761 = vpack.c.bf16 %v1636, %v1635
  %v1762 = vpack.c.bf16 %v1638, %v1637
  %v1763 = vpack.c.bf16 %v1640, %v1639
  %v1764 = vpack.c.bf16 %v1642, %v1641
  %v1765 = vpack.c.bf16 %v1644, %v1643
  %v1766 = vpack.c.bf16 %v1646, %v1645
  %v1767 = vpack.c.bf16 %v1648, %v1647
  %v1768 = vpack.c.bf16 %v1650, %v1649
  %v1769 = vpack.c.bf16 %v1652, %v1651
  %v1770 = vpack.c.bf16 %v1654, %v1653
  %v1771 = vpack.c.bf16 %v1656, %v1655
  %v1772 = vpack.c.bf16 %v1658, %v1657
  %v1773 = vpack.c.bf16 %v1660, %v1659
  %v1774 = vpack.c.bf16 %v1662, %v1661
  %v1775 = vpack.c.bf16 %v1664, %v1663
  %v1776 = vpack.c.bf16 %v1666, %v1665
  %v1777 = vpack.c.bf16 %v1668, %v1667
  %v1778 = vpack.c.bf16 %v1670, %v1669
  %v1779 = vpack.c.bf16 %v1672, %v1671
  %v1780 = vpack.c.bf16 %v1674, %v1673
  %v1781 = vpack.c.bf16 %v1676, %v1675
  %v1782 = vpack.c.bf16 %v1678, %v1677
  %v1783 = vpack.c.bf16 %v1680, %v1679
  %v1784 = vpack.c.bf16 %v1682, %v1681
  %v1785 = vpack.c.bf16 %v1684, %v1683
  %v1786 = vpack.c.bf16 %v1686, %v1685
  %v1787 = vpack.c.bf16 %v1688, %v1687
  %v1788 = vpack.c.bf16 %v1690, %v1689
  %v1789 = vpack.c.bf16 %v1692, %v1691
  %v1790 = vpack.c.bf16 %v1694, %v1693
  %v1791 = vpack.c.bf16 %v1696, %v1695
  %v1792 = vpack.c.bf16 %v1698, %v1697
  %v1793 = vpack.c.bf16 %v1700, %v1699
  %v1794 = vpack.c.bf16 %v1702, %v1701
  %v1795 = vpack.c.bf16 %v1704, %v1703
  %v1796 = vpack.c.bf16 %v1706, %v1705
  %v1797 = vpack.c.bf16 %v1708, %v1707
  %v1798 = vpack.c.bf16 %v1710, %v1709
  %v1799 = vpack.c.bf16 %v1712, %v1711
  %v1800 = vpack.c.bf16 %v1714, %v1713
  %v1801 = vpack.c.bf16 %v1716, %v1715
  %v1802 = vpack.c.bf16 %v1718, %v1717
  %v1803 = vpack.c.bf16 %v1720, %v1719
  %v1804 = vpack.c.bf16 %v1722, %v1721
  %v1805 = vpack.c.bf16 %v1724, %v1723
  %v1806 = vpack.c.bf16 %v1726, %v1725
  %v1807 = vpack.c.bf16 %v1728, %v1727
  %v1808 = vpack.c.bf16 %v1730, %v1729
  %v1809 = vpack.c.bf16 %v1732, %v1731
  %v1810 = vpack.c.bf16 %v1734, %v1733
  %v1811 = vpack.c.bf16 %v1736, %v1735
  %v1812 = vpack.c.bf16 %v1738, %v1737
  %v1813 = vpack.c.bf16 %v1740, %v1739
  %v1814 = vpack.c.bf16 %v1742, %v1741
  %v1815 = vpack.c.bf16 %v1744, %v1743
  %v1816 = vpack.c.bf16 %v1746, %v1745
  %v1817 = vpack.c.bf16 %v1748, %v1747
  %v1818 = vpack.c.bf16 %v1750, %v1749
  %v1819 = vpack.c.bf16 %v1752, %v1751
  %v1820 = vpack.c.bf16 %v1753, %v1753
  %v1888 = vunpack.c.l.b16 %v1754
  %v1889 = vunpack.c.h.b16 %v1754
  %v1890 = vunpack.c.l.b16 %v1755
  %v1891 = vunpack.c.h.b16 %v1755
  %v1892 = vunpack.c.l.b16 %v1756
  %v1893 = vunpack.c.h.b16 %v1756
  %v1894 = vunpack.c.l.b16 %v1757
  %v1895 = vunpack.c.h.b16 %v1757
  %v1896 = vunpack.c.l.b16 %v1758
  %v1897 = vunpack.c.h.b16 %v1758
  %v1898 = vunpack.c.l.b16 %v1759
  %v1899 = vunpack.c.h.b16 %v1759
  %v1900 = vunpack.c.l.b16 %v1760
  %v1901 = vunpack.c.h.b16 %v1760
  %v1902 = vunpack.c.l.b16 %v1761
  %v1903 = vunpack.c.h.b16 %v1761
  %v1904 = vunpack.c.l.b16 %v1762
  %v1905 = vunpack.c.h.b16 %v1762
  %v1906 = vunpack.c.l.b16 %v1763
  %v1907 = vunpack.c.h.b16 %v1763
  %v1908 = vunpack.c.l.b16 %v1764
  %v1909 = vunpack.c.h.b16 %v1764
  %v1910 = vunpack.c.l.b16 %v1765
  %v1911 = vunpack.c.h.b16 %v1765
  %v1912 = vunpack.c.l.b16 %v1766
  %v1913 = vunpack.c.h.b16 %v1766
  %v1914 = vunpack.c.l.b16 %v1767
  %v1915 = vunpack.c.h.b16 %v1767
  %v1916 = vunpack.c.l.b16 %v1768
  %v1917 = vunpack.c.h.b16 %v1768
  %v1918 = vunpack.c.l.b16 %v1769
  %v1919 = vunpack.c.h.b16 %v1769
  %v1920 = vunpack.c.l.b16 %v1770
  %v1921 = vunpack.c.h.b16 %v1770
  %v1922 = vunpack.c.l.b16 %v1771
  %v1923 = vunpack.c.h.b16 %v1771
  %v1924 = vunpack.c.l.b16 %v1772
  %v1925 = vunpack.c.h.b16 %v1772
  %v1926 = vunpack.c.l.b16 %v1773
  %v1927 = vunpack.c.h.b16 %v1773
  %v1928 = vunpack.c.l.b16 %v1774
  %v1929 = vunpack.c.h.b16 %v1774
  %v1930 = vunpack.c.l.b16 %v1775
  %v1931 = vunpack.c.h.b16 %v1775
  %v1932 = vunpack.c.l.b16 %v1776
  %v1933 = vunpack.c.h.b16 %v1776
  %v1934 = vunpack.c.l.b16 %v1777
  %v1935 = vunpack.c.h.b16 %v1777
  %v1936 = vunpack.c.l.b16 %v1778
  %v1937 = vunpack.c.h.b16 %v1778
  %v1938 = vunpack.c.l.b16 %v1779
  %v1939 = vunpack.c.h.b16 %v1779
  %v1940 = vunpack.c.l.b16 %v1780
  %v1941 = vunpack.c.h.b16 %v1780
  %v1942 = vunpack.c.l.b16 %v1781
  %v1943 = vunpack.c.h.b16 %v1781
  %v1944 = vunpack.c.l.b16 %v1782
  %v1945 = vunpack.c.h.b16 %v1782
  %v1946 = vunpack.c.l.b16 %v1783
  %v1947 = vunpack.c.h.b16 %v1783
  %v1948 = vunpack.c.l.b16 %v1784
  %v1949 = vunpack.c.h.b16 %v1784
  %v1950 = vunpack.c.l.b16 %v1785
  %v1951 = vunpack.c.h.b16 %v1785
  %v1952 = vunpack.c.l.b16 %v1786
  %v1953 = vunpack.c.h.b16 %v1786
  %v1954 = vunpack.c.l.b16 %v1787
  %v1955 = vunpack.c.h.b16 %v1787
  %v1956 = vunpack.c.l.b16 %v1788
  %v1957 = vunpack.c.h.b16 %v1788
  %v1958 = vunpack.c.l.b16 %v1789
  %v1959 = vunpack.c.h.b16 %v1789
  %v1960 = vunpack.c.l.b16 %v1790
  %v1961 = vunpack.c.h.b16 %v1790
  %v1962 = vunpack.c.l.b16 %v1791
  %v1963 = vunpack.c.h.b16 %v1791
  %v1964 = vunpack.c.l.b16 %v1792
  %v1965 = vunpack.c.h.b16 %v1792
  %v1966 = vunpack.c.l.b16 %v1793
  %v1967 = vunpack.c.h.b16 %v1793
  %v1968 = vunpack.c.l.b16 %v1794
  %v1969 = vunpack.c.h.b16 %v1794
  %v1970 = vunpack.c.l.b16 %v1795
  %v1971 = vunpack.c.h.b16 %v1795
  %v1972 = vunpack.c.l.b16 %v1796
  %v1973 = vunpack.c.h.b16 %v1796
  %v1974 = vunpack.c.l.b16 %v1797
  %v1975 = vunpack.c.h.b16 %v1797
  %v1976 = vunpack.c.l.b16 %v1798
  %v1977 = vunpack.c.h.b16 %v1798
  %v1978 = vunpack.c.l.b16 %v1799
  %v1979 = vunpack.c.h.b16 %v1799
  %v1980 = vunpack.c.l.b16 %v1800
  %v1981 = vunpack.c.h.b16 %v1800
  %v1982 = vunpack.c.l.b16 %v1801
  %v1983 = vunpack.c.h.b16 %v1801
  %v1984 = vunpack.c.l.b16 %v1802
  %v1985 = vunpack.c.h.b16 %v1802
  %v1986 = vunpack.c.l.b16 %v1803
  %v1987 = vunpack.c.h.b16 %v1803
  %v1988 = vunpack.c.l.b16 %v1804
  %v1989 = vunpack.c.h.b16 %v1804
  %v1990 = vunpack.c.l.b16 %v1805
  %v1991 = vunpack.c.h.b16 %v1805
  %v1992 = vunpack.c.l.b16 %v1806
  %v1993 = vunpack.c.h.b16 %v1806
  %v1994 = vunpack.c.l.b16 %v1807
  %v1995 = vunpack.c.h.b16 %v1807
  %v1996 = vunpack.c.l.b16 %v1808
  %v1997 = vunpack.c.h.b16 %v1808
  %v1998 = vunpack.c.l.b16 %v1809
  %v1999 = vunpack.c.h.b16 %v1809
  %v2000 = vunpack.c.l.b16 %v1810
  %v2001 = vunpack.c.h.b16 %v1810
  %v2002 = vunpack.c.l.b16 %v1811
  %v2003 = vunpack.c.h.b16 %v1811
  %v2004 = vunpack.c.l.b16 %v1812
  %v2005 = vunpack.c.h.b16 %v1812
  %v2006 = vunpack.c.l.b16 %v1813
  %v2007 = vunpack.c.h.b16 %v1813
  %v2008 = vunpack.c.l.b16 %v1814
  %v2009 = vunpack.c.h.b16 %v1814
  %v2010 = vunpack.c.l.b16 %v1815
  %v2011 = vunpack.c.h.b16 %v1815
  %v2012 = vunpack.c.l.b16 %v1816
  %v2013 = vunpack.c.h.b16 %v1816
  %v2014 = vunpack.c.l.b16 %v1817
  %v2015 = vunpack.c.h.b16 %v1817
  %v2016 = vunpack.c.l.b16 %v1818
  %v2017 = vunpack.c.h.b16 %v1818
  %v2018 = vunpack.c.l.b16 %v1819
  %v2019 = vunpack.c.h.b16 %v1819
  %v2020 = vunpack.c.l.b16 %v1820
  %v2021 = vpack.c.b16 %v1888, %v1888
  %v2022 = vpack.c.b16 %v1889, %v1889
  %v2023 = vpack.c.b16 %v1890, %v1890
  %v2024 = vpack.c.b16 %v1891, %v1891
  %v2025 = vpack.c.b16 %v1892, %v1892
  %v2026 = vpack.c.b16 %v1893, %v1893
  %v2027 = vpack.c.b16 %v1894, %v1894
  %v2028 = vpack.c.b16 %v1895, %v1895
  %v2029 = vpack.c.b16 %v1896, %v1896
  %v2030 = vpack.c.b16 %v1897, %v1897
  %v2031 = vpack.c.b16 %v1898, %v1898
  %v2032 = vpack.c.b16 %v1899, %v1899
  %v2033 = vpack.c.b16 %v1900, %v1900
  %v2034 = vpack.c.b16 %v1901, %v1901
  %v2035 = vpack.c.b16 %v1902, %v1902
  %v2036 = vpack.c.b16 %v1903, %v1903
  %v2037 = vpack.c.b16 %v1904, %v1904
  %v2038 = vpack.c.b16 %v1905, %v1905
  %v2039 = vpack.c.b16 %v1906, %v1906
  %v2040 = vpack.c.b16 %v1907, %v1907
  %v2041 = vpack.c.b16 %v1908, %v1908
  %v2042 = vpack.c.b16 %v1909, %v1909
  %v2043 = vpack.c.b16 %v1910, %v1910
  %v2044 = vpack.c.b16 %v1911, %v1911
  %v2045 = vpack.c.b16 %v1912, %v1912
  %v2046 = vpack.c.b16 %v1913, %v1913
  %v2047 = vpack.c.b16 %v1914, %v1914
  %v2048 = vpack.c.b16 %v1915, %v1915
  %v2049 = vpack.c.b16 %v1916, %v1916
  %v2050 = vpack.c.b16 %v1917, %v1917
  %v2051 = vpack.c.b16 %v1918, %v1918
  %v2052 = vpack.c.b16 %v1919, %v1919
  %v2053 = vpack.c.b16 %v1920, %v1920
  %v2054 = vpack.c.b16 %v1921, %v1921
  %v2055 = vpack.c.b16 %v1922, %v1922
  %v2056 = vpack.c.b16 %v1923, %v1923
  %v2057 = vpack.c.b16 %v1924, %v1924
  %v2058 = vpack.c.b16 %v1925, %v1925
  %v2059 = vpack.c.b16 %v1926, %v1926
  %v2060 = vpack.c.b16 %v1927, %v1927
  %v2061 = vpack.c.b16 %v1928, %v1928
  %v2062 = vpack.c.b16 %v1929, %v1929
  %v2063 = vpack.c.b16 %v1930, %v1930
  %v2064 = vpack.c.b16 %v1931, %v1931
  %v2065 = vpack.c.b16 %v1932, %v1932
  %v2066 = vpack.c.b16 %v1933, %v1933
  %v2067 = vpack.c.b16 %v1934, %v1934
  %v2068 = vpack.c.b16 %v1935, %v1935
  %v2069 = vpack.c.b16 %v1936, %v1936
  %v2070 = vpack.c.b16 %v1937, %v1937
  %v2071 = vpack.c.b16 %v1938, %v1938
  %v2072 = vpack.c.b16 %v1939, %v1939
  %v2073 = vpack.c.b16 %v1940, %v1940
  %v2074 = vpack.c.b16 %v1941, %v1941
  %v2075 = vpack.c.b16 %v1942, %v1942
  %v2076 = vpack.c.b16 %v1943, %v1943
  %v2077 = vpack.c.b16 %v1944, %v1944
  %v2078 = vpack.c.b16 %v1945, %v1945
  %v2079 = vpack.c.b16 %v1946, %v1946
  %v2080 = vpack.c.b16 %v1947, %v1947
  %v2081 = vpack.c.b16 %v1948, %v1948
  %v2082 = vpack.c.b16 %v1949, %v1949
  %v2083 = vpack.c.b16 %v1950, %v1950
  %v2084 = vpack.c.b16 %v1951, %v1951
  %v2085 = vpack.c.b16 %v1952, %v1952
  %v2086 = vpack.c.b16 %v1953, %v1953
  %v2087 = vpack.c.b16 %v1954, %v1954
  %v2088 = vpack.c.b16 %v1955, %v1955
  %v2089 = vpack.c.b16 %v1956, %v1956
  %v2090 = vpack.c.b16 %v1957, %v1957
  %v2091 = vpack.c.b16 %v1958, %v1958
  %v2092 = vpack.c.b16 %v1959, %v1959
  %v2093 = vpack.c.b16 %v1960, %v1960
  %v2094 = vpack.c.b16 %v1961, %v1961
  %v2095 = vpack.c.b16 %v1962, %v1962
  %v2096 = vpack.c.b16 %v1963, %v1963
  %v2097 = vpack.c.b16 %v1964, %v1964
  %v2098 = vpack.c.b16 %v1965, %v1965
  %v2099 = vpack.c.b16 %v1966, %v1966
  %v2100 = vpack.c.b16 %v1967, %v1967
  %v2101 = vpack.c.b16 %v1968, %v1968
  %v2102 = vpack.c.b16 %v1969, %v1969
  %v2103 = vpack.c.b16 %v1970, %v1970
  %v2104 = vpack.c.b16 %v1971, %v1971
  %v2105 = vpack.c.b16 %v1972, %v1972
  %v2106 = vpack.c.b16 %v1973, %v1973
  %v2107 = vpack.c.b16 %v1974, %v1974
  %v2108 = vpack.c.b16 %v1975, %v1975
  %v2109 = vpack.c.b16 %v1976, %v1976
  %v2110 = vpack.c.b16 %v1977, %v1977
  %v2111 = vpack.c.b16 %v1978, %v1978
  %v2112 = vpack.c.b16 %v1979, %v1979
  %v2113 = vpack.c.b16 %v1980, %v1980
  %v2114 = vpack.c.b16 %v1981, %v1981
  %v2115 = vpack.c.b16 %v1982, %v1982
  %v2116 = vpack.c.b16 %v1983, %v1983
  %v2117 = vpack.c.b16 %v1984, %v1984
  %v2118 = vpack.c.b16 %v1985, %v1985
  %v2119 = vpack.c.b16 %v1986, %v1986
  %v2120 = vpack.c.b16 %v1987, %v1987
  %v2121 = vpack.c.b16 %v1988, %v1988
  %v2122 = vpack.c.b16 %v1989, %v1989
  %v2123 = vpack.c.b16 %v1990, %v1990
  %v2124 = vpack.c.b16 %v1991, %v1991
  %v2125 = vpack.c.b16 %v1992, %v1992
  %v2126 = vpack.c.b16 %v1993, %v1993
  %v2127 = vpack.c.b16 %v1994, %v1994
  %v2128 = vpack.c.b16 %v1995, %v1995
  %v2129 = vpack.c.b16 %v1996, %v1996
  %v2130 = vpack.c.b16 %v1997, %v1997
  %v2131 = vpack.c.b16 %v1998, %v1998
  %v2132 = vpack.c.b16 %v1999, %v1999
  %v2133 = vpack.c.b16 %v2000, %v2000
  %v2134 = vpack.c.b16 %v2001, %v2001
  %v2135 = vpack.c.b16 %v2002, %v2002
  %v2136 = vpack.c.b16 %v2003, %v2003
  %v2137 = vpack.c.b16 %v2004, %v2004
  %v2138 = vpack.c.b16 %v2005, %v2005
  %v2139 = vpack.c.b16 %v2006, %v2006
  %v2140 = vpack.c.b16 %v2007, %v2007
  %v2141 = vpack.c.b16 %v2008, %v2008
  %v2142 = vpack.c.b16 %v2009, %v2009
  %v2143 = vpack.c.b16 %v2010, %v2010
  %v2144 = vpack.c.b16 %v2011, %v2011
  %v2145 = vpack.c.b16 %v2012, %v2012
  %v2146 = vpack.c.b16 %v2013, %v2013
  %v2147 = vpack.c.b16 %v2014, %v2014
  %v2148 = vpack.c.b16 %v2015, %v2015
  %v2149 = vpack.c.b16 %v2016, %v2016
  %v2150 = vpack.c.b16 %v2017, %v2017
  %v2151 = vpack.c.b16 %v2018, %v2018
  %v2152 = vpack.c.b16 %v2019, %v2019
  %v2153 = vpack.c.b16 %v2020, %v2020
  %vm2287 = vcmask 125952
  %2288 = vst.msk [vmem:[%s3] sm:$0xf] %vm2287, %v2021
  %2289 = vst.msk [vmem:[%s3 + $0x4] sm:$0xf] %vm2287, %v2022
  %2290 = vst.msk [vmem:[%s3 + $0x8] sm:$0xf] %vm2287, %v2023
  %2291 = vst.msk [vmem:[%s3 + $0xc] sm:$0xf] %vm2287, %v2024
  %2292 = vst.msk [vmem:[%s3 + $0x10] sm:$0xf] %vm2287, %v2025
  %2293 = vst.msk [vmem:[%s3 + $0x14] sm:$0xf] %vm2287, %v2026
  %2294 = vst.msk [vmem:[%s3 + $0x18] sm:$0xf] %vm2287, %v2027
  %2295 = vst.msk [vmem:[%s3 + $0x1c] sm:$0xf] %vm2287, %v2028
  %2296 = vst.msk [vmem:[%s3 + $0x20] sm:$0xf] %vm2287, %v2029
  %2297 = vst.msk [vmem:[%s3 + $0x24] sm:$0xf] %vm2287, %v2030
  %2298 = vst.msk [vmem:[%s3 + $0x28] sm:$0xf] %vm2287, %v2031
  %2299 = vst.msk [vmem:[%s3 + $0x2c] sm:$0xf] %vm2287, %v2032
  %2300 = vst.msk [vmem:[%s3 + $0x30] sm:$0xf] %vm2287, %v2033
  %2301 = vst.msk [vmem:[%s3 + $0x34] sm:$0xf] %vm2287, %v2034
  %2302 = vst.msk [vmem:[%s3 + $0x38] sm:$0xf] %vm2287, %v2035
  %2303 = vst.msk [vmem:[%s3 + $0x3c] sm:$0xf] %vm2287, %v2036
  %2304 = vst.msk [vmem:[%s3 + $0x40] sm:$0xf] %vm2287, %v2037
  %2305 = vst.msk [vmem:[%s3 + $0x44] sm:$0xf] %vm2287, %v2038
  %2306 = vst.msk [vmem:[%s3 + $0x48] sm:$0xf] %vm2287, %v2039
  %2307 = vst.msk [vmem:[%s3 + $0x4c] sm:$0xf] %vm2287, %v2040
  %2308 = vst.msk [vmem:[%s3 + $0x50] sm:$0xf] %vm2287, %v2041
  %2309 = vst.msk [vmem:[%s3 + $0x54] sm:$0xf] %vm2287, %v2042
  %2310 = vst.msk [vmem:[%s3 + $0x58] sm:$0xf] %vm2287, %v2043
  %2311 = vst.msk [vmem:[%s3 + $0x5c] sm:$0xf] %vm2287, %v2044
  %2312 = vst.msk [vmem:[%s3 + $0x60] sm:$0xf] %vm2287, %v2045
  %2313 = vst.msk [vmem:[%s3 + $0x64] sm:$0xf] %vm2287, %v2046
  %2314 = vst.msk [vmem:[%s3 + $0x68] sm:$0xf] %vm2287, %v2047
  %2315 = vst.msk [vmem:[%s3 + $0x6c] sm:$0xf] %vm2287, %v2048
  %2316 = vst.msk [vmem:[%s3 + $0x70] sm:$0xf] %vm2287, %v2049
  %2317 = vst.msk [vmem:[%s3 + $0x74] sm:$0xf] %vm2287, %v2050
  %2318 = vst.msk [vmem:[%s3 + $0x78] sm:$0xf] %vm2287, %v2051
  %2319 = vst.msk [vmem:[%s3 + $0x7c] sm:$0xf] %vm2287, %v2052
  %2320 = vst.msk [vmem:[%s3 + $0x80] sm:$0xf] %vm2287, %v2053
  %2321 = vst.msk [vmem:[%s3 + $0x84] sm:$0xf] %vm2287, %v2054
  %2322 = vst.msk [vmem:[%s3 + $0x88] sm:$0xf] %vm2287, %v2055
  %2323 = vst.msk [vmem:[%s3 + $0x8c] sm:$0xf] %vm2287, %v2056
  %2324 = vst.msk [vmem:[%s3 + $0x90] sm:$0xf] %vm2287, %v2057
  %2325 = vst.msk [vmem:[%s3 + $0x94] sm:$0xf] %vm2287, %v2058
  %2326 = vst.msk [vmem:[%s3 + $0x98] sm:$0xf] %vm2287, %v2059
  %2327 = vst.msk [vmem:[%s3 + $0x9c] sm:$0xf] %vm2287, %v2060
  %2328 = vst.msk [vmem:[%s3 + $0xa0] sm:$0xf] %vm2287, %v2061
  %2329 = vst.msk [vmem:[%s3 + $0xa4] sm:$0xf] %vm2287, %v2062
  %2330 = vst.msk [vmem:[%s3 + $0xa8] sm:$0xf] %vm2287, %v2063
  %2331 = vst.msk [vmem:[%s3 + $0xac] sm:$0xf] %vm2287, %v2064
  %2332 = vst.msk [vmem:[%s3 + $0xb0] sm:$0xf] %vm2287, %v2065
  %2333 = vst.msk [vmem:[%s3 + $0xb4] sm:$0xf] %vm2287, %v2066
  %2334 = vst.msk [vmem:[%s3 + $0xb8] sm:$0xf] %vm2287, %v2067
  %2335 = vst.msk [vmem:[%s3 + $0xbc] sm:$0xf] %vm2287, %v2068
  %2336 = vst.msk [vmem:[%s3 + $0xc0] sm:$0xf] %vm2287, %v2069
  %2337 = vst.msk [vmem:[%s3 + $0xc4] sm:$0xf] %vm2287, %v2070
  %2338 = vst.msk [vmem:[%s3 + $0xc8] sm:$0xf] %vm2287, %v2071
  %2339 = vst.msk [vmem:[%s3 + $0xcc] sm:$0xf] %vm2287, %v2072
  %2340 = vst.msk [vmem:[%s3 + $0xd0] sm:$0xf] %vm2287, %v2073
  %2341 = vst.msk [vmem:[%s3 + $0xd4] sm:$0xf] %vm2287, %v2074
  %2342 = vst.msk [vmem:[%s3 + $0xd8] sm:$0xf] %vm2287, %v2075
  %2343 = vst.msk [vmem:[%s3 + $0xdc] sm:$0xf] %vm2287, %v2076
  %2344 = vst.msk [vmem:[%s3 + $0xe0] sm:$0xf] %vm2287, %v2077
  %2345 = vst.msk [vmem:[%s3 + $0xe4] sm:$0xf] %vm2287, %v2078
  %2346 = vst.msk [vmem:[%s3 + $0xe8] sm:$0xf] %vm2287, %v2079
  %2347 = vst.msk [vmem:[%s3 + $0xec] sm:$0xf] %vm2287, %v2080
  %2348 = vst.msk [vmem:[%s3 + $0xf0] sm:$0xf] %vm2287, %v2081
  %2349 = vst.msk [vmem:[%s3 + $0xf4] sm:$0xf] %vm2287, %v2082
  %2350 = vst.msk [vmem:[%s3 + $0xf8] sm:$0xf] %vm2287, %v2083
  %2351 = vst.msk [vmem:[%s3 + $0xfc] sm:$0xf] %vm2287, %v2084
  %2352 = vst.msk [vmem:[%s3 + $0x100] sm:$0xf] %vm2287, %v2085
  %2353 = vst.msk [vmem:[%s3 + $0x104] sm:$0xf] %vm2287, %v2086
  %2354 = vst.msk [vmem:[%s3 + $0x108] sm:$0xf] %vm2287, %v2087
  %2355 = vst.msk [vmem:[%s3 + $0x10c] sm:$0xf] %vm2287, %v2088
  %2356 = vst.msk [vmem:[%s3 + $0x110] sm:$0xf] %vm2287, %v2089
  %2357 = vst.msk [vmem:[%s3 + $0x114] sm:$0xf] %vm2287, %v2090
  %2358 = vst.msk [vmem:[%s3 + $0x118] sm:$0xf] %vm2287, %v2091
  %2359 = vst.msk [vmem:[%s3 + $0x11c] sm:$0xf] %vm2287, %v2092
  %2360 = vst.msk [vmem:[%s3 + $0x120] sm:$0xf] %vm2287, %v2093
  %2361 = vst.msk [vmem:[%s3 + $0x124] sm:$0xf] %vm2287, %v2094
  %2362 = vst.msk [vmem:[%s3 + $0x128] sm:$0xf] %vm2287, %v2095
  %2363 = vst.msk [vmem:[%s3 + $0x12c] sm:$0xf] %vm2287, %v2096
  %2364 = vst.msk [vmem:[%s3 + $0x130] sm:$0xf] %vm2287, %v2097
  %2365 = vst.msk [vmem:[%s3 + $0x134] sm:$0xf] %vm2287, %v2098
  %2366 = vst.msk [vmem:[%s3 + $0x138] sm:$0xf] %vm2287, %v2099
  %2367 = vst.msk [vmem:[%s3 + $0x13c] sm:$0xf] %vm2287, %v2100
  %2368 = vst.msk [vmem:[%s3 + $0x140] sm:$0xf] %vm2287, %v2101
  %2369 = vst.msk [vmem:[%s3 + $0x144] sm:$0xf] %vm2287, %v2102
  %2370 = vst.msk [vmem:[%s3 + $0x148] sm:$0xf] %vm2287, %v2103
  %2371 = vst.msk [vmem:[%s3 + $0x14c] sm:$0xf] %vm2287, %v2104
  %2372 = vst.msk [vmem:[%s3 + $0x150] sm:$0xf] %vm2287, %v2105
  %2373 = vst.msk [vmem:[%s3 + $0x154] sm:$0xf] %vm2287, %v2106
  %2374 = vst.msk [vmem:[%s3 + $0x158] sm:$0xf] %vm2287, %v2107
  %2375 = vst.msk [vmem:[%s3 + $0x15c] sm:$0xf] %vm2287, %v2108
  %2376 = vst.msk [vmem:[%s3 + $0x160] sm:$0xf] %vm2287, %v2109
  %2377 = vst.msk [vmem:[%s3 + $0x164] sm:$0xf] %vm2287, %v2110
  %2378 = vst.msk [vmem:[%s3 + $0x168] sm:$0xf] %vm2287, %v2111
  %2379 = vst.msk [vmem:[%s3 + $0x16c] sm:$0xf] %vm2287, %v2112
  %2380 = vst.msk [vmem:[%s3 + $0x170] sm:$0xf] %vm2287, %v2113
  %2381 = vst.msk [vmem:[%s3 + $0x174] sm:$0xf] %vm2287, %v2114
  %2382 = vst.msk [vmem:[%s3 + $0x178] sm:$0xf] %vm2287, %v2115
  %2383 = vst.msk [vmem:[%s3 + $0x17c] sm:$0xf] %vm2287, %v2116
  %2384 = vst.msk [vmem:[%s3 + $0x180] sm:$0xf] %vm2287, %v2117
  %2385 = vst.msk [vmem:[%s3 + $0x184] sm:$0xf] %vm2287, %v2118
  %2386 = vst.msk [vmem:[%s3 + $0x188] sm:$0xf] %vm2287, %v2119
  %2387 = vst.msk [vmem:[%s3 + $0x18c] sm:$0xf] %vm2287, %v2120
  %2388 = vst.msk [vmem:[%s3 + $0x190] sm:$0xf] %vm2287, %v2121
  %2389 = vst.msk [vmem:[%s3 + $0x194] sm:$0xf] %vm2287, %v2122
  %2390 = vst.msk [vmem:[%s3 + $0x198] sm:$0xf] %vm2287, %v2123
  %2391 = vst.msk [vmem:[%s3 + $0x19c] sm:$0xf] %vm2287, %v2124
  %2392 = vst.msk [vmem:[%s3 + $0x1a0] sm:$0xf] %vm2287, %v2125
  %2393 = vst.msk [vmem:[%s3 + $0x1a4] sm:$0xf] %vm2287, %v2126
  %2394 = vst.msk [vmem:[%s3 + $0x1a8] sm:$0xf] %vm2287, %v2127
  %2395 = vst.msk [vmem:[%s3 + $0x1ac] sm:$0xf] %vm2287, %v2128
  %2396 = vst.msk [vmem:[%s3 + $0x1b0] sm:$0xf] %vm2287, %v2129
  %2397 = vst.msk [vmem:[%s3 + $0x1b4] sm:$0xf] %vm2287, %v2130
  %2398 = vst.msk [vmem:[%s3 + $0x1b8] sm:$0xf] %vm2287, %v2131
  %2399 = vst.msk [vmem:[%s3 + $0x1bc] sm:$0xf] %vm2287, %v2132
  %2400 = vst.msk [vmem:[%s3 + $0x1c0] sm:$0xf] %vm2287, %v2133
  %2401 = vst.msk [vmem:[%s3 + $0x1c4] sm:$0xf] %vm2287, %v2134
  %2402 = vst.msk [vmem:[%s3 + $0x1c8] sm:$0xf] %vm2287, %v2135
  %2403 = vst.msk [vmem:[%s3 + $0x1cc] sm:$0xf] %vm2287, %v2136
  %2404 = vst.msk [vmem:[%s3 + $0x1d0] sm:$0xf] %vm2287, %v2137
  %2405 = vst.msk [vmem:[%s3 + $0x1d4] sm:$0xf] %vm2287, %v2138
  %2406 = vst.msk [vmem:[%s3 + $0x1d8] sm:$0xf] %vm2287, %v2139
  %2407 = vst.msk [vmem:[%s3 + $0x1dc] sm:$0xf] %vm2287, %v2140
  %2408 = vst.msk [vmem:[%s3 + $0x1e0] sm:$0xf] %vm2287, %v2141
  %2409 = vst.msk [vmem:[%s3 + $0x1e4] sm:$0xf] %vm2287, %v2142
  %2410 = vst.msk [vmem:[%s3 + $0x1e8] sm:$0xf] %vm2287, %v2143
  %2411 = vst.msk [vmem:[%s3 + $0x1ec] sm:$0xf] %vm2287, %v2144
  %2412 = vst.msk [vmem:[%s3 + $0x1f0] sm:$0xf] %vm2287, %v2145
  %2413 = vst.msk [vmem:[%s3 + $0x1f4] sm:$0xf] %vm2287, %v2146
  %2414 = vst.msk [vmem:[%s3 + $0x1f8] sm:$0xf] %vm2287, %v2147
  %2415 = vst.msk [vmem:[%s3 + $0x1fc] sm:$0xf] %vm2287, %v2148
  %2416 = vst.msk [vmem:[%s3 + $0x200] sm:$0xf] %vm2287, %v2149
  %2417 = vst.msk [vmem:[%s3 + $0x204] sm:$0xf] %vm2287, %v2150
  %2418 = vst.msk [vmem:[%s3 + $0x208] sm:$0xf] %vm2287, %v2151
  %2419 = vst.msk [vmem:[%s3 + $0x20c] sm:$0xf] %vm2287, %v2152
  %vm2420 = vcmask 122880
  %2421 = vst.msk [vmem:[%s3 + $0x210] sm:$0x1] %vm2420, %v2153
  // Predicated region
  $region14: #{qnetwork_forward.3} parent=0 // pred_check
    _
  $region15: #{qnetwork_forward.3} parent=0 // pred_check_branch
    %2423 = sbr.rel (0) target = $region17
  $region16: #{qnetwork_forward.3} parent=0 // pred_region
    _
  $region17: #{qnetwork_forward.3} parent=0 // pred_fallthru
    _
  // Predicated region
  $region18: #{qnetwork_forward.3} parent=0 // pred_check
    _
  $region19: #{qnetwork_forward.3} parent=0 // pred_check_branch
    %2425 = sbr.rel (0) target = $region21
  $region20: #{qnetwork_forward.3} parent=0 // pred_region
    _
  $region21: #{qnetwork_forward.3} parent=0 // pred_fallthru
    _

// kernel: qnetwork_forward.4
$region0: #{qnetwork_forward.4}
  #allocation0 [shape = 'u32[]', space=smem, size = 0x4, offset = 0x4, fixed_abs, tag = 'smem constant byte address 0x4 - core index']
  #allocation1 [shape = 'u32[144,128]{1,0:T(1,128)}', space=vmem, size = 0x12000, scoped, tag = 'internal scratch']
  %s0 = inlined_call_operand.vmem [shape: bf16[200,256], index: 0, kind: input, shape index: {}]
  %s1 = inlined_call_operand.vmem [shape: bf16[256,32], index: 1, kind: input, shape index: {}]
  %s2 = inlined_call_operand.vmem [shape: f32[1,32], index: 2, kind: input, shape index: {}]
  %s3 = inlined_call_operand.vmem [shape: bf16[200,32], index: 3, kind: output, shape index: {}]
  %s4 = sld [smem:[#allocation0]]
  $region22: #{qnetwork_forward.4} parent=0
    _
  %s6 = ssub.s32 1, %s4
  %s7 = scalar_select 0, %s6, %s4
  // Predicated region
  $region2: #{qnetwork_forward.4} parent=0 // pred_check
    _
  $region3: #{qnetwork_forward.4} parent=0 // pred_check_branch
    %9 = sbr.rel (0) target = $region5
  $region4: #{qnetwork_forward.4} parent=0 // pred_region
    _
  $region5: #{qnetwork_forward.4} parent=0 // pred_fallthru
    _
  // Predicated region
  $region6: #{qnetwork_forward.4} parent=0 // pred_check
    _
  $region7: #{qnetwork_forward.4} parent=0 // pred_check_branch
    %11 = sbr.rel (0) target = $region9
  $region8: #{qnetwork_forward.4} parent=0 // pred_region
    _
  $region9: #{qnetwork_forward.4} parent=0 // pred_fallthru
    _
  // Predicated region
  $region10: #{qnetwork_forward.4} parent=0 // pred_check
    _
  $region11: #{qnetwork_forward.4} parent=0 // pred_check_branch
    %13 = sbr.rel (0) target = $region13
  $region12: #{qnetwork_forward.4} parent=0 // pred_region
    _
  $region13: #{qnetwork_forward.4} parent=0 // pred_fallthru
    _
  %v15 = vld [vmem:[%s0] sm:$0xff]
  %v16 = vld [vmem:[%s0 + $0x8] sm:$0xff]
  %v17 = vld [vmem:[%s0 + $0x10] sm:$0xff]
  %v18 = vld [vmem:[%s0 + $0x18] sm:$0xff]
  %v19 = vld [vmem:[%s0 + $0x20] sm:$0xff]
  %v20 = vld [vmem:[%s0 + $0x28] sm:$0xff]
  %v21 = vld [vmem:[%s0 + $0x30] sm:$0xff]
  %v22 = vld [vmem:[%s0 + $0x38] sm:$0xff]
  %v23 = vld [vmem:[%s0 + $0x40] sm:$0xff]
  %v24 = vld [vmem:[%s0 + $0x48] sm:$0xff]
  %v25 = vld [vmem:[%s0 + $0x50] sm:$0xff]
  %v26 = vld [vmem:[%s0 + $0x58] sm:$0xff]
  %v27 = vld [vmem:[%s0 + $0x60] sm:$0xff]
  %v28 = vld [vmem:[%s0 + $0x68] sm:$0xff]
  %v29 = vld [vmem:[%s0 + $0x70] sm:$0xff]
  %v30 = vld [vmem:[%s0 + $0x78] sm:$0xff]
  %v31 = vld [vmem:[%s0 + $0x80] sm:$0xff]
  %v32 = vld [vmem:[%s0 + $0x88] sm:$0xff]
  %v33 = vld [vmem:[%s0 + $0x90] sm:$0xff]
  %v34 = vld [vmem:[%s0 + $0x98] sm:$0xff]
  %v35 = vld [vmem:[%s0 + $0xa0] sm:$0xff]
  %v36 = vld [vmem:[%s0 + $0xa8] sm:$0xff]
  %v37 = vld [vmem:[%s0 + $0xb0] sm:$0xff]
  %v38 = vld [vmem:[%s0 + $0xb8] sm:$0xff]
  %v39 = vld [vmem:[%s0 + $0xc0] sm:$0xff]
  %v40 = vld [vmem:[%s1] sm:$0xf]
  %v41 = vld [vmem:[%s1 + $0x4] sm:$0xf]
  %v42 = vld [vmem:[%s1 + $0x8] sm:$0xf]
  %v43 = vld [vmem:[%s1 + $0xc] sm:$0xf]
  %v44 = vld [vmem:[%s1 + $0x10] sm:$0xf]
  %v45 = vld [vmem:[%s1 + $0x14] sm:$0xf]
  %v46 = vld [vmem:[%s1 + $0x18] sm:$0xf]
  %v47 = vld [vmem:[%s1 + $0x1c] sm:$0xf]
  %v48 = vld [vmem:[%s1 + $0x20] sm:$0xf]
  %v49 = vld [vmem:[%s1 + $0x24] sm:$0xf]
  %v50 = vld [vmem:[%s1 + $0x28] sm:$0xf]
  %v51 = vld [vmem:[%s1 + $0x2c] sm:$0xf]
  %v52 = vld [vmem:[%s1 + $0x30] sm:$0xf]
  %v53 = vld [vmem:[%s1 + $0x34] sm:$0xf]
  %v54 = vld [vmem:[%s1 + $0x38] sm:$0xf]
  %v55 = vld [vmem:[%s1 + $0x3c] sm:$0xf]
  %v56 = vld [vmem:[%s1 + $0x40] sm:$0xf]
  %v57 = vld [vmem:[%s1 + $0x44] sm:$0xf]
  %v58 = vld [vmem:[%s1 + $0x48] sm:$0xf]
  %v59 = vld [vmem:[%s1 + $0x4c] sm:$0xf]
  %v60 = vld [vmem:[%s1 + $0x50] sm:$0xf]
  %v61 = vld [vmem:[%s1 + $0x54] sm:$0xf]
  %v62 = vld [vmem:[%s1 + $0x58] sm:$0xf]
  %v63 = vld [vmem:[%s1 + $0x5c] sm:$0xf]
  %v64 = vld [vmem:[%s1 + $0x60] sm:$0xf]
  %v65 = vld [vmem:[%s1 + $0x64] sm:$0xf]
  %v66 = vld [vmem:[%s1 + $0x68] sm:$0xf]
  %v67 = vld [vmem:[%s1 + $0x6c] sm:$0xf]
  %v68 = vld [vmem:[%s1 + $0x70] sm:$0xf]
  %v69 = vld [vmem:[%s1 + $0x74] sm:$0xf]
  %v70 = vld [vmem:[%s1 + $0x78] sm:$0xf]
  %v71 = vld [vmem:[%s1 + $0x7c] sm:$0xf]
  %v72 = vld [vmem:[%s2] sm:$0x1]
  %v74 = vlaneseq
  %v75 = vshrl.u32 %v74, 7
  %v76 = vsub.s32 0, %v75
  %v77 = vrot.slane %v72, %v76
  %v104 = vunpack.c.l.b16 %v15
  %v105 = vunpack.c.h.b16 %v15
  %v106 = vunpack.c.l.b16 %v16
  %v107 = vunpack.c.h.b16 %v16
  %v108 = vunpack.c.l.b16 %v17
  %v109 = vunpack.c.h.b16 %v17
  %v110 = vunpack.c.l.b16 %v18
  %v111 = vunpack.c.h.b16 %v18
  %v112 = vunpack.c.l.b16 %v19
  %v113 = vunpack.c.h.b16 %v19
  %v114 = vunpack.c.l.b16 %v20
  %v115 = vunpack.c.h.b16 %v20
  %v116 = vunpack.c.l.b16 %v21
  %v117 = vunpack.c.h.b16 %v21
  %v118 = vunpack.c.l.b16 %v22
  %v119 = vunpack.c.h.b16 %v22
  %v120 = vunpack.c.l.b16 %v23
  %v121 = vunpack.c.h.b16 %v23
  %v122 = vunpack.c.l.b16 %v24
  %v123 = vunpack.c.h.b16 %v24
  %v124 = vunpack.c.l.b16 %v25
  %v125 = vunpack.c.h.b16 %v25
  %v126 = vunpack.c.l.b16 %v26
  %v127 = vunpack.c.h.b16 %v26
  %v128 = vunpack.c.l.b16 %v27
  %v129 = vunpack.c.h.b16 %v27
  %v130 = vunpack.c.l.b16 %v28
  %v131 = vunpack.c.h.b16 %v28
  %v132 = vunpack.c.l.b16 %v29
  %v133 = vunpack.c.h.b16 %v29
  %v134 = vunpack.c.l.b16 %v30
  %v135 = vunpack.c.h.b16 %v30
  %v136 = vunpack.c.l.b16 %v31
  %v137 = vunpack.c.h.b16 %v31
  %v138 = vunpack.c.l.b16 %v32
  %v139 = vunpack.c.h.b16 %v32
  %v140 = vunpack.c.l.b16 %v33
  %v141 = vunpack.c.h.b16 %v33
  %v142 = vunpack.c.l.b16 %v34
  %v143 = vunpack.c.h.b16 %v34
  %v144 = vunpack.c.l.b16 %v35
  %v145 = vunpack.c.h.b16 %v35
  %v146 = vunpack.c.l.b16 %v36
  %v147 = vunpack.c.h.b16 %v36
  %v148 = vunpack.c.l.b16 %v37
  %v149 = vunpack.c.h.b16 %v37
  %v150 = vunpack.c.l.b16 %v38
  %v151 = vunpack.c.h.b16 %v38
  %v152 = vunpack.c.l.b16 %v39
  %v153 = vunpack.c.h.b16 %v39
  %v154 = vpack.c.b16 %v106, %v104
  %v155 = vpack.c.b16 %v107, %v105
  %v156 = vpack.c.b16 %v110, %v108
  %v157 = vpack.c.b16 %v111, %v109
  %v158 = vpack.c.b16 %v114, %v112
  %v159 = vpack.c.b16 %v115, %v113
  %v160 = vpack.c.b16 %v118, %v116
  %v161 = vpack.c.b16 %v119, %v117
  %v162 = vpack.c.b16 %v122, %v120
  %v163 = vpack.c.b16 %v123, %v121
  %v164 = vpack.c.b16 %v126, %v124
  %v165 = vpack.c.b16 %v127, %v125
  %v166 = vpack.c.b16 %v130, %v128
  %v167 = vpack.c.b16 %v131, %v129
  %v168 = vpack.c.b16 %v134, %v132
  %v169 = vpack.c.b16 %v135, %v133
  %v170 = vpack.c.b16 %v138, %v136
  %v171 = vpack.c.b16 %v139, %v137
  %v172 = vpack.c.b16 %v142, %v140
  %v173 = vpack.c.b16 %v143, %v141
  %v174 = vpack.c.b16 %v146, %v144
  %v175 = vpack.c.b16 %v147, %v145
  %v176 = vpack.c.b16 %v150, %v148
  %v177 = vpack.c.b16 %v151, %v149
  %v178 = vpack.c.b16 %v152, %v152
  %v179 = vpack.c.b16 %v153, %v153
  %v238 = vunpack.c.l.b16 %v40
  %v239 = vunpack.c.l.b16 %v41
  %v240 = vunpack.c.l.b16 %v42
  %v241 = vunpack.c.l.b16 %v43
  %v242 = vunpack.c.l.b16 %v44
  %v243 = vunpack.c.l.b16 %v45
  %v244 = vunpack.c.l.b16 %v46
  %v245 = vunpack.c.l.b16 %v47
  %v246 = vunpack.c.l.b16 %v48
  %v247 = vunpack.c.l.b16 %v49
  %v248 = vunpack.c.l.b16 %v50
  %v249 = vunpack.c.l.b16 %v51
  %v250 = vunpack.c.l.b16 %v52
  %v251 = vunpack.c.l.b16 %v53
  %v252 = vunpack.c.l.b16 %v54
  %v253 = vunpack.c.l.b16 %v55
  %v254 = vunpack.c.l.b16 %v56
  %v255 = vunpack.c.l.b16 %v57
  %v256 = vunpack.c.l.b16 %v58
  %v257 = vunpack.c.l.b16 %v59
  %v258 = vunpack.c.l.b16 %v60
  %v259 = vunpack.c.l.b16 %v61
  %v260 = vunpack.c.l.b16 %v62
  %v261 = vunpack.c.l.b16 %v63
  %v262 = vunpack.c.l.b16 %v64
  %v263 = vunpack.c.l.b16 %v65
  %v264 = vunpack.c.l.b16 %v66
  %v265 = vunpack.c.l.b16 %v67
  %v266 = vunpack.c.l.b16 %v68
  %v267 = vunpack.c.l.b16 %v69
  %v268 = vunpack.c.l.b16 %v70
  %v269 = vunpack.c.l.b16 %v71
  %v270 = vpack.c.b16 %v239, %v238
  %v271 = vpack.c.b16 %v241, %v240
  %v272 = vpack.c.b16 %v243, %v242
  %v273 = vpack.c.b16 %v245, %v244
  %v274 = vpack.c.b16 %v247, %v246
  %v275 = vpack.c.b16 %v249, %v248
  %v276 = vpack.c.b16 %v251, %v250
  %v277 = vpack.c.b16 %v253, %v252
  %v278 = vpack.c.b16 %v255, %v254
  %v279 = vpack.c.b16 %v257, %v256
  %v280 = vpack.c.b16 %v259, %v258
  %v281 = vpack.c.b16 %v261, %v260
  %v282 = vpack.c.b16 %v263, %v262
  %v283 = vpack.c.b16 %v265, %v264
  %v284 = vpack.c.b16 %v267, %v266
  %v285 = vpack.c.b16 %v269, %v268
  %302 = vmatprep.subr.bf16.mxu0 0
  %303 = vmatpush1.bf16.msra.mxu0 %v277
  %304 = vmatprep.subr.bf16.mxu0 0
  %305 = vmatpush1.bf16.msra.mxu0 %v276
  %306 = vmatprep.subr.bf16.mxu0 0
  %307 = vmatpush1.bf16.msra.mxu0 %v275
  %308 = vmatprep.subr.bf16.mxu0 0
  %309 = vmatpush1.bf16.msra.mxu0 %v274
  %310 = vmatprep.subr.bf16.mxu0 0
  %311 = vmatpush1.bf16.msra.mxu0 %v273
  %312 = vmatprep.subr.bf16.mxu0 0
  %313 = vmatpush1.bf16.msra.mxu0 %v272
  %314 = vmatprep.subr.bf16.mxu0 0
  %315 = vmatpush1.bf16.msra.mxu0 %v271
  %316 = vmatprep.subr.bf16.mxu0 0
  %317 = vmatpush1.bf16.msra.mxu0 %v270
  %318 = vmatprep.subr.bf16.mxu0 0
  %319 = vmatpush2.bf16.msra.mxu0 %v285
  %320 = vmatprep.subr.bf16.mxu0 0
  %321 = vmatpush2.bf16.msra.mxu0 %v284
  %322 = vmatprep.subr.bf16.mxu0 0
  %323 = vmatpush2.bf16.msra.mxu0 %v283
  %324 = vmatprep.subr.bf16.mxu0 0
  %325 = vmatpush2.bf16.msra.mxu0 %v282
  %326 = vmatprep.subr.bf16.mxu0 0
  %327 = vmatpush2.bf16.msra.mxu0 %v281
  %328 = vmatprep.subr.bf16.mxu0 0
  %329 = vmatpush2.bf16.msra.mxu0 %v280
  %330 = vmatprep.subr.bf16.mxu0 0
  %331 = vmatpush2.bf16.msra.mxu0 %v279
  %332 = vmatprep.subr.bf16.mxu0 0
  %333 = vmatpush2.bf16.msra.mxu0 %v278
  %334 = vmatprep.mubr.bf16.mxu0 %v155
  %335 = vmatmul.mubr.bf16.gmra.mxu0 %v154
  %v336 = vpop.f32.mrf.mxu0
  %v337 = vadd.f32 %v77, %v336
  %v338 = vpop.f32.mrf.mxu0
  %v339 = vpop.f32.mrf.mxu0
  %v340 = vadd.f32 %v77, %v339
  %v341 = vpop.f32.mrf.mxu0
  %342 = vmatprep.mubr.bf16.mxu0 %v157
  %343 = vmatmul.mubr.bf16.gmra.mxu0 %v156
  %v344 = vpop.f32.mrf.mxu0
  %v345 = vadd.f32 %v77, %v344
  %v346 = vpop.f32.mrf.mxu0
  %v347 = vpop.f32.mrf.mxu0
  %v348 = vadd.f32 %v77, %v347
  %v349 = vpop.f32.mrf.mxu0
  %350 = vmatprep.mubr.bf16.mxu0 %v159
  %351 = vmatmul.mubr.bf16.gmra.mxu0 %v158
  %v352 = vpop.f32.mrf.mxu0
  %v353 = vadd.f32 %v77, %v352
  %v354 = vpop.f32.mrf.mxu0
  %v355 = vpop.f32.mrf.mxu0
  %v356 = vadd.f32 %v77, %v355
  %v357 = vpop.f32.mrf.mxu0
  %358 = vmatprep.mubr.bf16.mxu0 %v161
  %359 = vmatmul.mubr.bf16.gmra.mxu0 %v160
  %v360 = vpop.f32.mrf.mxu0
  %v361 = vadd.f32 %v77, %v360
  %v362 = vpop.f32.mrf.mxu0
  %v363 = vpop.f32.mrf.mxu0
  %v364 = vadd.f32 %v77, %v363
  %v365 = vpop.f32.mrf.mxu0
  %366 = vmatprep.mubr.bf16.mxu0 %v163
  %367 = vmatmul.mubr.bf16.gmra.mxu0 %v162
  %v368 = vpop.f32.mrf.mxu0
  %v369 = vadd.f32 %v77, %v368
  %v370 = vpop.f32.mrf.mxu0
  %v371 = vpop.f32.mrf.mxu0
  %v372 = vadd.f32 %v77, %v371
  %v373 = vpop.f32.mrf.mxu0
  %374 = vmatprep.mubr.bf16.mxu0 %v165
  %375 = vmatmul.mubr.bf16.gmra.mxu0 %v164
  %v376 = vpop.f32.mrf.mxu0
  %v377 = vadd.f32 %v77, %v376
  %v378 = vpop.f32.mrf.mxu0
  %v379 = vpop.f32.mrf.mxu0
  %v380 = vadd.f32 %v77, %v379
  %v381 = vpop.f32.mrf.mxu0
  %382 = vmatprep.mubr.bf16.mxu0 %v167
  %383 = vmatmul.mubr.bf16.gmra.mxu0 %v166
  %v384 = vpop.f32.mrf.mxu0
  %v385 = vadd.f32 %v77, %v384
  %v386 = vpop.f32.mrf.mxu0
  %v387 = vpop.f32.mrf.mxu0
  %v388 = vadd.f32 %v77, %v387
  %v389 = vpop.f32.mrf.mxu0
  %390 = vmatprep.mubr.bf16.mxu0 %v169
  %391 = vmatmul.mubr.bf16.gmra.mxu0 %v168
  %v392 = vpop.f32.mrf.mxu0
  %v393 = vadd.f32 %v77, %v392
  %v394 = vpop.f32.mrf.mxu0
  %v395 = vpop.f32.mrf.mxu0
  %v396 = vadd.f32 %v77, %v395
  %v397 = vpop.f32.mrf.mxu0
  %398 = vmatprep.mubr.bf16.mxu0 %v171
  %399 = vmatmul.mubr.bf16.gmra.mxu0 %v170
  %v400 = vpop.f32.mrf.mxu0
  %v401 = vadd.f32 %v77, %v400
  %v402 = vpop.f32.mrf.mxu0
  %v403 = vpop.f32.mrf.mxu0
  %v404 = vadd.f32 %v77, %v403
  %v405 = vpop.f32.mrf.mxu0
  %406 = vmatprep.mubr.bf16.mxu0 %v173
  %407 = vmatmul.mubr.bf16.gmra.mxu0 %v172
  %v408 = vpop.f32.mrf.mxu0
  %v409 = vadd.f32 %v77, %v408
  %v410 = vpop.f32.mrf.mxu0
  %v411 = vpop.f32.mrf.mxu0
  %v412 = vadd.f32 %v77, %v411
  %v413 = vpop.f32.mrf.mxu0
  %414 = vmatprep.mubr.bf16.mxu0 %v175
  %415 = vmatmul.mubr.bf16.gmra.mxu0 %v174
  %v416 = vpop.f32.mrf.mxu0
  %v417 = vadd.f32 %v77, %v416
  %v418 = vpop.f32.mrf.mxu0
  %v419 = vpop.f32.mrf.mxu0
  %v420 = vadd.f32 %v77, %v419
  %v421 = vpop.f32.mrf.mxu0
  %422 = vmatprep.mubr.bf16.mxu0 %v177
  %423 = vmatmul.mubr.bf16.gmra.mxu0 %v176
  %v424 = vpop.f32.mrf.mxu0
  %v425 = vadd.f32 %v77, %v424
  %v426 = vpop.f32.mrf.mxu0
  %v427 = vpop.f32.mrf.mxu0
  %v428 = vadd.f32 %v77, %v427
  %v429 = vpop.f32.mrf.mxu0
  %430 = vmatprep.mubr.bf16.mxu0 %v179
  %431 = vmatmul.mubr.bf16.gmra.mxu0 %v178
  %v432 = vpop.f32.mrf.mxu0
  %v433 = vadd.f32 %v77, %v432
  %v434 = vpop.f32.mrf.mxu0
  %v435 = vpop.f32.mrf.mxu0
  %v436 = vpop.f32.mrf.mxu0
  %437 = vdwg.mxu0
  %v438 = vmax.f32 %v337, 0.0
  %v439 = vmax.f32 %v340, 0.0
  %v440 = vmax.f32 %v345, 0.0
  %v441 = vmax.f32 %v348, 0.0
  %v442 = vmax.f32 %v353, 0.0
  %v443 = vmax.f32 %v356, 0.0
  %v444 = vmax.f32 %v361, 0.0
  %v445 = vmax.f32 %v364, 0.0
  %v446 = vmax.f32 %v369, 0.0
  %v447 = vmax.f32 %v372, 0.0
  %v448 = vmax.f32 %v377, 0.0
  %v449 = vmax.f32 %v380, 0.0
  %v450 = vmax.f32 %v385, 0.0
  %v451 = vmax.f32 %v388, 0.0
  %v452 = vmax.f32 %v393, 0.0
  %v453 = vmax.f32 %v396, 0.0
  %v454 = vmax.f32 %v401, 0.0
  %v455 = vmax.f32 %v404, 0.0
  %v456 = vmax.f32 %v409, 0.0
  %v457 = vmax.f32 %v412, 0.0
  %v458 = vmax.f32 %v417, 0.0
  %v459 = vmax.f32 %v420, 0.0
  %v460 = vmax.f32 %v425, 0.0
  %v461 = vmax.f32 %v428, 0.0
  %v462 = vmax.f32 %v433, 0.0
  %v463 = vpack.c.bf16 %v439, %v438
  %v464 = vpack.c.bf16 %v441, %v440
  %v465 = vpack.c.bf16 %v443, %v442
  %v466 = vpack.c.bf16 %v445, %v444
  %v467 = vpack.c.bf16 %v447, %v446
  %v468 = vpack.c.bf16 %v449, %v448
  %v469 = vpack.c.bf16 %v451, %v450
  %v470 = vpack.c.bf16 %v453, %v452
  %v471 = vpack.c.bf16 %v455, %v454
  %v472 = vpack.c.bf16 %v457, %v456
  %v473 = vpack.c.bf16 %v459, %v458
  %v474 = vpack.c.bf16 %v461, %v460
  %v475 = vpack.c.bf16 %v462, %v462
  %v489 = vunpack.c.l.b16 %v463
  %v490 = vunpack.c.h.b16 %v463
  %v491 = vunpack.c.l.b16 %v464
  %v492 = vunpack.c.h.b16 %v464
  %v493 = vunpack.c.l.b16 %v465
  %v494 = vunpack.c.h.b16 %v465
  %v495 = vunpack.c.l.b16 %v466
  %v496 = vunpack.c.h.b16 %v466
  %v497 = vunpack.c.l.b16 %v467
  %v498 = vunpack.c.h.b16 %v467
  %v499 = vunpack.c.l.b16 %v468
  %v500 = vunpack.c.h.b16 %v468
  %v501 = vunpack.c.l.b16 %v469
  %v502 = vunpack.c.h.b16 %v469
  %v503 = vunpack.c.l.b16 %v470
  %v504 = vunpack.c.h.b16 %v470
  %v505 = vunpack.c.l.b16 %v471
  %v506 = vunpack.c.h.b16 %v471
  %v507 = vunpack.c.l.b16 %v472
  %v508 = vunpack.c.h.b16 %v472
  %v509 = vunpack.c.l.b16 %v473
  %v510 = vunpack.c.h.b16 %v473
  %v511 = vunpack.c.l.b16 %v474
  %v512 = vunpack.c.h.b16 %v474
  %v513 = vunpack.c.l.b16 %v475
  %v514 = vpack.c.b16 %v489, %v489
  %v515 = vpack.c.b16 %v490, %v490
  %v516 = vpack.c.b16 %v491, %v491
  %v517 = vpack.c.b16 %v492, %v492
  %v518 = vpack.c.b16 %v493, %v493
  %v519 = vpack.c.b16 %v494, %v494
  %v520 = vpack.c.b16 %v495, %v495
  %v521 = vpack.c.b16 %v496, %v496
  %v522 = vpack.c.b16 %v497, %v497
  %v523 = vpack.c.b16 %v498, %v498
  %v524 = vpack.c.b16 %v499, %v499
  %v525 = vpack.c.b16 %v500, %v500
  %v526 = vpack.c.b16 %v501, %v501
  %v527 = vpack.c.b16 %v502, %v502
  %v528 = vpack.c.b16 %v503, %v503
  %v529 = vpack.c.b16 %v504, %v504
  %v530 = vpack.c.b16 %v505, %v505
  %v531 = vpack.c.b16 %v506, %v506
  %v532 = vpack.c.b16 %v507, %v507
  %v533 = vpack.c.b16 %v508, %v508
  %v534 = vpack.c.b16 %v509, %v509
  %v535 = vpack.c.b16 %v510, %v510
  %v536 = vpack.c.b16 %v511, %v511
  %v537 = vpack.c.b16 %v512, %v512
  %v538 = vpack.c.b16 %v513, %v513
  %vm564 = vcmask 257024
  %565 = vst.msk [vmem:[%s3] sm:$0xf] %vm564, %v514
  %566 = vst.msk [vmem:[%s3 + $0x4] sm:$0xf] %vm564, %v515
  %567 = vst.msk [vmem:[%s3 + $0x8] sm:$0xf] %vm564, %v516
  %568 = vst.msk [vmem:[%s3 + $0xc] sm:$0xf] %vm564, %v517
  %569 = vst.msk [vmem:[%s3 + $0x10] sm:$0xf] %vm564, %v518
  %570 = vst.msk [vmem:[%s3 + $0x14] sm:$0xf] %vm564, %v519
  %571 = vst.msk [vmem:[%s3 + $0x18] sm:$0xf] %vm564, %v520
  %572 = vst.msk [vmem:[%s3 + $0x1c] sm:$0xf] %vm564, %v521
  %573 = vst.msk [vmem:[%s3 + $0x20] sm:$0xf] %vm564, %v522
  %574 = vst.msk [vmem:[%s3 + $0x24] sm:$0xf] %vm564, %v523
  %575 = vst.msk [vmem:[%s3 + $0x28] sm:$0xf] %vm564, %v524
  %576 = vst.msk [vmem:[%s3 + $0x2c] sm:$0xf] %vm564, %v525
  %577 = vst.msk [vmem:[%s3 + $0x30] sm:$0xf] %vm564, %v526
  %578 = vst.msk [vmem:[%s3 + $0x34] sm:$0xf] %vm564, %v527
  %579 = vst.msk [vmem:[%s3 + $0x38] sm:$0xf] %vm564, %v528
  %580 = vst.msk [vmem:[%s3 + $0x3c] sm:$0xf] %vm564, %v529
  %581 = vst.msk [vmem:[%s3 + $0x40] sm:$0xf] %vm564, %v530
  %582 = vst.msk [vmem:[%s3 + $0x44] sm:$0xf] %vm564, %v531
  %583 = vst.msk [vmem:[%s3 + $0x48] sm:$0xf] %vm564, %v532
  %584 = vst.msk [vmem:[%s3 + $0x4c] sm:$0xf] %vm564, %v533
  %585 = vst.msk [vmem:[%s3 + $0x50] sm:$0xf] %vm564, %v534
  %586 = vst.msk [vmem:[%s3 + $0x54] sm:$0xf] %vm564, %v535
  %587 = vst.msk [vmem:[%s3 + $0x58] sm:$0xf] %vm564, %v536
  %588 = vst.msk [vmem:[%s3 + $0x5c] sm:$0xf] %vm564, %v537
  %589 = vst.msk [vmem:[%s3 + $0x60] sm:$0xf] %vm564, %v538
  // Predicated region
  $region14: #{qnetwork_forward.4} parent=0 // pred_check
    _
  $region15: #{qnetwork_forward.4} parent=0 // pred_check_branch
    %591 = sbr.rel (0) target = $region17
  $region16: #{qnetwork_forward.4} parent=0 // pred_region
    _
  $region17: #{qnetwork_forward.4} parent=0 // pred_fallthru
    _
  // Predicated region
  $region18: #{qnetwork_forward.4} parent=0 // pred_check
    _
  $region19: #{qnetwork_forward.4} parent=0 // pred_check_branch
    %593 = sbr.rel (0) target = $region21
  $region20: #{qnetwork_forward.4} parent=0 // pred_region
    _
  $region21: #{qnetwork_forward.4} parent=0 // pred_fallthru
    _

// kernel: qnetwork_forward.5
$region0: #{qnetwork_forward.5}
  #allocation0 [shape = 'u32[]', space=smem, size = 0x4, offset = 0x4, fixed_abs, tag = 'smem constant byte address 0x4 - core index']
  #allocation1 [shape = 'u32[144,128]{1,0:T(1,128)}', space=vmem, size = 0x12000, scoped, tag = 'internal scratch']
  %s0 = inlined_call_operand.vmem [shape: bf16[2,3200], index: 0, kind: input, shape index: {}]
  %s1 = inlined_call_operand.vmem [shape: bf16[3200,256], index: 1, kind: input, shape index: {}]
  %s2 = inlined_call_operand.vmem [shape: f32[1,256], index: 2, kind: input, shape index: {}]
  %s3 = inlined_call_operand.vmem [shape: bf16[256,128], index: 3, kind: input, shape index: {}]
  %s4 = inlined_call_operand.vmem [shape: f32[1,128], index: 4, kind: input, shape index: {}]
  %s5 = inlined_call_operand.hbm [shape: f32[2,128], index: 5, kind: output, shape index: {}]
  %s6 = sld [smem:[#allocation0]]
  $region30: #{qnetwork_forward.5} parent=0
    _
  %s8 = ssub.s32 1, %s6
  %s9 = scalar_select 0, %s8, %s6
  $region1: #{qnetwork_forward.5} parent=0
    #allocation2 [shape = 'u8[1024]{0}', space=vmem, size = 0x400, scoped, tag = 'output window, operand 0, single buffered']
    #allocation3 [shape = 's32[1]{0}', space=sflag, size = 0x4, scoped, tag = 'scoped memory for qnetwork_forward.5']
    %10 = vsyncpa [#allocation3], 0
    // Predicated region
    $region2: #{qnetwork_forward.5} parent=1 // pred_check
      _
    $region3: #{qnetwork_forward.5} parent=1 // pred_check_branch
      %12 = sbr.rel (0) target = $region5
    $region4: #{qnetwork_forward.5} parent=1 // pred_region
      _
    $region5: #{qnetwork_forward.5} parent=1 // pred_fallthru
      _
    // Predicated region
    $region6: #{qnetwork_forward.5} parent=1 // pred_check
      _
    $region7: #{qnetwork_forward.5} parent=1 // pred_check_branch
      %14 = sbr.rel (0) target = $region9
    $region8: #{qnetwork_forward.5} parent=1 // pred_region
      _
    $region9: #{qnetwork_forward.5} parent=1 // pred_fallthru
      _
    // Predicated region
    $region10: #{qnetwork_forward.5} parent=1 // pred_check
      _
    $region11: #{qnetwork_forward.5} parent=1 // pred_check_branch
      %16 = sbr.rel (0) target = $region13
    $region12: #{qnetwork_forward.5} parent=1 // pred_region
      _
    $region13: #{qnetwork_forward.5} parent=1 // pred_fallthru
      _
    // Predicated region
    $region14: #{qnetwork_forward.5} parent=1 // pred_check
      _
    $region15: #{qnetwork_forward.5} parent=1 // pred_check_branch
      %18 = sbr.rel (0) target = $region17
    $region16: #{qnetwork_forward.5} parent=1 // pred_region
      _
    $region17: #{qnetwork_forward.5} parent=1 // pred_fallthru
      _
    // Predicated region
    $region18: #{qnetwork_forward.5} parent=1 // pred_check
      _
    $region19: #{qnetwork_forward.5} parent=1 // pred_check_branch
      %20 = sbr.rel (0) target = $region21
    $region20: #{qnetwork_forward.5} parent=1 // pred_region
      _
    $region21: #{qnetwork_forward.5} parent=1 // pred_fallthru
      _
    %v22 = vld [vmem:[%s0] sm:$0xff]
    %v23 = vld [vmem:[%s0 + $0x8] sm:$0xff]
    %v24 = vld [vmem:[%s0 + $0x10] sm:$0xff]
    %v25 = vld [vmem:[%s0 + $0x18] sm:$0x1]
    %v26 = vld [vmem:[%s1] sm:$0xff]
    %v27 = vld [vmem:[%s1 + $0x8] sm:$0xff]
    %v28 = vld [vmem:[%s1 + $0x10] sm:$0xff]
    %v29 = vld [vmem:[%s1 + $0x18] sm:$0xff]
    %v30 = vld [vmem:[%s1 + $0x20] sm:$0xff]
    %v31 = vld [vmem:[%s1 + $0x28] sm:$0xff]
    %v32 = vld [vmem:[%s1 + $0x30] sm:$0xff]
    %v33 = vld [vmem:[%s1 + $0x38] sm:$0xff]
    %v34 = vld [vmem:[%s1 + $0x40] sm:$0xff]
    %v35 = vld [vmem:[%s1 + $0x48] sm:$0xff]
    %v36 = vld [vmem:[%s1 + $0x50] sm:$0xff]
    %v37 = vld [vmem:[%s1 + $0x58] sm:$0xff]
    %v38 = vld [vmem:[%s1 + $0x60] sm:$0xff]
    %v39 = vld [vmem:[%s1 + $0x68] sm:$0xff]
    %v40 = vld [vmem:[%s1 + $0x70] sm:$0xff]
    %v41 = vld [vmem:[%s1 + $0x78] sm:$0xff]
    %v42 = vld [vmem:[%s1 + $0x80] sm:$0xff]
    %v43 = vld [vmem:[%s1 + $0x88] sm:$0xff]
    %v44 = vld [vmem:[%s1 + $0x90] sm:$0xff]
    %v45 = vld [vmem:[%s1 + $0x98] sm:$0xff]
    %v46 = vld [vmem:[%s1 + $0xa0] sm:$0xff]
    %v47 = vld [vmem:[%s1 + $0xa8] sm:$0xff]
    %v48 = vld [vmem:[%s1 + $0xb0] sm:$0xff]
    %v49 = vld [vmem:[%s1 + $0xb8] sm:$0xff]
    %v50 = vld [vmem:[%s1 + $0xc0] sm:$0xff]
    %v51 = vld [vmem:[%s1 + $0xc8] sm:$0xff]
    %v52 = vld [vmem:[%s1 + $0xd0] sm:$0xff]
    %v53 = vld [vmem:[%s1 + $0xd8] sm:$0xff]
    %v54 = vld [vmem:[%s1 + $0xe0] sm:$0xff]
    %v55 = vld [vmem:[%s1 + $0xe8] sm:$0xff]
    %v56 = vld [vmem:[%s1 + $0xf0] sm:$0xff]
    %v57 = vld [vmem:[%s1 + $0xf8] sm:$0xff]
    %v58 = vld [vmem:[%s1 + $0x100] sm:$0xff]
    %v59 = vld [vmem:[%s1 + $0x108] sm:$0xff]
    %v60 = vld [vmem:[%s1 + $0x110] sm:$0xff]
    %v61 = vld [vmem:[%s1 + $0x118] sm:$0xff]
    %v62 = vld [vmem:[%s1 + $0x120] sm:$0xff]
    %v63 = vld [vmem:[%s1 + $0x128] sm:$0xff]
    %v64 = vld [vmem:[%s1 + $0x130] sm:$0xff]
    %v65 = vld [vmem:[%s1 + $0x138] sm:$0xff]
    %v66 = vld [vmem:[%s1 + $0x140] sm:$0xff]
    %v67 = vld [vmem:[%s1 + $0x148] sm:$0xff]
    %v68 = vld [vmem:[%s1 + $0x150] sm:$0xff]
    %v69 = vld [vmem:[%s1 + $0x158] sm:$0xff]
    %v70 = vld [vmem:[%s1 + $0x160] sm:$0xff]
    %v71 = vld [vmem:[%s1 + $0x168] sm:$0xff]
    %v72 = vld [vmem:[%s1 + $0x170] sm:$0xff]
    %v73 = vld [vmem:[%s1 + $0x178] sm:$0xff]
    %v74 = vld [vmem:[%s1 + $0x180] sm:$0xff]
    %v75 = vld [vmem:[%s1 + $0x188] sm:$0xff]
    %v76 = vld [vmem:[%s1 + $0x190] sm:$0xff]
    %v77 = vld [vmem:[%s1 + $0x198] sm:$0xff]
    %v78 = vld [vmem:[%s1 + $0x1a0] sm:$0xff]
    %v79 = vld [vmem:[%s1 + $0x1a8] sm:$0xff]
    %v80 = vld [vmem:[%s1 + $0x1b0] sm:$0xff]
    %v81 = vld [vmem:[%s1 + $0x1b8] sm:$0xff]
    %v82 = vld [vmem:[%s1 + $0x1c0] sm:$0xff]
    %v83 = vld [vmem:[%s1 + $0x1c8] sm:$0xff]
    %v84 = vld [vmem:[%s1 + $0x1d0] sm:$0xff]
    %v85 = vld [vmem:[%s1 + $0x1d8] sm:$0xff]
    %v86 = vld [vmem:[%s1 + $0x1e0] sm:$0xff]
    %v87 = vld [vmem:[%s1 + $0x1e8] sm:$0xff]
    %v88 = vld [vmem:[%s1 + $0x1f0] sm:$0xff]
    %v89 = vld [vmem:[%s1 + $0x1f8] sm:$0xff]
    %v90 = vld [vmem:[%s1 + $0x200] sm:$0xff]
    %v91 = vld [vmem:[%s1 + $0x208] sm:$0xff]
    %v92 = vld [vmem:[%s1 + $0x210] sm:$0xff]
    %v93 = vld [vmem:[%s1 + $0x218] sm:$0xff]
    %v94 = vld [vmem:[%s1 + $0x220] sm:$0xff]
    %v95 = vld [vmem:[%s1 + $0x228] sm:$0xff]
    %v96 = vld [vmem:[%s1 + $0x230] sm:$0xff]
    %v97 = vld [vmem:[%s1 + $0x238] sm:$0xff]
    %v98 = vld [vmem:[%s1 + $0x240] sm:$0xff]
    %v99 = vld [vmem:[%s1 + $0x248] sm:$0xff]
    %v100 = vld [vmem:[%s1 + $0x250] sm:$0xff]
    %v101 = vld [vmem:[%s1 + $0x258] sm:$0xff]
    %v102 = vld [vmem:[%s1 + $0x260] sm:$0xff]
    %v103 = vld [vmem:[%s1 + $0x268] sm:$0xff]
    %v104 = vld [vmem:[%s1 + $0x270] sm:$0xff]
    %v105 = vld [vmem:[%s1 + $0x278] sm:$0xff]
    %v106 = vld [vmem:[%s1 + $0x280] sm:$0xff]
    %v107 = vld [vmem:[%s1 + $0x288] sm:$0xff]
    %v108 = vld [vmem:[%s1 + $0x290] sm:$0xff]
    %v109 = vld [vmem:[%s1 + $0x298] sm:$0xff]
    %v110 = vld [vmem:[%s1 + $0x2a0] sm:$0xff]
    %v111 = vld [vmem:[%s1 + $0x2a8] sm:$0xff]
    %v112 = vld [vmem:[%s1 + $0x2b0] sm:$0xff]
    %v113 = vld [vmem:[%s1 + $0x2b8] sm:$0xff]
    %v114 = vld [vmem:[%s1 + $0x2c0] sm:$0xff]
    %v115 = vld [vmem:[%s1 + $0x2c8] sm:$0xff]
    %v116 = vld [vmem:[%s1 + $0x2d0] sm:$0xff]
    %v117 = vld [vmem:[%s1 + $0x2d8] sm:$0xff]
    %v118 = vld [vmem:[%s1 + $0x2e0] sm:$0xff]
    %v119 = vld [vmem:[%s1 + $0x2e8] sm:$0xff]
    %v120 = vld [vmem:[%s1 + $0x2f0] sm:$0xff]
    %v121 = vld [vmem:[%s1 + $0x2f8] sm:$0xff]
    %v122 = vld [vmem:[%s1 + $0x300] sm:$0xff]
    %v123 = vld [vmem:[%s1 + $0x308] sm:$0xff]
    %v124 = vld [vmem:[%s1 + $0x310] sm:$0xff]
    %v125 = vld [vmem:[%s1 + $0x318] sm:$0xff]
    %v126 = vld [vmem:[%s1 + $0x320] sm:$0xff]
    %v127 = vld [vmem:[%s1 + $0x328] sm:$0xff]
    %v128 = vld [vmem:[%s1 + $0x330] sm:$0xff]
    %v129 = vld [vmem:[%s1 + $0x338] sm:$0xff]
    %v130 = vld [vmem:[%s1 + $0x340] sm:$0xff]
    %v131 = vld [vmem:[%s1 + $0x348] sm:$0xff]
    %v132 = vld [vmem:[%s1 + $0x350] sm:$0xff]
    %v133 = vld [vmem:[%s1 + $0x358] sm:$0xff]
    %v134 = vld [vmem:[%s1 + $0x360] sm:$0xff]
    %v135 = vld [vmem:[%s1 + $0x368] sm:$0xff]
    %v136 = vld [vmem:[%s1 + $0x370] sm:$0xff]
    %v137 = vld [vmem:[%s1 + $0x378] sm:$0xff]
    %v138 = vld [vmem:[%s1 + $0x380] sm:$0xff]
    %v139 = vld [vmem:[%s1 + $0x388] sm:$0xff]
    %v140 = vld [vmem:[%s1 + $0x390] sm:$0xff]
    %v141 = vld [vmem:[%s1 + $0x398] sm:$0xff]
    %v142 = vld [vmem:[%s1 + $0x3a0] sm:$0xff]
    %v143 = vld [vmem:[%s1 + $0x3a8] sm:$0xff]
    %v144 = vld [vmem:[%s1 + $0x3b0] sm:$0xff]
    %v145 = vld [vmem:[%s1 + $0x3b8] sm:$0xff]
    %v146 = vld [vmem:[%s1 + $0x3c0] sm:$0xff]
    %v147 = vld [vmem:[%s1 + $0x3c8] sm:$0xff]
    %v148 = vld [vmem:[%s1 + $0x3d0] sm:$0xff]
    %v149 = vld [vmem:[%s1 + $0x3d8] sm:$0xff]
    %v150 = vld [vmem:[%s1 + $0x3e0] sm:$0xff]
    %v151 = vld [vmem:[%s1 + $0x3e8] sm:$0xff]
    %v152 = vld [vmem:[%s1 + $0x3f0] sm:$0xff]
    %v153 = vld [vmem:[%s1 + $0x3f8] sm:$0xff]
    %v154 = vld [vmem:[%s1 + $0x400] sm:$0xff]
    %v155 = vld [vmem:[%s1 + $0x408] sm:$0xff]
    %v156 = vld [vmem:[%s1 + $0x410] sm:$0xff]
    %v157 = vld [vmem:[%s1 + $0x418] sm:$0xff]
    %v158 = vld [vmem:[%s1 + $0x420] sm:$0xff]
    %v159 = vld [vmem:[%s1 + $0x428] sm:$0xff]
    %v160 = vld [vmem:[%s1 + $0x430] sm:$0xff]
    %v161 = vld [vmem:[%s1 + $0x438] sm:$0xff]
    %v162 = vld [vmem:[%s1 + $0x440] sm:$0xff]
    %v163 = vld [vmem:[%s1 + $0x448] sm:$0xff]
    %v164 = vld [vmem:[%s1 + $0x450] sm:$0xff]
    %v165 = vld [vmem:[%s1 + $0x458] sm:$0xff]
    %v166 = vld [vmem:[%s1 + $0x460] sm:$0xff]
    %v167 = vld [vmem:[%s1 + $0x468] sm:$0xff]
    %v168 = vld [vmem:[%s1 + $0x470] sm:$0xff]
    %v169 = vld [vmem:[%s1 + $0x478] sm:$0xff]
    %v170 = vld [vmem:[%s1 + $0x480] sm:$0xff]
    %v171 = vld [vmem:[%s1 + $0x488] sm:$0xff]
    %v172 = vld [vmem:[%s1 + $0x490] sm:$0xff]
    %v173 = vld [vmem:[%s1 + $0x498] sm:$0xff]
    %v174 = vld [vmem:[%s1 + $0x4a0] sm:$0xff]
    %v175 = vld [vmem:[%s1 + $0x4a8] sm:$0xff]
    %v176 = vld [vmem:[%s1 + $0x4b0] sm:$0xff]
    %v177 = vld [vmem:[%s1 + $0x4b8] sm:$0xff]
    %v178 = vld [vmem:[%s1 + $0x4c0] sm:$0xff]
    %v179 = vld [vmem:[%s1 + $0x4c8] sm:$0xff]
    %v180 = vld [vmem:[%s1 + $0x4d0] sm:$0xff]
    %v181 = vld [vmem:[%s1 + $0x4d8] sm:$0xff]
    %v182 = vld [vmem:[%s1 + $0x4e0] sm:$0xff]
    %v183 = vld [vmem:[%s1 + $0x4e8] sm:$0xff]
    %v184 = vld [vmem:[%s1 + $0x4f0] sm:$0xff]
    %v185 = vld [vmem:[%s1 + $0x4f8] sm:$0xff]
    %v186 = vld [vmem:[%s1 + $0x500] sm:$0xff]
    %v187 = vld [vmem:[%s1 + $0x508] sm:$0xff]
    %v188 = vld [vmem:[%s1 + $0x510] sm:$0xff]
    %v189 = vld [vmem:[%s1 + $0x518] sm:$0xff]
    %v190 = vld [vmem:[%s1 + $0x520] sm:$0xff]
    %v191 = vld [vmem:[%s1 + $0x528] sm:$0xff]
    %v192 = vld [vmem:[%s1 + $0x530] sm:$0xff]
    %v193 = vld [vmem:[%s1 + $0x538] sm:$0xff]
    %v194 = vld [vmem:[%s1 + $0x540] sm:$0xff]
    %v195 = vld [vmem:[%s1 + $0x548] sm:$0xff]
    %v196 = vld [vmem:[%s1 + $0x550] sm:$0xff]
    %v197 = vld [vmem:[%s1 + $0x558] sm:$0xff]
    %v198 = vld [vmem:[%s1 + $0x560] sm:$0xff]
    %v199 = vld [vmem:[%s1 + $0x568] sm:$0xff]
    %v200 = vld [vmem:[%s1 + $0x570] sm:$0xff]
    %v201 = vld [vmem:[%s1 + $0x578] sm:$0xff]
    %v202 = vld [vmem:[%s1 + $0x580] sm:$0xff]
    %v203 = vld [vmem:[%s1 + $0x588] sm:$0xff]
    %v204 = vld [vmem:[%s1 + $0x590] sm:$0xff]
    %v205 = vld [vmem:[%s1 + $0x598] sm:$0xff]
    %v206 = vld [vmem:[%s1 + $0x5a0] sm:$0xff]
    %v207 = vld [vmem:[%s1 + $0x5a8] sm:$0xff]
    %v208 = vld [vmem:[%s1 + $0x5b0] sm:$0xff]
    %v209 = vld [vmem:[%s1 + $0x5b8] sm:$0xff]
    %v210 = vld [vmem:[%s1 + $0x5c0] sm:$0xff]
    %v211 = vld [vmem:[%s1 + $0x5c8] sm:$0xff]
    %v212 = vld [vmem:[%s1 + $0x5d0] sm:$0xff]
    %v213 = vld [vmem:[%s1 + $0x5d8] sm:$0xff]
    %v214 = vld [vmem:[%s1 + $0x5e0] sm:$0xff]
    %v215 = vld [vmem:[%s1 + $0x5e8] sm:$0xff]
    %v216 = vld [vmem:[%s1 + $0x5f0] sm:$0xff]
    %v217 = vld [vmem:[%s1 + $0x5f8] sm:$0xff]
    %v218 = vld [vmem:[%s1 + $0x600] sm:$0xff]
    %v219 = vld [vmem:[%s1 + $0x608] sm:$0xff]
    %v220 = vld [vmem:[%s1 + $0x610] sm:$0xff]
    %v221 = vld [vmem:[%s1 + $0x618] sm:$0xff]
    %v222 = vld [vmem:[%s1 + $0x620] sm:$0xff]
    %v223 = vld [vmem:[%s1 + $0x628] sm:$0xff]
    %v224 = vld [vmem:[%s1 + $0x630] sm:$0xff]
    %v225 = vld [vmem:[%s1 + $0x638] sm:$0xff]
    %v226 = vld [vmem:[%s1 + $0x640] sm:$0xff]
    %v227 = vld [vmem:[%s1 + $0x648] sm:$0xff]
    %v228 = vld [vmem:[%s1 + $0x650] sm:$0xff]
    %v229 = vld [vmem:[%s1 + $0x658] sm:$0xff]
    %v230 = vld [vmem:[%s1 + $0x660] sm:$0xff]
    %v231 = vld [vmem:[%s1 + $0x668] sm:$0xff]
    %v232 = vld [vmem:[%s1 + $0x670] sm:$0xff]
    %v233 = vld [vmem:[%s1 + $0x678] sm:$0xff]
    %v234 = vld [vmem:[%s1 + $0x680] sm:$0xff]
    %v235 = vld [vmem:[%s1 + $0x688] sm:$0xff]
    %v236 = vld [vmem:[%s1 + $0x690] sm:$0xff]
    %v237 = vld [vmem:[%s1 + $0x698] sm:$0xff]
    %v238 = vld [vmem:[%s1 + $0x6a0] sm:$0xff]
    %v239 = vld [vmem:[%s1 + $0x6a8] sm:$0xff]
    %v240 = vld [vmem:[%s1 + $0x6b0] sm:$0xff]
    %v241 = vld [vmem:[%s1 + $0x6b8] sm:$0xff]
    %v242 = vld [vmem:[%s1 + $0x6c0] sm:$0xff]
    %v243 = vld [vmem:[%s1 + $0x6c8] sm:$0xff]
    %v244 = vld [vmem:[%s1 + $0x6d0] sm:$0xff]
    %v245 = vld [vmem:[%s1 + $0x6d8] sm:$0xff]
    %v246 = vld [vmem:[%s1 + $0x6e0] sm:$0xff]
    %v247 = vld [vmem:[%s1 + $0x6e8] sm:$0xff]
    %v248 = vld [vmem:[%s1 + $0x6f0] sm:$0xff]
    %v249 = vld [vmem:[%s1 + $0x6f8] sm:$0xff]
    %v250 = vld [vmem:[%s1 + $0x700] sm:$0xff]
    %v251 = vld [vmem:[%s1 + $0x708] sm:$0xff]
    %v252 = vld [vmem:[%s1 + $0x710] sm:$0xff]
    %v253 = vld [vmem:[%s1 + $0x718] sm:$0xff]
    %v254 = vld [vmem:[%s1 + $0x720] sm:$0xff]
    %v255 = vld [vmem:[%s1 + $0x728] sm:$0xff]
    %v256 = vld [vmem:[%s1 + $0x730] sm:$0xff]
    %v257 = vld [vmem:[%s1 + $0x738] sm:$0xff]
    %v258 = vld [vmem:[%s1 + $0x740] sm:$0xff]
    %v259 = vld [vmem:[%s1 + $0x748] sm:$0xff]
    %v260 = vld [vmem:[%s1 + $0x750] sm:$0xff]
    %v261 = vld [vmem:[%s1 + $0x758] sm:$0xff]
    %v262 = vld [vmem:[%s1 + $0x760] sm:$0xff]
    %v263 = vld [vmem:[%s1 + $0x768] sm:$0xff]
    %v264 = vld [vmem:[%s1 + $0x770] sm:$0xff]
    %v265 = vld [vmem:[%s1 + $0x778] sm:$0xff]
    %v266 = vld [vmem:[%s1 + $0x780] sm:$0xff]
    %v267 = vld [vmem:[%s1 + $0x788] sm:$0xff]
    %v268 = vld [vmem:[%s1 + $0x790] sm:$0xff]
    %v269 = vld [vmem:[%s1 + $0x798] sm:$0xff]
    %v270 = vld [vmem:[%s1 + $0x7a0] sm:$0xff]
    %v271 = vld [vmem:[%s1 + $0x7a8] sm:$0xff]
    %v272 = vld [vmem:[%s1 + $0x7b0] sm:$0xff]
    %v273 = vld [vmem:[%s1 + $0x7b8] sm:$0xff]
    %v274 = vld [vmem:[%s1 + $0x7c0] sm:$0xff]
    %v275 = vld [vmem:[%s1 + $0x7c8] sm:$0xff]
    %v276 = vld [vmem:[%s1 + $0x7d0] sm:$0xff]
    %v277 = vld [vmem:[%s1 + $0x7d8] sm:$0xff]
    %v278 = vld [vmem:[%s1 + $0x7e0] sm:$0xff]
    %v279 = vld [vmem:[%s1 + $0x7e8] sm:$0xff]
    %v280 = vld [vmem:[%s1 + $0x7f0] sm:$0xff]
    %v281 = vld [vmem:[%s1 + $0x7f8] sm:$0xff]
    %v282 = vld [vmem:[%s1 + $0x800] sm:$0xff]
    %v283 = vld [vmem:[%s1 + $0x808] sm:$0xff]
    %v284 = vld [vmem:[%s1 + $0x810] sm:$0xff]
    %v285 = vld [vmem:[%s1 + $0x818] sm:$0xff]
    %v286 = vld [vmem:[%s1 + $0x820] sm:$0xff]
    %v287 = vld [vmem:[%s1 + $0x828] sm:$0xff]
    %v288 = vld [vmem:[%s1 + $0x830] sm:$0xff]
    %v289 = vld [vmem:[%s1 + $0x838] sm:$0xff]
    %v290 = vld [vmem:[%s1 + $0x840] sm:$0xff]
    %v291 = vld [vmem:[%s1 + $0x848] sm:$0xff]
    %v292 = vld [vmem:[%s1 + $0x850] sm:$0xff]
    %v293 = vld [vmem:[%s1 + $0x858] sm:$0xff]
    %v294 = vld [vmem:[%s1 + $0x860] sm:$0xff]
    %v295 = vld [vmem:[%s1 + $0x868] sm:$0xff]
    %v296 = vld [vmem:[%s1 + $0x870] sm:$0xff]
    %v297 = vld [vmem:[%s1 + $0x878] sm:$0xff]
    %v298 = vld [vmem:[%s1 + $0x880] sm:$0xff]
    %v299 = vld [vmem:[%s1 + $0x888] sm:$0xff]
    %v300 = vld [vmem:[%s1 + $0x890] sm:$0xff]
    %v301 = vld [vmem:[%s1 + $0x898] sm:$0xff]
    %v302 = vld [vmem:[%s1 + $0x8a0] sm:$0xff]
    %v303 = vld [vmem:[%s1 + $0x8a8] sm:$0xff]
    %v304 = vld [vmem:[%s1 + $0x8b0] sm:$0xff]
    %v305 = vld [vmem:[%s1 + $0x8b8] sm:$0xff]
    %v306 = vld [vmem:[%s1 + $0x8c0] sm:$0xff]
    %v307 = vld [vmem:[%s1 + $0x8c8] sm:$0xff]
    %v308 = vld [vmem:[%s1 + $0x8d0] sm:$0xff]
    %v309 = vld [vmem:[%s1 + $0x8d8] sm:$0xff]
    %v310 = vld [vmem:[%s1 + $0x8e0] sm:$0xff]
    %v311 = vld [vmem:[%s1 + $0x8e8] sm:$0xff]
    %v312 = vld [vmem:[%s1 + $0x8f0] sm:$0xff]
    %v313 = vld [vmem:[%s1 + $0x8f8] sm:$0xff]
    %v314 = vld [vmem:[%s1 + $0x900] sm:$0xff]
    %v315 = vld [vmem:[%s1 + $0x908] sm:$0xff]
    %v316 = vld [vmem:[%s1 + $0x910] sm:$0xff]
    %v317 = vld [vmem:[%s1 + $0x918] sm:$0xff]
    %v318 = vld [vmem:[%s1 + $0x920] sm:$0xff]
    %v319 = vld [vmem:[%s1 + $0x928] sm:$0xff]
    %v320 = vld [vmem:[%s1 + $0x930] sm:$0xff]
    %v321 = vld [vmem:[%s1 + $0x938] sm:$0xff]
    %v322 = vld [vmem:[%s1 + $0x940] sm:$0xff]
    %v323 = vld [vmem:[%s1 + $0x948] sm:$0xff]
    %v324 = vld [vmem:[%s1 + $0x950] sm:$0xff]
    %v325 = vld [vmem:[%s1 + $0x958] sm:$0xff]
    %v326 = vld [vmem:[%s1 + $0x960] sm:$0xff]
    %v327 = vld [vmem:[%s1 + $0x968] sm:$0xff]
    %v328 = vld [vmem:[%s1 + $0x970] sm:$0xff]
    %v329 = vld [vmem:[%s1 + $0x978] sm:$0xff]
    %v330 = vld [vmem:[%s1 + $0x980] sm:$0xff]
    %v331 = vld [vmem:[%s1 + $0x988] sm:$0xff]
    %v332 = vld [vmem:[%s1 + $0x990] sm:$0xff]
    %v333 = vld [vmem:[%s1 + $0x998] sm:$0xff]
    %v334 = vld [vmem:[%s1 + $0x9a0] sm:$0xff]
    %v335 = vld [vmem:[%s1 + $0x9a8] sm:$0xff]
    %v336 = vld [vmem:[%s1 + $0x9b0] sm:$0xff]
    %v337 = vld [vmem:[%s1 + $0x9b8] sm:$0xff]
    %v338 = vld [vmem:[%s1 + $0x9c0] sm:$0xff]
    %v339 = vld [vmem:[%s1 + $0x9c8] sm:$0xff]
    %v340 = vld [vmem:[%s1 + $0x9d0] sm:$0xff]
    %v341 = vld [vmem:[%s1 + $0x9d8] sm:$0xff]
    %v342 = vld [vmem:[%s1 + $0x9e0] sm:$0xff]
    %v343 = vld [vmem:[%s1 + $0x9e8] sm:$0xff]
    %v344 = vld [vmem:[%s1 + $0x9f0] sm:$0xff]
    %v345 = vld [vmem:[%s1 + $0x9f8] sm:$0xff]
    %v346 = vld [vmem:[%s1 + $0xa00] sm:$0xff]
    %v347 = vld [vmem:[%s1 + $0xa08] sm:$0xff]
    %v348 = vld [vmem:[%s1 + $0xa10] sm:$0xff]
    %v349 = vld [vmem:[%s1 + $0xa18] sm:$0xff]
    %v350 = vld [vmem:[%s1 + $0xa20] sm:$0xff]
    %v351 = vld [vmem:[%s1 + $0xa28] sm:$0xff]
    %v352 = vld [vmem:[%s1 + $0xa30] sm:$0xff]
    %v353 = vld [vmem:[%s1 + $0xa38] sm:$0xff]
    %v354 = vld [vmem:[%s1 + $0xa40] sm:$0xff]
    %v355 = vld [vmem:[%s1 + $0xa48] sm:$0xff]
    %v356 = vld [vmem:[%s1 + $0xa50] sm:$0xff]
    %v357 = vld [vmem:[%s1 + $0xa58] sm:$0xff]
    %v358 = vld [vmem:[%s1 + $0xa60] sm:$0xff]
    %v359 = vld [vmem:[%s1 + $0xa68] sm:$0xff]
    %v360 = vld [vmem:[%s1 + $0xa70] sm:$0xff]
    %v361 = vld [vmem:[%s1 + $0xa78] sm:$0xff]
    %v362 = vld [vmem:[%s1 + $0xa80] sm:$0xff]
    %v363 = vld [vmem:[%s1 + $0xa88] sm:$0xff]
    %v364 = vld [vmem:[%s1 + $0xa90] sm:$0xff]
    %v365 = vld [vmem:[%s1 + $0xa98] sm:$0xff]
    %v366 = vld [vmem:[%s1 + $0xaa0] sm:$0xff]
    %v367 = vld [vmem:[%s1 + $0xaa8] sm:$0xff]
    %v368 = vld [vmem:[%s1 + $0xab0] sm:$0xff]
    %v369 = vld [vmem:[%s1 + $0xab8] sm:$0xff]
    %v370 = vld [vmem:[%s1 + $0xac0] sm:$0xff]
    %v371 = vld [vmem:[%s1 + $0xac8] sm:$0xff]
    %v372 = vld [vmem:[%s1 + $0xad0] sm:$0xff]
    %v373 = vld [vmem:[%s1 + $0xad8] sm:$0xff]
    %v374 = vld [vmem:[%s1 + $0xae0] sm:$0xff]
    %v375 = vld [vmem:[%s1 + $0xae8] sm:$0xff]
    %v376 = vld [vmem:[%s1 + $0xaf0] sm:$0xff]
    %v377 = vld [vmem:[%s1 + $0xaf8] sm:$0xff]
    %v378 = vld [vmem:[%s1 + $0xb00] sm:$0xff]
    %v379 = vld [vmem:[%s1 + $0xb08] sm:$0xff]
    %v380 = vld [vmem:[%s1 + $0xb10] sm:$0xff]
    %v381 = vld [vmem:[%s1 + $0xb18] sm:$0xff]
    %v382 = vld [vmem:[%s1 + $0xb20] sm:$0xff]
    %v383 = vld [vmem:[%s1 + $0xb28] sm:$0xff]
    %v384 = vld [vmem:[%s1 + $0xb30] sm:$0xff]
    %v385 = vld [vmem:[%s1 + $0xb38] sm:$0xff]
    %v386 = vld [vmem:[%s1 + $0xb40] sm:$0xff]
    %v387 = vld [vmem:[%s1 + $0xb48] sm:$0xff]
    %v388 = vld [vmem:[%s1 + $0xb50] sm:$0xff]
    %v389 = vld [vmem:[%s1 + $0xb58] sm:$0xff]
    %v390 = vld [vmem:[%s1 + $0xb60] sm:$0xff]
    %v391 = vld [vmem:[%s1 + $0xb68] sm:$0xff]
    %v392 = vld [vmem:[%s1 + $0xb70] sm:$0xff]
    %v393 = vld [vmem:[%s1 + $0xb78] sm:$0xff]
    %v394 = vld [vmem:[%s1 + $0xb80] sm:$0xff]
    %v395 = vld [vmem:[%s1 + $0xb88] sm:$0xff]
    %v396 = vld [vmem:[%s1 + $0xb90] sm:$0xff]
    %v397 = vld [vmem:[%s1 + $0xb98] sm:$0xff]
    %v398 = vld [vmem:[%s1 + $0xba0] sm:$0xff]
    %v399 = vld [vmem:[%s1 + $0xba8] sm:$0xff]
    %v400 = vld [vmem:[%s1 + $0xbb0] sm:$0xff]
    %v401 = vld [vmem:[%s1 + $0xbb8] sm:$0xff]
    %v402 = vld [vmem:[%s1 + $0xbc0] sm:$0xff]
    %v403 = vld [vmem:[%s1 + $0xbc8] sm:$0xff]
    %v404 = vld [vmem:[%s1 + $0xbd0] sm:$0xff]
    %v405 = vld [vmem:[%s1 + $0xbd8] sm:$0xff]
    %v406 = vld [vmem:[%s1 + $0xbe0] sm:$0xff]
    %v407 = vld [vmem:[%s1 + $0xbe8] sm:$0xff]
    %v408 = vld [vmem:[%s1 + $0xbf0] sm:$0xff]
    %v409 = vld [vmem:[%s1 + $0xbf8] sm:$0xff]
    %v410 = vld [vmem:[%s1 + $0xc00] sm:$0xff]
    %v411 = vld [vmem:[%s1 + $0xc08] sm:$0xff]
    %v412 = vld [vmem:[%s1 + $0xc10] sm:$0xff]
    %v413 = vld [vmem:[%s1 + $0xc18] sm:$0xff]
    %v414 = vld [vmem:[%s1 + $0xc20] sm:$0xff]
    %v415 = vld [vmem:[%s1 + $0xc28] sm:$0xff]
    %v416 = vld [vmem:[%s1 + $0xc30] sm:$0xff]
    %v417 = vld [vmem:[%s1 + $0xc38] sm:$0xff]
    %v418 = vld [vmem:[%s1 + $0xc40] sm:$0xff]
    %v419 = vld [vmem:[%s1 + $0xc48] sm:$0xff]
    %v420 = vld [vmem:[%s1 + $0xc50] sm:$0xff]
    %v421 = vld [vmem:[%s1 + $0xc58] sm:$0xff]
    %v422 = vld [vmem:[%s1 + $0xc60] sm:$0xff]
    %v423 = vld [vmem:[%s1 + $0xc68] sm:$0xff]
    %v424 = vld [vmem:[%s1 + $0xc70] sm:$0xff]
    %v425 = vld [vmem:[%s1 + $0xc78] sm:$0xff]
    %v426 = vld [vmem:[%s2] sm:$0x3]
    %v428 = vlaneseq
    %v429 = vshrl.u32 %v428, 7
    %v430 = vsub.s32 0, %v429
    %v431 = vrot.slane %v426, %v430
    %v432 = vlaneseq
    %v433 = vshrl.u32 %v432, 7
    %v434 = vsub.s32 1, %v433
    %v435 = vrot.slane %v426, %v434
    %v442 = vcombine.high %v22, %v22
    %v444 = vunpack.c.l.s4 1966171168
    %v445 = vunpack.c.0.s8 %v444
    %v446 = vlaneseq
    %v447 = vshrl.u32 %v446, 7
    %v448 = vsub.s32 %v445, %v447
    %v449 = vrot.slane %v22, %v448
    %v451 = vunpack.c.l.s4 1966171168
    %v452 = vunpack.c.0.s8 %v451
    %v453 = vlaneseq
    %v454 = vshrl.u32 %v453, 7
    %v455 = vsub.s32 %v452, %v454
    %v456 = vrot.slane %v442, %v455
    %v457 = vcombine.high %v449, %v449
    %v458 = vcombine.high %v456, %v456
    %v460 = vunpack.c.l.s4 1966171168
    %v461 = vunpack.c.0.s8 %v460
    %v462 = vlaneseq
    %v463 = vshrl.u32 %v462, 7
    %v464 = vsub.s32 %v461, %v463
    %v465 = vrot.slane %v449, %v464
    %v467 = vunpack.c.l.s4 1966171168
    %v468 = vunpack.c.0.s8 %v467
    %v469 = vlaneseq
    %v470 = vshrl.u32 %v469, 7
    %v471 = vsub.s32 %v468, %v470
    %v472 = vrot.slane %v456, %v471
    %v474 = vunpack.c.l.s4 1966171168
    %v475 = vunpack.c.0.s8 %v474
    %v476 = vlaneseq
    %v477 = vshrl.u32 %v476, 7
    %v478 = vsub.s32 %v475, %v477
    %v479 = vrot.slane %v457, %v478
    %v481 = vunpack.c.l.s4 1966171168
    %v482 = vunpack.c.0.s8 %v481
    %v483 = vlaneseq
    %v484 = vshrl.u32 %v483, 7
    %v485 = vsub.s32 %v482, %v484
    %v486 = vrot.slane %v458, %v485
    %v487 = vcombine.high %v465, %v465
    %v488 = vcombine.high %v472, %v472
    %v489 = vcombine.high %v479, %v479
    %v490 = vcombine.high %v486, %v486
    %v491 = vcombine.high %v23, %v23
    %v493 = vunpack.c.l.s4 1966171168
    %v494 = vunpack.c.0.s8 %v493
    %v495 = vlaneseq
    %v496 = vshrl.u32 %v495, 7
    %v497 = vsub.s32 %v494, %v496
    %v498 = vrot.slane %v23, %v497
    %v500 = vunpack.c.l.s4 1966171168
    %v501 = vunpack.c.0.s8 %v500
    %v502 = vlaneseq
    %v503 = vshrl.u32 %v502, 7
    %v504 = vsub.s32 %v501, %v503
    %v505 = vrot.slane %v491, %v504
    %v506 = vcombine.high %v498, %v498
    %v507 = vcombine.high %v505, %v505
    %v509 = vunpack.c.l.s4 1966171168
    %v510 = vunpack.c.0.s8 %v509
    %v511 = vlaneseq
    %v512 = vshrl.u32 %v511, 7
    %v513 = vsub.s32 %v510, %v512
    %v514 = vrot.slane %v498, %v513
    %v516 = vunpack.c.l.s4 1966171168
    %v517 = vunpack.c.0.s8 %v516
    %v518 = vlaneseq
    %v519 = vshrl.u32 %v518, 7
    %v520 = vsub.s32 %v517, %v519
    %v521 = vrot.slane %v505, %v520
    %v523 = vunpack.c.l.s4 1966171168
    %v524 = vunpack.c.0.s8 %v523
    %v525 = vlaneseq
    %v526 = vshrl.u32 %v525, 7
    %v527 = vsub.s32 %v524, %v526
    %v528 = vrot.slane %v506, %v527
    %v530 = vunpack.c.l.s4 1966171168
    %v531 = vunpack.c.0.s8 %v530
    %v532 = vlaneseq
    %v533 = vshrl.u32 %v532, 7
    %v534 = vsub.s32 %v531, %v533
    %v535 = vrot.slane %v507, %v534
    %v536 = vcombine.high %v514, %v514
    %v537 = vcombine.high %v521, %v521
    %v538 = vcombine.high %v528, %v528
    %v539 = vcombine.high %v535, %v535
    %v540 = vcombine.high %v24, %v24
    %v542 = vunpack.c.l.s4 1966171168
    %v543 = vunpack.c.0.s8 %v542
    %v544 = vlaneseq
    %v545 = vshrl.u32 %v544, 7
    %v546 = vsub.s32 %v543, %v545
    %v547 = vrot.slane %v24, %v546
    %v549 = vunpack.c.l.s4 1966171168
    %v550 = vunpack.c.0.s8 %v549
    %v551 = vlaneseq
    %v552 = vshrl.u32 %v551, 7
    %v553 = vsub.s32 %v550, %v552
    %v554 = vrot.slane %v540, %v553
    %v555 = vcombine.high %v547, %v547
    %v556 = vcombine.high %v554, %v554
    %v558 = vunpack.c.l.s4 1966171168
    %v559 = vunpack.c.0.s8 %v558
    %v560 = vlaneseq
    %v561 = vshrl.u32 %v560, 7
    %v562 = vsub.s32 %v559, %v561
    %v563 = vrot.slane %v547, %v562
    %v565 = vunpack.c.l.s4 1966171168
    %v566 = vunpack.c.0.s8 %v565
    %v567 = vlaneseq
    %v568 = vshrl.u32 %v567, 7
    %v569 = vsub.s32 %v566, %v568
    %v570 = vrot.slane %v554, %v569
    %v572 = vunpack.c.l.s4 1966171168
    %v573 = vunpack.c.0.s8 %v572
    %v574 = vlaneseq
    %v575 = vshrl.u32 %v574, 7
    %v576 = vsub.s32 %v573, %v575
    %v577 = vrot.slane %v555, %v576
    %v579 = vunpack.c.l.s4 1966171168
    %v580 = vunpack.c.0.s8 %v579
    %v581 = vlaneseq
    %v582 = vshrl.u32 %v581, 7
    %v583 = vsub.s32 %v580, %v582
    %v584 = vrot.slane %v556, %v583
    %v585 = vcombine.high %v563, %v563
    %v586 = vcombine.high %v570, %v570
    %v587 = vcombine.high %v577, %v577
    %v588 = vcombine.high %v584, %v584
    %v590 = vunpack.c.l.s4 1966171168
    %v591 = vunpack.c.0.s8 %v590
    %v592 = vlaneseq
    %v593 = vshrl.u32 %v592, 7
    %v594 = vsub.s32 %v591, %v593
    %v595 = vrot.slane %v25, %v594
    %v597 = vunpack.c.l.s4 1966171168
    %v598 = vunpack.c.0.s8 %v597
    %v599 = vlaneseq
    %v600 = vshrl.u32 %v599, 7
    %v601 = vsub.s32 %v598, %v600
    %v602 = vrot.slane %v595, %v601
    %v1028 = vunpack.c.l.b16 %v26
    %v1029 = vunpack.c.h.b16 %v26
    %v1030 = vunpack.c.l.b16 %v27
    %v1031 = vunpack.c.h.b16 %v27
    %v1032 = vunpack.c.l.b16 %v28
    %v1033 = vunpack.c.h.b16 %v28
    %v1034 = vunpack.c.l.b16 %v29
    %v1035 = vunpack.c.h.b16 %v29
    %v1036 = vunpack.c.l.b16 %v30
    %v1037 = vunpack.c.h.b16 %v30
    %v1038 = vunpack.c.l.b16 %v31
    %v1039 = vunpack.c.h.b16 %v31
    %v1040 = vunpack.c.l.b16 %v32
    %v1041 = vunpack.c.h.b16 %v32
    %v1042 = vunpack.c.l.b16 %v33
    %v1043 = vunpack.c.h.b16 %v33
    %v1044 = vunpack.c.l.b16 %v34
    %v1045 = vunpack.c.h.b16 %v34
    %v1046 = vunpack.c.l.b16 %v35
    %v1047 = vunpack.c.h.b16 %v35
    %v1048 = vunpack.c.l.b16 %v36
    %v1049 = vunpack.c.h.b16 %v36
    %v1050 = vunpack.c.l.b16 %v37
    %v1051 = vunpack.c.h.b16 %v37
    %v1052 = vunpack.c.l.b16 %v38
    %v1053 = vunpack.c.h.b16 %v38
    %v1054 = vunpack.c.l.b16 %v39
    %v1055 = vunpack.c.h.b16 %v39
    %v1056 = vunpack.c.l.b16 %v40
    %v1057 = vunpack.c.h.b16 %v40
    %v1058 = vunpack.c.l.b16 %v41
    %v1059 = vunpack.c.h.b16 %v41
    %v1060 = vunpack.c.l.b16 %v42
    %v1061 = vunpack.c.h.b16 %v42
    %v1062 = vunpack.c.l.b16 %v43
    %v1063 = vunpack.c.h.b16 %v43
    %v1064 = vunpack.c.l.b16 %v44
    %v1065 = vunpack.c.h.b16 %v44
    %v1066 = vunpack.c.l.b16 %v45
    %v1067 = vunpack.c.h.b16 %v45
    %v1068 = vunpack.c.l.b16 %v46
    %v1069 = vunpack.c.h.b16 %v46
    %v1070 = vunpack.c.l.b16 %v47
    %v1071 = vunpack.c.h.b16 %v47
    %v1072 = vunpack.c.l.b16 %v48
    %v1073 = vunpack.c.h.b16 %v48
    %v1074 = vunpack.c.l.b16 %v49
    %v1075 = vunpack.c.h.b16 %v49
    %v1076 = vunpack.c.l.b16 %v50
    %v1077 = vunpack.c.h.b16 %v50
    %v1078 = vunpack.c.l.b16 %v51
    %v1079 = vunpack.c.h.b16 %v51
    %v1080 = vunpack.c.l.b16 %v52
    %v1081 = vunpack.c.h.b16 %v52
    %v1082 = vunpack.c.l.b16 %v53
    %v1083 = vunpack.c.h.b16 %v53
    %v1084 = vunpack.c.l.b16 %v54
    %v1085 = vunpack.c.h.b16 %v54
    %v1086 = vunpack.c.l.b16 %v55
    %v1087 = vunpack.c.h.b16 %v55
    %v1088 = vunpack.c.l.b16 %v56
    %v1089 = vunpack.c.h.b16 %v56
    %v1090 = vunpack.c.l.b16 %v57
    %v1091 = vunpack.c.h.b16 %v57
    %v1092 = vunpack.c.l.b16 %v58
    %v1093 = vunpack.c.h.b16 %v58
    %v1094 = vunpack.c.l.b16 %v59
    %v1095 = vunpack.c.h.b16 %v59
    %v1096 = vunpack.c.l.b16 %v60
    %v1097 = vunpack.c.h.b16 %v60
    %v1098 = vunpack.c.l.b16 %v61
    %v1099 = vunpack.c.h.b16 %v61
    %v1100 = vunpack.c.l.b16 %v62
    %v1101 = vunpack.c.h.b16 %v62
    %v1102 = vunpack.c.l.b16 %v63
    %v1103 = vunpack.c.h.b16 %v63
    %v1104 = vunpack.c.l.b16 %v64
    %v1105 = vunpack.c.h.b16 %v64
    %v1106 = vunpack.c.l.b16 %v65
    %v1107 = vunpack.c.h.b16 %v65
    %v1108 = vunpack.c.l.b16 %v66
    %v1109 = vunpack.c.h.b16 %v66
    %v1110 = vunpack.c.l.b16 %v67
    %v1111 = vunpack.c.h.b16 %v67
    %v1112 = vunpack.c.l.b16 %v68
    %v1113 = vunpack.c.h.b16 %v68
    %v1114 = vunpack.c.l.b16 %v69
    %v1115 = vunpack.c.h.b16 %v69
    %v1116 = vunpack.c.l.b16 %v70
    %v1117 = vunpack.c.h.b16 %v70
    %v1118 = vunpack.c.l.b16 %v71
    %v1119 = vunpack.c.h.b16 %v71
    %v1120 = vunpack.c.l.b16 %v72
    %v1121 = vunpack.c.h.b16 %v72
    %v1122 = vunpack.c.l.b16 %v73
    %v1123 = vunpack.c.h.b16 %v73
    %v1124 = vunpack.c.l.b16 %v74
    %v1125 = vunpack.c.h.b16 %v74
    %v1126 = vunpack.c.l.b16 %v75
    %v1127 = vunpack.c.h.b16 %v75
    %v1128 = vunpack.c.l.b16 %v76
    %v1129 = vunpack.c.h.b16 %v76
    %v1130 = vunpack.c.l.b16 %v77
    %v1131 = vunpack.c.h.b16 %v77
    %v1132 = vunpack.c.l.b16 %v78
    %v1133 = vunpack.c.h.b16 %v78
    %v1134 = vunpack.c.l.b16 %v79
    %v1135 = vunpack.c.h.b16 %v79
    %v1136 = vunpack.c.l.b16 %v80
    %v1137 = vunpack.c.h.b16 %v80
    %v1138 = vunpack.c.l.b16 %v81
    %v1139 = vunpack.c.h.b16 %v81
    %v1140 = vunpack.c.l.b16 %v82
    %v1141 = vunpack.c.h.b16 %v82
    %v1142 = vunpack.c.l.b16 %v83
    %v1143 = vunpack.c.h.b16 %v83
    %v1144 = vunpack.c.l.b16 %v84
    %v1145 = vunpack.c.h.b16 %v84
    %v1146 = vunpack.c.l.b16 %v85
    %v1147 = vunpack.c.h.b16 %v85
    %v1148 = vunpack.c.l.b16 %v86
    %v1149 = vunpack.c.h.b16 %v86
    %v1150 = vunpack.c.l.b16 %v87
    %v1151 = vunpack.c.h.b16 %v87
    %v1152 = vunpack.c.l.b16 %v88
    %v1153 = vunpack.c.h.b16 %v88
    %v1154 = vunpack.c.l.b16 %v89
    %v1155 = vunpack.c.h.b16 %v89
    %v1156 = vunpack.c.l.b16 %v90
    %v1157 = vunpack.c.h.b16 %v90
    %v1158 = vunpack.c.l.b16 %v91
    %v1159 = vunpack.c.h.b16 %v91
    %v1160 = vunpack.c.l.b16 %v92
    %v1161 = vunpack.c.h.b16 %v92
    %v1162 = vunpack.c.l.b16 %v93
    %v1163 = vunpack.c.h.b16 %v93
    %v1164 = vunpack.c.l.b16 %v94
    %v1165 = vunpack.c.h.b16 %v94
    %v1166 = vunpack.c.l.b16 %v95
    %v1167 = vunpack.c.h.b16 %v95
    %v1168 = vunpack.c.l.b16 %v96
    %v1169 = vunpack.c.h.b16 %v96
    %v1170 = vunpack.c.l.b16 %v97
    %v1171 = vunpack.c.h.b16 %v97
    %v1172 = vunpack.c.l.b16 %v98
    %v1173 = vunpack.c.h.b16 %v98
    %v1174 = vunpack.c.l.b16 %v99
    %v1175 = vunpack.c.h.b16 %v99
    %v1176 = vunpack.c.l.b16 %v100
    %v1177 = vunpack.c.h.b16 %v100
    %v1178 = vunpack.c.l.b16 %v101
    %v1179 = vunpack.c.h.b16 %v101
    %v1180 = vunpack.c.l.b16 %v102
    %v1181 = vunpack.c.h.b16 %v102
    %v1182 = vunpack.c.l.b16 %v103
    %v1183 = vunpack.c.h.b16 %v103
    %v1184 = vunpack.c.l.b16 %v104
    %v1185 = vunpack.c.h.b16 %v104
    %v1186 = vunpack.c.l.b16 %v105
    %v1187 = vunpack.c.h.b16 %v105
    %v1188 = vunpack.c.l.b16 %v106
    %v1189 = vunpack.c.h.b16 %v106
    %v1190 = vunpack.c.l.b16 %v107
    %v1191 = vunpack.c.h.b16 %v107
    %v1192 = vunpack.c.l.b16 %v108
    %v1193 = vunpack.c.h.b16 %v108
    %v1194 = vunpack.c.l.b16 %v109
    %v1195 = vunpack.c.h.b16 %v109
    %v1196 = vunpack.c.l.b16 %v110
    %v1197 = vunpack.c.h.b16 %v110
    %v1198 = vunpack.c.l.b16 %v111
    %v1199 = vunpack.c.h.b16 %v111
    %v1200 = vunpack.c.l.b16 %v112
    %v1201 = vunpack.c.h.b16 %v112
    %v1202 = vunpack.c.l.b16 %v113
    %v1203 = vunpack.c.h.b16 %v113
    %v1204 = vunpack.c.l.b16 %v114
    %v1205 = vunpack.c.h.b16 %v114
    %v1206 = vunpack.c.l.b16 %v115
    %v1207 = vunpack.c.h.b16 %v115
    %v1208 = vunpack.c.l.b16 %v116
    %v1209 = vunpack.c.h.b16 %v116
    %v1210 = vunpack.c.l.b16 %v117
    %v1211 = vunpack.c.h.b16 %v117
    %v1212 = vunpack.c.l.b16 %v118
    %v1213 = vunpack.c.h.b16 %v118
    %v1214 = vunpack.c.l.b16 %v119
    %v1215 = vunpack.c.h.b16 %v119
    %v1216 = vunpack.c.l.b16 %v120
    %v1217 = vunpack.c.h.b16 %v120
    %v1218 = vunpack.c.l.b16 %v121
    %v1219 = vunpack.c.h.b16 %v121
    %v1220 = vunpack.c.l.b16 %v122
    %v1221 = vunpack.c.h.b16 %v122
    %v1222 = vunpack.c.l.b16 %v123
    %v1223 = vunpack.c.h.b16 %v123
    %v1224 = vunpack.c.l.b16 %v124
    %v1225 = vunpack.c.h.b16 %v124
    %v1226 = vunpack.c.l.b16 %v125
    %v1227 = vunpack.c.h.b16 %v125
    %v1228 = vunpack.c.l.b16 %v126
    %v1229 = vunpack.c.h.b16 %v126
    %v1230 = vunpack.c.l.b16 %v127
    %v1231 = vunpack.c.h.b16 %v127
    %v1232 = vunpack.c.l.b16 %v128
    %v1233 = vunpack.c.h.b16 %v128
    %v1234 = vunpack.c.l.b16 %v129
    %v1235 = vunpack.c.h.b16 %v129
    %v1236 = vunpack.c.l.b16 %v130
    %v1237 = vunpack.c.h.b16 %v130
    %v1238 = vunpack.c.l.b16 %v131
    %v1239 = vunpack.c.h.b16 %v131
    %v1240 = vunpack.c.l.b16 %v132
    %v1241 = vunpack.c.h.b16 %v132
    %v1242 = vunpack.c.l.b16 %v133
    %v1243 = vunpack.c.h.b16 %v133
    %v1244 = vunpack.c.l.b16 %v134
    %v1245 = vunpack.c.h.b16 %v134
    %v1246 = vunpack.c.l.b16 %v135
    %v1247 = vunpack.c.h.b16 %v135
    %v1248 = vunpack.c.l.b16 %v136
    %v1249 = vunpack.c.h.b16 %v136
    %v1250 = vunpack.c.l.b16 %v137
    %v1251 = vunpack.c.h.b16 %v137
    %v1252 = vunpack.c.l.b16 %v138
    %v1253 = vunpack.c.h.b16 %v138
    %v1254 = vunpack.c.l.b16 %v139
    %v1255 = vunpack.c.h.b16 %v139
    %v1256 = vunpack.c.l.b16 %v140
    %v1257 = vunpack.c.h.b16 %v140
    %v1258 = vunpack.c.l.b16 %v141
    %v1259 = vunpack.c.h.b16 %v141
    %v1260 = vunpack.c.l.b16 %v142
    %v1261 = vunpack.c.h.b16 %v142
    %v1262 = vunpack.c.l.b16 %v143
    %v1263 = vunpack.c.h.b16 %v143
    %v1264 = vunpack.c.l.b16 %v144
    %v1265 = vunpack.c.h.b16 %v144
    %v1266 = vunpack.c.l.b16 %v145
    %v1267 = vunpack.c.h.b16 %v145
    %v1268 = vunpack.c.l.b16 %v146
    %v1269 = vunpack.c.h.b16 %v146
    %v1270 = vunpack.c.l.b16 %v147
    %v1271 = vunpack.c.h.b16 %v147
    %v1272 = vunpack.c.l.b16 %v148
    %v1273 = vunpack.c.h.b16 %v148
    %v1274 = vunpack.c.l.b16 %v149
    %v1275 = vunpack.c.h.b16 %v149
    %v1276 = vunpack.c.l.b16 %v150
    %v1277 = vunpack.c.h.b16 %v150
    %v1278 = vunpack.c.l.b16 %v151
    %v1279 = vunpack.c.h.b16 %v151
    %v1280 = vunpack.c.l.b16 %v152
    %v1281 = vunpack.c.h.b16 %v152
    %v1282 = vunpack.c.l.b16 %v153
    %v1283 = vunpack.c.h.b16 %v153
    %v1284 = vunpack.c.l.b16 %v154
    %v1285 = vunpack.c.h.b16 %v154
    %v1286 = vunpack.c.l.b16 %v155
    %v1287 = vunpack.c.h.b16 %v155
    %v1288 = vunpack.c.l.b16 %v156
    %v1289 = vunpack.c.h.b16 %v156
    %v1290 = vunpack.c.l.b16 %v157
    %v1291 = vunpack.c.h.b16 %v157
    %v1292 = vunpack.c.l.b16 %v158
    %v1293 = vunpack.c.h.b16 %v158
    %v1294 = vunpack.c.l.b16 %v159
    %v1295 = vunpack.c.h.b16 %v159
    %v1296 = vunpack.c.l.b16 %v160
    %v1297 = vunpack.c.h.b16 %v160
    %v1298 = vunpack.c.l.b16 %v161
    %v1299 = vunpack.c.h.b16 %v161
    %v1300 = vunpack.c.l.b16 %v162
    %v1301 = vunpack.c.h.b16 %v162
    %v1302 = vunpack.c.l.b16 %v163
    %v1303 = vunpack.c.h.b16 %v163
    %v1304 = vunpack.c.l.b16 %v164
    %v1305 = vunpack.c.h.b16 %v164
    %v1306 = vunpack.c.l.b16 %v165
    %v1307 = vunpack.c.h.b16 %v165
    %v1308 = vunpack.c.l.b16 %v166
    %v1309 = vunpack.c.h.b16 %v166
    %v1310 = vunpack.c.l.b16 %v167
    %v1311 = vunpack.c.h.b16 %v167
    %v1312 = vunpack.c.l.b16 %v168
    %v1313 = vunpack.c.h.b16 %v168
    %v1314 = vunpack.c.l.b16 %v169
    %v1315 = vunpack.c.h.b16 %v169
    %v1316 = vunpack.c.l.b16 %v170
    %v1317 = vunpack.c.h.b16 %v170
    %v1318 = vunpack.c.l.b16 %v171
    %v1319 = vunpack.c.h.b16 %v171
    %v1320 = vunpack.c.l.b16 %v172
    %v1321 = vunpack.c.h.b16 %v172
    %v1322 = vunpack.c.l.b16 %v173
    %v1323 = vunpack.c.h.b16 %v173
    %v1324 = vunpack.c.l.b16 %v174
    %v1325 = vunpack.c.h.b16 %v174
    %v1326 = vunpack.c.l.b16 %v175
    %v1327 = vunpack.c.h.b16 %v175
    %v1328 = vunpack.c.l.b16 %v176
    %v1329 = vunpack.c.h.b16 %v176
    %v1330 = vunpack.c.l.b16 %v177
    %v1331 = vunpack.c.h.b16 %v177
    %v1332 = vunpack.c.l.b16 %v178
    %v1333 = vunpack.c.h.b16 %v178
    %v1334 = vunpack.c.l.b16 %v179
    %v1335 = vunpack.c.h.b16 %v179
    %v1336 = vunpack.c.l.b16 %v180
    %v1337 = vunpack.c.h.b16 %v180
    %v1338 = vunpack.c.l.b16 %v181
    %v1339 = vunpack.c.h.b16 %v181
    %v1340 = vunpack.c.l.b16 %v182
    %v1341 = vunpack.c.h.b16 %v182
    %v1342 = vunpack.c.l.b16 %v183
    %v1343 = vunpack.c.h.b16 %v183
    %v1344 = vunpack.c.l.b16 %v184
    %v1345 = vunpack.c.h.b16 %v184
    %v1346 = vunpack.c.l.b16 %v185
    %v1347 = vunpack.c.h.b16 %v185
    %v1348 = vunpack.c.l.b16 %v186
    %v1349 = vunpack.c.h.b16 %v186
    %v1350 = vunpack.c.l.b16 %v187
    %v1351 = vunpack.c.h.b16 %v187
    %v1352 = vunpack.c.l.b16 %v188
    %v1353 = vunpack.c.h.b16 %v188
    %v1354 = vunpack.c.l.b16 %v189
    %v1355 = vunpack.c.h.b16 %v189
    %v1356 = vunpack.c.l.b16 %v190
    %v1357 = vunpack.c.h.b16 %v190
    %v1358 = vunpack.c.l.b16 %v191
    %v1359 = vunpack.c.h.b16 %v191
    %v1360 = vunpack.c.l.b16 %v192
    %v1361 = vunpack.c.h.b16 %v192
    %v1362 = vunpack.c.l.b16 %v193
    %v1363 = vunpack.c.h.b16 %v193
    %v1364 = vunpack.c.l.b16 %v194
    %v1365 = vunpack.c.h.b16 %v194
    %v1366 = vunpack.c.l.b16 %v195
    %v1367 = vunpack.c.h.b16 %v195
    %v1368 = vunpack.c.l.b16 %v196
    %v1369 = vunpack.c.h.b16 %v196
    %v1370 = vunpack.c.l.b16 %v197
    %v1371 = vunpack.c.h.b16 %v197
    %v1372 = vunpack.c.l.b16 %v198
    %v1373 = vunpack.c.h.b16 %v198
    %v1374 = vunpack.c.l.b16 %v199
    %v1375 = vunpack.c.h.b16 %v199
    %v1376 = vunpack.c.l.b16 %v200
    %v1377 = vunpack.c.h.b16 %v200
    %v1378 = vunpack.c.l.b16 %v201
    %v1379 = vunpack.c.h.b16 %v201
    %v1380 = vunpack.c.l.b16 %v202
    %v1381 = vunpack.c.h.b16 %v202
    %v1382 = vunpack.c.l.b16 %v203
    %v1383 = vunpack.c.h.b16 %v203
    %v1384 = vunpack.c.l.b16 %v204
    %v1385 = vunpack.c.h.b16 %v204
    %v1386 = vunpack.c.l.b16 %v205
    %v1387 = vunpack.c.h.b16 %v205
    %v1388 = vunpack.c.l.b16 %v206
    %v1389 = vunpack.c.h.b16 %v206
    %v1390 = vunpack.c.l.b16 %v207
    %v1391 = vunpack.c.h.b16 %v207
    %v1392 = vunpack.c.l.b16 %v208
    %v1393 = vunpack.c.h.b16 %v208
    %v1394 = vunpack.c.l.b16 %v209
    %v1395 = vunpack.c.h.b16 %v209
    %v1396 = vunpack.c.l.b16 %v210
    %v1397 = vunpack.c.h.b16 %v210
    %v1398 = vunpack.c.l.b16 %v211
    %v1399 = vunpack.c.h.b16 %v211
    %v1400 = vunpack.c.l.b16 %v212
    %v1401 = vunpack.c.h.b16 %v212
    %v1402 = vunpack.c.l.b16 %v213
    %v1403 = vunpack.c.h.b16 %v213
    %v1404 = vunpack.c.l.b16 %v214
    %v1405 = vunpack.c.h.b16 %v214
    %v1406 = vunpack.c.l.b16 %v215
    %v1407 = vunpack.c.h.b16 %v215
    %v1408 = vunpack.c.l.b16 %v216
    %v1409 = vunpack.c.h.b16 %v216
    %v1410 = vunpack.c.l.b16 %v217
    %v1411 = vunpack.c.h.b16 %v217
    %v1412 = vunpack.c.l.b16 %v218
    %v1413 = vunpack.c.h.b16 %v218
    %v1414 = vunpack.c.l.b16 %v219
    %v1415 = vunpack.c.h.b16 %v219
    %v1416 = vunpack.c.l.b16 %v220
    %v1417 = vunpack.c.h.b16 %v220
    %v1418 = vunpack.c.l.b16 %v221
    %v1419 = vunpack.c.h.b16 %v221
    %v1420 = vunpack.c.l.b16 %v222
    %v1421 = vunpack.c.h.b16 %v222
    %v1422 = vunpack.c.l.b16 %v223
    %v1423 = vunpack.c.h.b16 %v223
    %v1424 = vunpack.c.l.b16 %v224
    %v1425 = vunpack.c.h.b16 %v224
    %v1426 = vunpack.c.l.b16 %v225
    %v1427 = vunpack.c.h.b16 %v225
    %v1428 = vunpack.c.l.b16 %v226
    %v1429 = vunpack.c.h.b16 %v226
    %v1430 = vunpack.c.l.b16 %v227
    %v1431 = vunpack.c.h.b16 %v227
    %v1432 = vunpack.c.l.b16 %v228
    %v1433 = vunpack.c.h.b16 %v228
    %v1434 = vunpack.c.l.b16 %v229
    %v1435 = vunpack.c.h.b16 %v229
    %v1436 = vunpack.c.l.b16 %v230
    %v1437 = vunpack.c.h.b16 %v230
    %v1438 = vunpack.c.l.b16 %v231
    %v1439 = vunpack.c.h.b16 %v231
    %v1440 = vunpack.c.l.b16 %v232
    %v1441 = vunpack.c.h.b16 %v232
    %v1442 = vunpack.c.l.b16 %v233
    %v1443 = vunpack.c.h.b16 %v233
    %v1444 = vunpack.c.l.b16 %v234
    %v1445 = vunpack.c.h.b16 %v234
    %v1446 = vunpack.c.l.b16 %v235
    %v1447 = vunpack.c.h.b16 %v235
    %v1448 = vunpack.c.l.b16 %v236
    %v1449 = vunpack.c.h.b16 %v236
    %v1450 = vunpack.c.l.b16 %v237
    %v1451 = vunpack.c.h.b16 %v237
    %v1452 = vunpack.c.l.b16 %v238
    %v1453 = vunpack.c.h.b16 %v238
    %v1454 = vunpack.c.l.b16 %v239
    %v1455 = vunpack.c.h.b16 %v239
    %v1456 = vunpack.c.l.b16 %v240
    %v1457 = vunpack.c.h.b16 %v240
    %v1458 = vunpack.c.l.b16 %v241
    %v1459 = vunpack.c.h.b16 %v241
    %v1460 = vunpack.c.l.b16 %v242
    %v1461 = vunpack.c.h.b16 %v242
    %v1462 = vunpack.c.l.b16 %v243
    %v1463 = vunpack.c.h.b16 %v243
    %v1464 = vunpack.c.l.b16 %v244
    %v1465 = vunpack.c.h.b16 %v244
    %v1466 = vunpack.c.l.b16 %v245
    %v1467 = vunpack.c.h.b16 %v245
    %v1468 = vunpack.c.l.b16 %v246
    %v1469 = vunpack.c.h.b16 %v246
    %v1470 = vunpack.c.l.b16 %v247
    %v1471 = vunpack.c.h.b16 %v247
    %v1472 = vunpack.c.l.b16 %v248
    %v1473 = vunpack.c.h.b16 %v248
    %v1474 = vunpack.c.l.b16 %v249
    %v1475 = vunpack.c.h.b16 %v249
    %v1476 = vunpack.c.l.b16 %v250
    %v1477 = vunpack.c.h.b16 %v250
    %v1478 = vunpack.c.l.b16 %v251
    %v1479 = vunpack.c.h.b16 %v251
    %v1480 = vunpack.c.l.b16 %v252
    %v1481 = vunpack.c.h.b16 %v252
    %v1482 = vunpack.c.l.b16 %v253
    %v1483 = vunpack.c.h.b16 %v253
    %v1484 = vunpack.c.l.b16 %v254
    %v1485 = vunpack.c.h.b16 %v254
    %v1486 = vunpack.c.l.b16 %v255
    %v1487 = vunpack.c.h.b16 %v255
    %v1488 = vunpack.c.l.b16 %v256
    %v1489 = vunpack.c.h.b16 %v256
    %v1490 = vunpack.c.l.b16 %v257
    %v1491 = vunpack.c.h.b16 %v257
    %v1492 = vunpack.c.l.b16 %v258
    %v1493 = vunpack.c.h.b16 %v258
    %v1494 = vunpack.c.l.b16 %v259
    %v1495 = vunpack.c.h.b16 %v259
    %v1496 = vunpack.c.l.b16 %v260
    %v1497 = vunpack.c.h.b16 %v260
    %v1498 = vunpack.c.l.b16 %v261
    %v1499 = vunpack.c.h.b16 %v261
    %v1500 = vunpack.c.l.b16 %v262
    %v1501 = vunpack.c.h.b16 %v262
    %v1502 = vunpack.c.l.b16 %v263
    %v1503 = vunpack.c.h.b16 %v263
    %v1504 = vunpack.c.l.b16 %v264
    %v1505 = vunpack.c.h.b16 %v264
    %v1506 = vunpack.c.l.b16 %v265
    %v1507 = vunpack.c.h.b16 %v265
    %v1508 = vunpack.c.l.b16 %v266
    %v1509 = vunpack.c.h.b16 %v266
    %v1510 = vunpack.c.l.b16 %v267
    %v1511 = vunpack.c.h.b16 %v267
    %v1512 = vunpack.c.l.b16 %v268
    %v1513 = vunpack.c.h.b16 %v268
    %v1514 = vunpack.c.l.b16 %v269
    %v1515 = vunpack.c.h.b16 %v269
    %v1516 = vunpack.c.l.b16 %v270
    %v1517 = vunpack.c.h.b16 %v270
    %v1518 = vunpack.c.l.b16 %v271
    %v1519 = vunpack.c.h.b16 %v271
    %v1520 = vunpack.c.l.b16 %v272
    %v1521 = vunpack.c.h.b16 %v272
    %v1522 = vunpack.c.l.b16 %v273
    %v1523 = vunpack.c.h.b16 %v273
    %v1524 = vunpack.c.l.b16 %v274
    %v1525 = vunpack.c.h.b16 %v274
    %v1526 = vunpack.c.l.b16 %v275
    %v1527 = vunpack.c.h.b16 %v275
    %v1528 = vunpack.c.l.b16 %v276
    %v1529 = vunpack.c.h.b16 %v276
    %v1530 = vunpack.c.l.b16 %v277
    %v1531 = vunpack.c.h.b16 %v277
    %v1532 = vunpack.c.l.b16 %v278
    %v1533 = vunpack.c.h.b16 %v278
    %v1534 = vunpack.c.l.b16 %v279
    %v1535 = vunpack.c.h.b16 %v279
    %v1536 = vunpack.c.l.b16 %v280
    %v1537 = vunpack.c.h.b16 %v280
    %v1538 = vunpack.c.l.b16 %v281
    %v1539 = vunpack.c.h.b16 %v281
    %v1540 = vunpack.c.l.b16 %v282
    %v1541 = vunpack.c.h.b16 %v282
    %v1542 = vunpack.c.l.b16 %v283
    %v1543 = vunpack.c.h.b16 %v283
    %v1544 = vunpack.c.l.b16 %v284
    %v1545 = vunpack.c.h.b16 %v284
    %v1546 = vunpack.c.l.b16 %v285
    %v1547 = vunpack.c.h.b16 %v285
    %v1548 = vunpack.c.l.b16 %v286
    %v1549 = vunpack.c.h.b16 %v286
    %v1550 = vunpack.c.l.b16 %v287
    %v1551 = vunpack.c.h.b16 %v287
    %v1552 = vunpack.c.l.b16 %v288
    %v1553 = vunpack.c.h.b16 %v288
    %v1554 = vunpack.c.l.b16 %v289
    %v1555 = vunpack.c.h.b16 %v289
    %v1556 = vunpack.c.l.b16 %v290
    %v1557 = vunpack.c.h.b16 %v290
    %v1558 = vunpack.c.l.b16 %v291
    %v1559 = vunpack.c.h.b16 %v291
    %v1560 = vunpack.c.l.b16 %v292
    %v1561 = vunpack.c.h.b16 %v292
    %v1562 = vunpack.c.l.b16 %v293
    %v1563 = vunpack.c.h.b16 %v293
    %v1564 = vunpack.c.l.b16 %v294
    %v1565 = vunpack.c.h.b16 %v294
    %v1566 = vunpack.c.l.b16 %v295
    %v1567 = vunpack.c.h.b16 %v295
    %v1568 = vunpack.c.l.b16 %v296
    %v1569 = vunpack.c.h.b16 %v296
    %v1570 = vunpack.c.l.b16 %v297
    %v1571 = vunpack.c.h.b16 %v297
    %v1572 = vunpack.c.l.b16 %v298
    %v1573 = vunpack.c.h.b16 %v298
    %v1574 = vunpack.c.l.b16 %v299
    %v1575 = vunpack.c.h.b16 %v299
    %v1576 = vunpack.c.l.b16 %v300
    %v1577 = vunpack.c.h.b16 %v300
    %v1578 = vunpack.c.l.b16 %v301
    %v1579 = vunpack.c.h.b16 %v301
    %v1580 = vunpack.c.l.b16 %v302
    %v1581 = vunpack.c.h.b16 %v302
    %v1582 = vunpack.c.l.b16 %v303
    %v1583 = vunpack.c.h.b16 %v303
    %v1584 = vunpack.c.l.b16 %v304
    %v1585 = vunpack.c.h.b16 %v304
    %v1586 = vunpack.c.l.b16 %v305
    %v1587 = vunpack.c.h.b16 %v305
    %v1588 = vunpack.c.l.b16 %v306
    %v1589 = vunpack.c.h.b16 %v306
    %v1590 = vunpack.c.l.b16 %v307
    %v1591 = vunpack.c.h.b16 %v307
    %v1592 = vunpack.c.l.b16 %v308
    %v1593 = vunpack.c.h.b16 %v308
    %v1594 = vunpack.c.l.b16 %v309
    %v1595 = vunpack.c.h.b16 %v309
    %v1596 = vunpack.c.l.b16 %v310
    %v1597 = vunpack.c.h.b16 %v310
    %v1598 = vunpack.c.l.b16 %v311
    %v1599 = vunpack.c.h.b16 %v311
    %v1600 = vunpack.c.l.b16 %v312
    %v1601 = vunpack.c.h.b16 %v312
    %v1602 = vunpack.c.l.b16 %v313
    %v1603 = vunpack.c.h.b16 %v313
    %v1604 = vunpack.c.l.b16 %v314
    %v1605 = vunpack.c.h.b16 %v314
    %v1606 = vunpack.c.l.b16 %v315
    %v1607 = vunpack.c.h.b16 %v315
    %v1608 = vunpack.c.l.b16 %v316
    %v1609 = vunpack.c.h.b16 %v316
    %v1610 = vunpack.c.l.b16 %v317
    %v1611 = vunpack.c.h.b16 %v317
    %v1612 = vunpack.c.l.b16 %v318
    %v1613 = vunpack.c.h.b16 %v318
    %v1614 = vunpack.c.l.b16 %v319
    %v1615 = vunpack.c.h.b16 %v319
    %v1616 = vunpack.c.l.b16 %v320
    %v1617 = vunpack.c.h.b16 %v320
    %v1618 = vunpack.c.l.b16 %v321
    %v1619 = vunpack.c.h.b16 %v321
    %v1620 = vunpack.c.l.b16 %v322
    %v1621 = vunpack.c.h.b16 %v322
    %v1622 = vunpack.c.l.b16 %v323
    %v1623 = vunpack.c.h.b16 %v323
    %v1624 = vunpack.c.l.b16 %v324
    %v1625 = vunpack.c.h.b16 %v324
    %v1626 = vunpack.c.l.b16 %v325
    %v1627 = vunpack.c.h.b16 %v325
    %v1628 = vunpack.c.l.b16 %v326
    %v1629 = vunpack.c.h.b16 %v326
    %v1630 = vunpack.c.l.b16 %v327
    %v1631 = vunpack.c.h.b16 %v327
    %v1632 = vunpack.c.l.b16 %v328
    %v1633 = vunpack.c.h.b16 %v328
    %v1634 = vunpack.c.l.b16 %v329
    %v1635 = vunpack.c.h.b16 %v329
    %v1636 = vunpack.c.l.b16 %v330
    %v1637 = vunpack.c.h.b16 %v330
    %v1638 = vunpack.c.l.b16 %v331
    %v1639 = vunpack.c.h.b16 %v331
    %v1640 = vunpack.c.l.b16 %v332
    %v1641 = vunpack.c.h.b16 %v332
    %v1642 = vunpack.c.l.b16 %v333
    %v1643 = vunpack.c.h.b16 %v333
    %v1644 = vunpack.c.l.b16 %v334
    %v1645 = vunpack.c.h.b16 %v334
    %v1646 = vunpack.c.l.b16 %v335
    %v1647 = vunpack.c.h.b16 %v335
    %v1648 = vunpack.c.l.b16 %v336
    %v1649 = vunpack.c.h.b16 %v336
    %v1650 = vunpack.c.l.b16 %v337
    %v1651 = vunpack.c.h.b16 %v337
    %v1652 = vunpack.c.l.b16 %v338
    %v1653 = vunpack.c.h.b16 %v338
    %v1654 = vunpack.c.l.b16 %v339
    %v1655 = vunpack.c.h.b16 %v339
    %v1656 = vunpack.c.l.b16 %v340
    %v1657 = vunpack.c.h.b16 %v340
    %v1658 = vunpack.c.l.b16 %v341
    %v1659 = vunpack.c.h.b16 %v341
    %v1660 = vunpack.c.l.b16 %v342
    %v1661 = vunpack.c.h.b16 %v342
    %v1662 = vunpack.c.l.b16 %v343
    %v1663 = vunpack.c.h.b16 %v343
    %v1664 = vunpack.c.l.b16 %v344
    %v1665 = vunpack.c.h.b16 %v344
    %v1666 = vunpack.c.l.b16 %v345
    %v1667 = vunpack.c.h.b16 %v345
    %v1668 = vunpack.c.l.b16 %v346
    %v1669 = vunpack.c.h.b16 %v346
    %v1670 = vunpack.c.l.b16 %v347
    %v1671 = vunpack.c.h.b16 %v347
    %v1672 = vunpack.c.l.b16 %v348
    %v1673 = vunpack.c.h.b16 %v348
    %v1674 = vunpack.c.l.b16 %v349
    %v1675 = vunpack.c.h.b16 %v349
    %v1676 = vunpack.c.l.b16 %v350
    %v1677 = vunpack.c.h.b16 %v350
    %v1678 = vunpack.c.l.b16 %v351
    %v1679 = vunpack.c.h.b16 %v351
    %v1680 = vunpack.c.l.b16 %v352
    %v1681 = vunpack.c.h.b16 %v352
    %v1682 = vunpack.c.l.b16 %v353
    %v1683 = vunpack.c.h.b16 %v353
    %v1684 = vunpack.c.l.b16 %v354
    %v1685 = vunpack.c.h.b16 %v354
    %v1686 = vunpack.c.l.b16 %v355
    %v1687 = vunpack.c.h.b16 %v355
    %v1688 = vunpack.c.l.b16 %v356
    %v1689 = vunpack.c.h.b16 %v356
    %v1690 = vunpack.c.l.b16 %v357
    %v1691 = vunpack.c.h.b16 %v357
    %v1692 = vunpack.c.l.b16 %v358
    %v1693 = vunpack.c.h.b16 %v358
    %v1694 = vunpack.c.l.b16 %v359
    %v1695 = vunpack.c.h.b16 %v359
    %v1696 = vunpack.c.l.b16 %v360
    %v1697 = vunpack.c.h.b16 %v360
    %v1698 = vunpack.c.l.b16 %v361
    %v1699 = vunpack.c.h.b16 %v361
    %v1700 = vunpack.c.l.b16 %v362
    %v1701 = vunpack.c.h.b16 %v362
    %v1702 = vunpack.c.l.b16 %v363
    %v1703 = vunpack.c.h.b16 %v363
    %v1704 = vunpack.c.l.b16 %v364
    %v1705 = vunpack.c.h.b16 %v364
    %v1706 = vunpack.c.l.b16 %v365
    %v1707 = vunpack.c.h.b16 %v365
    %v1708 = vunpack.c.l.b16 %v366
    %v1709 = vunpack.c.h.b16 %v366
    %v1710 = vunpack.c.l.b16 %v367
    %v1711 = vunpack.c.h.b16 %v367
    %v1712 = vunpack.c.l.b16 %v368
    %v1713 = vunpack.c.h.b16 %v368
    %v1714 = vunpack.c.l.b16 %v369
    %v1715 = vunpack.c.h.b16 %v369
    %v1716 = vunpack.c.l.b16 %v370
    %v1717 = vunpack.c.h.b16 %v370
    %v1718 = vunpack.c.l.b16 %v371
    %v1719 = vunpack.c.h.b16 %v371
    %v1720 = vunpack.c.l.b16 %v372
    %v1721 = vunpack.c.h.b16 %v372
    %v1722 = vunpack.c.l.b16 %v373
    %v1723 = vunpack.c.h.b16 %v373
    %v1724 = vunpack.c.l.b16 %v374
    %v1725 = vunpack.c.h.b16 %v374
    %v1726 = vunpack.c.l.b16 %v375
    %v1727 = vunpack.c.h.b16 %v375
    %v1728 = vunpack.c.l.b16 %v376
    %v1729 = vunpack.c.h.b16 %v376
    %v1730 = vunpack.c.l.b16 %v377
    %v1731 = vunpack.c.h.b16 %v377
    %v1732 = vunpack.c.l.b16 %v378
    %v1733 = vunpack.c.h.b16 %v378
    %v1734 = vunpack.c.l.b16 %v379
    %v1735 = vunpack.c.h.b16 %v379
    %v1736 = vunpack.c.l.b16 %v380
    %v1737 = vunpack.c.h.b16 %v380
    %v1738 = vunpack.c.l.b16 %v381
    %v1739 = vunpack.c.h.b16 %v381
    %v1740 = vunpack.c.l.b16 %v382
    %v1741 = vunpack.c.h.b16 %v382
    %v1742 = vunpack.c.l.b16 %v383
    %v1743 = vunpack.c.h.b16 %v383
    %v1744 = vunpack.c.l.b16 %v384
    %v1745 = vunpack.c.h.b16 %v384
    %v1746 = vunpack.c.l.b16 %v385
    %v1747 = vunpack.c.h.b16 %v385
    %v1748 = vunpack.c.l.b16 %v386
    %v1749 = vunpack.c.h.b16 %v386
    %v1750 = vunpack.c.l.b16 %v387
    %v1751 = vunpack.c.h.b16 %v387
    %v1752 = vunpack.c.l.b16 %v388
    %v1753 = vunpack.c.h.b16 %v388
    %v1754 = vunpack.c.l.b16 %v389
    %v1755 = vunpack.c.h.b16 %v389
    %v1756 = vunpack.c.l.b16 %v390
    %v1757 = vunpack.c.h.b16 %v390
    %v1758 = vunpack.c.l.b16 %v391
    %v1759 = vunpack.c.h.b16 %v391
    %v1760 = vunpack.c.l.b16 %v392
    %v1761 = vunpack.c.h.b16 %v392
    %v1762 = vunpack.c.l.b16 %v393
    %v1763 = vunpack.c.h.b16 %v393
    %v1764 = vunpack.c.l.b16 %v394
    %v1765 = vunpack.c.h.b16 %v394
    %v1766 = vunpack.c.l.b16 %v395
    %v1767 = vunpack.c.h.b16 %v395
    %v1768 = vunpack.c.l.b16 %v396
    %v1769 = vunpack.c.h.b16 %v396
    %v1770 = vunpack.c.l.b16 %v397
    %v1771 = vunpack.c.h.b16 %v397
    %v1772 = vunpack.c.l.b16 %v398
    %v1773 = vunpack.c.h.b16 %v398
    %v1774 = vunpack.c.l.b16 %v399
    %v1775 = vunpack.c.h.b16 %v399
    %v1776 = vunpack.c.l.b16 %v400
    %v1777 = vunpack.c.h.b16 %v400
    %v1778 = vunpack.c.l.b16 %v401
    %v1779 = vunpack.c.h.b16 %v401
    %v1780 = vunpack.c.l.b16 %v402
    %v1781 = vunpack.c.h.b16 %v402
    %v1782 = vunpack.c.l.b16 %v403
    %v1783 = vunpack.c.h.b16 %v403
    %v1784 = vunpack.c.l.b16 %v404
    %v1785 = vunpack.c.h.b16 %v404
    %v1786 = vunpack.c.l.b16 %v405
    %v1787 = vunpack.c.h.b16 %v405
    %v1788 = vunpack.c.l.b16 %v406
    %v1789 = vunpack.c.h.b16 %v406
    %v1790 = vunpack.c.l.b16 %v407
    %v1791 = vunpack.c.h.b16 %v407
    %v1792 = vunpack.c.l.b16 %v408
    %v1793 = vunpack.c.h.b16 %v408
    %v1794 = vunpack.c.l.b16 %v409
    %v1795 = vunpack.c.h.b16 %v409
    %v1796 = vunpack.c.l.b16 %v410
    %v1797 = vunpack.c.h.b16 %v410
    %v1798 = vunpack.c.l.b16 %v411
    %v1799 = vunpack.c.h.b16 %v411
    %v1800 = vunpack.c.l.b16 %v412
    %v1801 = vunpack.c.h.b16 %v412
    %v1802 = vunpack.c.l.b16 %v413
    %v1803 = vunpack.c.h.b16 %v413
    %v1804 = vunpack.c.l.b16 %v414
    %v1805 = vunpack.c.h.b16 %v414
    %v1806 = vunpack.c.l.b16 %v415
    %v1807 = vunpack.c.h.b16 %v415
    %v1808 = vunpack.c.l.b16 %v416
    %v1809 = vunpack.c.h.b16 %v416
    %v1810 = vunpack.c.l.b16 %v417
    %v1811 = vunpack.c.h.b16 %v417
    %v1812 = vunpack.c.l.b16 %v418
    %v1813 = vunpack.c.h.b16 %v418
    %v1814 = vunpack.c.l.b16 %v419
    %v1815 = vunpack.c.h.b16 %v419
    %v1816 = vunpack.c.l.b16 %v420
    %v1817 = vunpack.c.h.b16 %v420
    %v1818 = vunpack.c.l.b16 %v421
    %v1819 = vunpack.c.h.b16 %v421
    %v1820 = vunpack.c.l.b16 %v422
    %v1821 = vunpack.c.h.b16 %v422
    %v1822 = vunpack.c.l.b16 %v423
    %v1823 = vunpack.c.h.b16 %v423
    %v1824 = vunpack.c.l.b16 %v424
    %v1825 = vunpack.c.h.b16 %v424
    %v1826 = vunpack.c.l.b16 %v425
    %v1827 = vunpack.c.h.b16 %v425
    %v1828 = vpack.c.b16 %v1030, %v1028
    %v1829 = vpack.c.b16 %v1031, %v1029
    %v1830 = vpack.c.b16 %v1034, %v1032
    %v1831 = vpack.c.b16 %v1035, %v1033
    %v1832 = vpack.c.b16 %v1038, %v1036
    %v1833 = vpack.c.b16 %v1039, %v1037
    %v1834 = vpack.c.b16 %v1042, %v1040
    %v1835 = vpack.c.b16 %v1043, %v1041
    %v1836 = vpack.c.b16 %v1046, %v1044
    %v1837 = vpack.c.b16 %v1047, %v1045
    %v1838 = vpack.c.b16 %v1050, %v1048
    %v1839 = vpack.c.b16 %v1051, %v1049
    %v1840 = vpack.c.b16 %v1054, %v1052
    %v1841 = vpack.c.b16 %v1055, %v1053
    %v1842 = vpack.c.b16 %v1058, %v1056
    %v1843 = vpack.c.b16 %v1059, %v1057
    %v1844 = vpack.c.b16 %v1062, %v1060
    %v1845 = vpack.c.b16 %v1063, %v1061
    %v1846 = vpack.c.b16 %v1066, %v1064
    %v1847 = vpack.c.b16 %v1067, %v1065
    %v1848 = vpack.c.b16 %v1070, %v1068
    %v1849 = vpack.c.b16 %v1071, %v1069
    %v1850 = vpack.c.b16 %v1074, %v1072
    %v1851 = vpack.c.b16 %v1075, %v1073
    %v1852 = vpack.c.b16 %v1078, %v1076
    %v1853 = vpack.c.b16 %v1079, %v1077
    %v1854 = vpack.c.b16 %v1082, %v1080
    %v1855 = vpack.c.b16 %v1083, %v1081
    %v1856 = vpack.c.b16 %v1086, %v1084
    %v1857 = vpack.c.b16 %v1087, %v1085
    %v1858 = vpack.c.b16 %v1090, %v1088
    %v1859 = vpack.c.b16 %v1091, %v1089
    %v1860 = vpack.c.b16 %v1094, %v1092
    %v1861 = vpack.c.b16 %v1095, %v1093
    %v1862 = vpack.c.b16 %v1098, %v1096
    %v1863 = vpack.c.b16 %v1099, %v1097
    %v1864 = vpack.c.b16 %v1102, %v1100
    %v1865 = vpack.c.b16 %v1103, %v1101
    %v1866 = vpack.c.b16 %v1106, %v1104
    %v1867 = vpack.c.b16 %v1107, %v1105
    %v1868 = vpack.c.b16 %v1110, %v1108
    %v1869 = vpack.c.b16 %v1111, %v1109
    %v1870 = vpack.c.b16 %v1114, %v1112
    %v1871 = vpack.c.b16 %v1115, %v1113
    %v1872 = vpack.c.b16 %v1118, %v1116
    %v1873 = vpack.c.b16 %v1119, %v1117
    %v1874 = vpack.c.b16 %v1122, %v1120
    %v1875 = vpack.c.b16 %v1123, %v1121
    %v1876 = vpack.c.b16 %v1126, %v1124
    %v1877 = vpack.c.b16 %v1127, %v1125
    %v1878 = vpack.c.b16 %v1130, %v1128
    %v1879 = vpack.c.b16 %v1131, %v1129
    %v1880 = vpack.c.b16 %v1134, %v1132
    %v1881 = vpack.c.b16 %v1135, %v1133
    %v1882 = vpack.c.b16 %v1138, %v1136
    %v1883 = vpack.c.b16 %v1139, %v1137
    %v1884 = vpack.c.b16 %v1142, %v1140
    %v1885 = vpack.c.b16 %v1143, %v1141
    %v1886 = vpack.c.b16 %v1146, %v1144
    %v1887 = vpack.c.b16 %v1147, %v1145
    %v1888 = vpack.c.b16 %v1150, %v1148
    %v1889 = vpack.c.b16 %v1151, %v1149
    %v1890 = vpack.c.b16 %v1154, %v1152
    %v1891 = vpack.c.b16 %v1155, %v1153
    %v1892 = vpack.c.b16 %v1158, %v1156
    %v1893 = vpack.c.b16 %v1159, %v1157
    %v1894 = vpack.c.b16 %v1162, %v1160
    %v1895 = vpack.c.b16 %v1163, %v1161
    %v1896 = vpack.c.b16 %v1166, %v1164
    %v1897 = vpack.c.b16 %v1167, %v1165
    %v1898 = vpack.c.b16 %v1170, %v1168
    %v1899 = vpack.c.b16 %v1171, %v1169
    %v1900 = vpack.c.b16 %v1174, %v1172
    %v1901 = vpack.c.b16 %v1175, %v1173
    %v1902 = vpack.c.b16 %v1178, %v1176
    %v1903 = vpack.c.b16 %v1179, %v1177
    %v1904 = vpack.c.b16 %v1182, %v1180
    %v1905 = vpack.c.b16 %v1183, %v1181
    %v1906 = vpack.c.b16 %v1186, %v1184
    %v1907 = vpack.c.b16 %v1187, %v1185
    %v1908 = vpack.c.b16 %v1190, %v1188
    %v1909 = vpack.c.b16 %v1191, %v1189
    %v1910 = vpack.c.b16 %v1194, %v1192
    %v1911 = vpack.c.b16 %v1195, %v1193
    %v1912 = vpack.c.b16 %v1198, %v1196
    %v1913 = vpack.c.b16 %v1199, %v1197
    %v1914 = vpack.c.b16 %v1202, %v1200
    %v1915 = vpack.c.b16 %v1203, %v1201
    %v1916 = vpack.c.b16 %v1206, %v1204
    %v1917 = vpack.c.b16 %v1207, %v1205
    %v1918 = vpack.c.b16 %v1210, %v1208
    %v1919 = vpack.c.b16 %v1211, %v1209
    %v1920 = vpack.c.b16 %v1214, %v1212
    %v1921 = vpack.c.b16 %v1215, %v1213
    %v1922 = vpack.c.b16 %v1218, %v1216
    %v1923 = vpack.c.b16 %v1219, %v1217
    %v1924 = vpack.c.b16 %v1222, %v1220
    %v1925 = vpack.c.b16 %v1223, %v1221
    %v1926 = vpack.c.b16 %v1226, %v1224
    %v1927 = vpack.c.b16 %v1227, %v1225
    %v1928 = vpack.c.b16 %v1230, %v1228
    %v1929 = vpack.c.b16 %v1231, %v1229
    %v1930 = vpack.c.b16 %v1234, %v1232
    %v1931 = vpack.c.b16 %v1235, %v1233
    %v1932 = vpack.c.b16 %v1238, %v1236
    %v1933 = vpack.c.b16 %v1239, %v1237
    %v1934 = vpack.c.b16 %v1242, %v1240
    %v1935 = vpack.c.b16 %v1243, %v1241
    %v1936 = vpack.c.b16 %v1246, %v1244
    %v1937 = vpack.c.b16 %v1247, %v1245
    %v1938 = vpack.c.b16 %v1250, %v1248
    %v1939 = vpack.c.b16 %v1251, %v1249
    %v1940 = vpack.c.b16 %v1254, %v1252
    %v1941 = vpack.c.b16 %v1255, %v1253
    %v1942 = vpack.c.b16 %v1258, %v1256
    %v1943 = vpack.c.b16 %v1259, %v1257
    %v1944 = vpack.c.b16 %v1262, %v1260
    %v1945 = vpack.c.b16 %v1263, %v1261
    %v1946 = vpack.c.b16 %v1266, %v1264
    %v1947 = vpack.c.b16 %v1267, %v1265
    %v1948 = vpack.c.b16 %v1270, %v1268
    %v1949 = vpack.c.b16 %v1271, %v1269
    %v1950 = vpack.c.b16 %v1274, %v1272
    %v1951 = vpack.c.b16 %v1275, %v1273
    %v1952 = vpack.c.b16 %v1278, %v1276
    %v1953 = vpack.c.b16 %v1279, %v1277
    %v1954 = vpack.c.b16 %v1282, %v1280
    %v1955 = vpack.c.b16 %v1283, %v1281
    %v1956 = vpack.c.b16 %v1286, %v1284
    %v1957 = vpack.c.b16 %v1287, %v1285
    %v1958 = vpack.c.b16 %v1290, %v1288
    %v1959 = vpack.c.b16 %v1291, %v1289
    %v1960 = vpack.c.b16 %v1294, %v1292
    %v1961 = vpack.c.b16 %v1295, %v1293
    %v1962 = vpack.c.b16 %v1298, %v1296
    %v1963 = vpack.c.b16 %v1299, %v1297
    %v1964 = vpack.c.b16 %v1302, %v1300
    %v1965 = vpack.c.b16 %v1303, %v1301
    %v1966 = vpack.c.b16 %v1306, %v1304
    %v1967 = vpack.c.b16 %v1307, %v1305
    %v1968 = vpack.c.b16 %v1310, %v1308
    %v1969 = vpack.c.b16 %v1311, %v1309
    %v1970 = vpack.c.b16 %v1314, %v1312
    %v1971 = vpack.c.b16 %v1315, %v1313
    %v1972 = vpack.c.b16 %v1318, %v1316
    %v1973 = vpack.c.b16 %v1319, %v1317
    %v1974 = vpack.c.b16 %v1322, %v1320
    %v1975 = vpack.c.b16 %v1323, %v1321
    %v1976 = vpack.c.b16 %v1326, %v1324
    %v1977 = vpack.c.b16 %v1327, %v1325
    %v1978 = vpack.c.b16 %v1330, %v1328
    %v1979 = vpack.c.b16 %v1331, %v1329
    %v1980 = vpack.c.b16 %v1334, %v1332
    %v1981 = vpack.c.b16 %v1335, %v1333
    %v1982 = vpack.c.b16 %v1338, %v1336
    %v1983 = vpack.c.b16 %v1339, %v1337
    %v1984 = vpack.c.b16 %v1342, %v1340
    %v1985 = vpack.c.b16 %v1343, %v1341
    %v1986 = vpack.c.b16 %v1346, %v1344
    %v1987 = vpack.c.b16 %v1347, %v1345
    %v1988 = vpack.c.b16 %v1350, %v1348
    %v1989 = vpack.c.b16 %v1351, %v1349
    %v1990 = vpack.c.b16 %v1354, %v1352
    %v1991 = vpack.c.b16 %v1355, %v1353
    %v1992 = vpack.c.b16 %v1358, %v1356
    %v1993 = vpack.c.b16 %v1359, %v1357
    %v1994 = vpack.c.b16 %v1362, %v1360
    %v1995 = vpack.c.b16 %v1363, %v1361
    %v1996 = vpack.c.b16 %v1366, %v1364
    %v1997 = vpack.c.b16 %v1367, %v1365
    %v1998 = vpack.c.b16 %v1370, %v1368
    %v1999 = vpack.c.b16 %v1371, %v1369
    %v2000 = vpack.c.b16 %v1374, %v1372
    %v2001 = vpack.c.b16 %v1375, %v1373
    %v2002 = vpack.c.b16 %v1378, %v1376
    %v2003 = vpack.c.b16 %v1379, %v1377
    %v2004 = vpack.c.b16 %v1382, %v1380
    %v2005 = vpack.c.b16 %v1383, %v1381
    %v2006 = vpack.c.b16 %v1386, %v1384
    %v2007 = vpack.c.b16 %v1387, %v1385
    %v2008 = vpack.c.b16 %v1390, %v1388
    %v2009 = vpack.c.b16 %v1391, %v1389
    %v2010 = vpack.c.b16 %v1394, %v1392
    %v2011 = vpack.c.b16 %v1395, %v1393
    %v2012 = vpack.c.b16 %v1398, %v1396
    %v2013 = vpack.c.b16 %v1399, %v1397
    %v2014 = vpack.c.b16 %v1402, %v1400
    %v2015 = vpack.c.b16 %v1403, %v1401
    %v2016 = vpack.c.b16 %v1406, %v1404
    %v2017 = vpack.c.b16 %v1407, %v1405
    %v2018 = vpack.c.b16 %v1410, %v1408
    %v2019 = vpack.c.b16 %v1411, %v1409
    %v2020 = vpack.c.b16 %v1414, %v1412
    %v2021 = vpack.c.b16 %v1415, %v1413
    %v2022 = vpack.c.b16 %v1418, %v1416
    %v2023 = vpack.c.b16 %v1419, %v1417
    %v2024 = vpack.c.b16 %v1422, %v1420
    %v2025 = vpack.c.b16 %v1423, %v1421
    %v2026 = vpack.c.b16 %v1426, %v1424
    %v2027 = vpack.c.b16 %v1427, %v1425
    %v2028 = vpack.c.b16 %v1430, %v1428
    %v2029 = vpack.c.b16 %v1431, %v1429
    %v2030 = vpack.c.b16 %v1434, %v1432
    %v2031 = vpack.c.b16 %v1435, %v1433
    %v2032 = vpack.c.b16 %v1438, %v1436
    %v2033 = vpack.c.b16 %v1439, %v1437
    %v2034 = vpack.c.b16 %v1442, %v1440
    %v2035 = vpack.c.b16 %v1443, %v1441
    %v2036 = vpack.c.b16 %v1446, %v1444
    %v2037 = vpack.c.b16 %v1447, %v1445
    %v2038 = vpack.c.b16 %v1450, %v1448
    %v2039 = vpack.c.b16 %v1451, %v1449
    %v2040 = vpack.c.b16 %v1454, %v1452
    %v2041 = vpack.c.b16 %v1455, %v1453
    %v2042 = vpack.c.b16 %v1458, %v1456
    %v2043 = vpack.c.b16 %v1459, %v1457
    %v2044 = vpack.c.b16 %v1462, %v1460
    %v2045 = vpack.c.b16 %v1463, %v1461
    %v2046 = vpack.c.b16 %v1466, %v1464
    %v2047 = vpack.c.b16 %v1467, %v1465
    %v2048 = vpack.c.b16 %v1470, %v1468
    %v2049 = vpack.c.b16 %v1471, %v1469
    %v2050 = vpack.c.b16 %v1474, %v1472
    %v2051 = vpack.c.b16 %v1475, %v1473
    %v2052 = vpack.c.b16 %v1478, %v1476
    %v2053 = vpack.c.b16 %v1479, %v1477
    %v2054 = vpack.c.b16 %v1482, %v1480
    %v2055 = vpack.c.b16 %v1483, %v1481
    %v2056 = vpack.c.b16 %v1486, %v1484
    %v2057 = vpack.c.b16 %v1487, %v1485
    %v2058 = vpack.c.b16 %v1490, %v1488
    %v2059 = vpack.c.b16 %v1491, %v1489
    %v2060 = vpack.c.b16 %v1494, %v1492
    %v2061 = vpack.c.b16 %v1495, %v1493
    %v2062 = vpack.c.b16 %v1498, %v1496
    %v2063 = vpack.c.b16 %v1499, %v1497
    %v2064 = vpack.c.b16 %v1502, %v1500
    %v2065 = vpack.c.b16 %v1503, %v1501
    %v2066 = vpack.c.b16 %v1506, %v1504
    %v2067 = vpack.c.b16 %v1507, %v1505
    %v2068 = vpack.c.b16 %v1510, %v1508
    %v2069 = vpack.c.b16 %v1511, %v1509
    %v2070 = vpack.c.b16 %v1514, %v1512
    %v2071 = vpack.c.b16 %v1515, %v1513
    %v2072 = vpack.c.b16 %v1518, %v1516
    %v2073 = vpack.c.b16 %v1519, %v1517
    %v2074 = vpack.c.b16 %v1522, %v1520
    %v2075 = vpack.c.b16 %v1523, %v1521
    %v2076 = vpack.c.b16 %v1526, %v1524
    %v2077 = vpack.c.b16 %v1527, %v1525
    %v2078 = vpack.c.b16 %v1530, %v1528
    %v2079 = vpack.c.b16 %v1531, %v1529
    %v2080 = vpack.c.b16 %v1534, %v1532
    %v2081 = vpack.c.b16 %v1535, %v1533
    %v2082 = vpack.c.b16 %v1538, %v1536
    %v2083 = vpack.c.b16 %v1539, %v1537
    %v2084 = vpack.c.b16 %v1542, %v1540
    %v2085 = vpack.c.b16 %v1543, %v1541
    %v2086 = vpack.c.b16 %v1546, %v1544
    %v2087 = vpack.c.b16 %v1547, %v1545
    %v2088 = vpack.c.b16 %v1550, %v1548
    %v2089 = vpack.c.b16 %v1551, %v1549
    %v2090 = vpack.c.b16 %v1554, %v1552
    %v2091 = vpack.c.b16 %v1555, %v1553
    %v2092 = vpack.c.b16 %v1558, %v1556
    %v2093 = vpack.c.b16 %v1559, %v1557
    %v2094 = vpack.c.b16 %v1562, %v1560
    %v2095 = vpack.c.b16 %v1563, %v1561
    %v2096 = vpack.c.b16 %v1566, %v1564
    %v2097 = vpack.c.b16 %v1567, %v1565
    %v2098 = vpack.c.b16 %v1570, %v1568
    %v2099 = vpack.c.b16 %v1571, %v1569
    %v2100 = vpack.c.b16 %v1574, %v1572
    %v2101 = vpack.c.b16 %v1575, %v1573
    %v2102 = vpack.c.b16 %v1578, %v1576
    %v2103 = vpack.c.b16 %v1579, %v1577
    %v2104 = vpack.c.b16 %v1582, %v1580
    %v2105 = vpack.c.b16 %v1583, %v1581
    %v2106 = vpack.c.b16 %v1586, %v1584
    %v2107 = vpack.c.b16 %v1587, %v1585
    %v2108 = vpack.c.b16 %v1590, %v1588
    %v2109 = vpack.c.b16 %v1591, %v1589
    %v2110 = vpack.c.b16 %v1594, %v1592
    %v2111 = vpack.c.b16 %v1595, %v1593
    %v2112 = vpack.c.b16 %v1598, %v1596
    %v2113 = vpack.c.b16 %v1599, %v1597
    %v2114 = vpack.c.b16 %v1602, %v1600
    %v2115 = vpack.c.b16 %v1603, %v1601
    %v2116 = vpack.c.b16 %v1606, %v1604
    %v2117 = vpack.c.b16 %v1607, %v1605
    %v2118 = vpack.c.b16 %v1610, %v1608
    %v2119 = vpack.c.b16 %v1611, %v1609
    %v2120 = vpack.c.b16 %v1614, %v1612
    %v2121 = vpack.c.b16 %v1615, %v1613
    %v2122 = vpack.c.b16 %v1618, %v1616
    %v2123 = vpack.c.b16 %v1619, %v1617
    %v2124 = vpack.c.b16 %v1622, %v1620
    %v2125 = vpack.c.b16 %v1623, %v1621
    %v2126 = vpack.c.b16 %v1626, %v1624
    %v2127 = vpack.c.b16 %v1627, %v1625
    %v2128 = vpack.c.b16 %v1630, %v1628
    %v2129 = vpack.c.b16 %v1631, %v1629
    %v2130 = vpack.c.b16 %v1634, %v1632
    %v2131 = vpack.c.b16 %v1635, %v1633
    %v2132 = vpack.c.b16 %v1638, %v1636
    %v2133 = vpack.c.b16 %v1639, %v1637
    %v2134 = vpack.c.b16 %v1642, %v1640
    %v2135 = vpack.c.b16 %v1643, %v1641
    %v2136 = vpack.c.b16 %v1646, %v1644
    %v2137 = vpack.c.b16 %v1647, %v1645
    %v2138 = vpack.c.b16 %v1650, %v1648
    %v2139 = vpack.c.b16 %v1651, %v1649
    %v2140 = vpack.c.b16 %v1654, %v1652
    %v2141 = vpack.c.b16 %v1655, %v1653
    %v2142 = vpack.c.b16 %v1658, %v1656
    %v2143 = vpack.c.b16 %v1659, %v1657
    %v2144 = vpack.c.b16 %v1662, %v1660
    %v2145 = vpack.c.b16 %v1663, %v1661
    %v2146 = vpack.c.b16 %v1666, %v1664
    %v2147 = vpack.c.b16 %v1667, %v1665
    %v2148 = vpack.c.b16 %v1670, %v1668
    %v2149 = vpack.c.b16 %v1671, %v1669
    %v2150 = vpack.c.b16 %v1674, %v1672
    %v2151 = vpack.c.b16 %v1675, %v1673
    %v2152 = vpack.c.b16 %v1678, %v1676
    %v2153 = vpack.c.b16 %v1679, %v1677
    %v2154 = vpack.c.b16 %v1682, %v1680
    %v2155 = vpack.c.b16 %v1683, %v1681
    %v2156 = vpack.c.b16 %v1686, %v1684
    %v2157 = vpack.c.b16 %v1687, %v1685
    %v2158 = vpack.c.b16 %v1690, %v1688
    %v2159 = vpack.c.b16 %v1691, %v1689
    %v2160 = vpack.c.b16 %v1694, %v1692
    %v2161 = vpack.c.b16 %v1695, %v1693
    %v2162 = vpack.c.b16 %v1698, %v1696
    %v2163 = vpack.c.b16 %v1699, %v1697
    %v2164 = vpack.c.b16 %v1702, %v1700
    %v2165 = vpack.c.b16 %v1703, %v1701
    %v2166 = vpack.c.b16 %v1706, %v1704
    %v2167 = vpack.c.b16 %v1707, %v1705
    %v2168 = vpack.c.b16 %v1710, %v1708
    %v2169 = vpack.c.b16 %v1711, %v1709
    %v2170 = vpack.c.b16 %v1714, %v1712
    %v2171 = vpack.c.b16 %v1715, %v1713
    %v2172 = vpack.c.b16 %v1718, %v1716
    %v2173 = vpack.c.b16 %v1719, %v1717
    %v2174 = vpack.c.b16 %v1722, %v1720
    %v2175 = vpack.c.b16 %v1723, %v1721
    %v2176 = vpack.c.b16 %v1726, %v1724
    %v2177 = vpack.c.b16 %v1727, %v1725
    %v2178 = vpack.c.b16 %v1730, %v1728
    %v2179 = vpack.c.b16 %v1731, %v1729
    %v2180 = vpack.c.b16 %v1734, %v1732
    %v2181 = vpack.c.b16 %v1735, %v1733
    %v2182 = vpack.c.b16 %v1738, %v1736
    %v2183 = vpack.c.b16 %v1739, %v1737
    %v2184 = vpack.c.b16 %v1742, %v1740
    %v2185 = vpack.c.b16 %v1743, %v1741
    %v2186 = vpack.c.b16 %v1746, %v1744
    %v2187 = vpack.c.b16 %v1747, %v1745
    %v2188 = vpack.c.b16 %v1750, %v1748
    %v2189 = vpack.c.b16 %v1751, %v1749
    %v2190 = vpack.c.b16 %v1754, %v1752
    %v2191 = vpack.c.b16 %v1755, %v1753
    %v2192 = vpack.c.b16 %v1758, %v1756
    %v2193 = vpack.c.b16 %v1759, %v1757
    %v2194 = vpack.c.b16 %v1762, %v1760
    %v2195 = vpack.c.b16 %v1763, %v1761
    %v2196 = vpack.c.b16 %v1766, %v1764
    %v2197 = vpack.c.b16 %v1767, %v1765
    %v2198 = vpack.c.b16 %v1770, %v1768
    %v2199 = vpack.c.b16 %v1771, %v1769
    %v2200 = vpack.c.b16 %v1774, %v1772
    %v2201 = vpack.c.b16 %v1775, %v1773
    %v2202 = vpack.c.b16 %v1778, %v1776
    %v2203 = vpack.c.b16 %v1779, %v1777
    %v2204 = vpack.c.b16 %v1782, %v1780
    %v2205 = vpack.c.b16 %v1783, %v1781
    %v2206 = vpack.c.b16 %v1786, %v1784
    %v2207 = vpack.c.b16 %v1787, %v1785
    %v2208 = vpack.c.b16 %v1790, %v1788
    %v2209 = vpack.c.b16 %v1791, %v1789
    %v2210 = vpack.c.b16 %v1794, %v1792
    %v2211 = vpack.c.b16 %v1795, %v1793
    %v2212 = vpack.c.b16 %v1798, %v1796
    %v2213 = vpack.c.b16 %v1799, %v1797
    %v2214 = vpack.c.b16 %v1802, %v1800
    %v2215 = vpack.c.b16 %v1803, %v1801
    %v2216 = vpack.c.b16 %v1806, %v1804
    %v2217 = vpack.c.b16 %v1807, %v1805
    %v2218 = vpack.c.b16 %v1810, %v1808
    %v2219 = vpack.c.b16 %v1811, %v1809
    %v2220 = vpack.c.b16 %v1814, %v1812
    %v2221 = vpack.c.b16 %v1815, %v1813
    %v2222 = vpack.c.b16 %v1818, %v1816
    %v2223 = vpack.c.b16 %v1819, %v1817
    %v2224 = vpack.c.b16 %v1822, %v1820
    %v2225 = vpack.c.b16 %v1823, %v1821
    %v2226 = vpack.c.b16 %v1826, %v1824
    %v2227 = vpack.c.b16 %v1827, %v1825
    %2628 = vmatprep.subr.bf16.mxu0 %v1843
    %2629 = vmatpush1.bf16.msra.mxu0 %v1842
    %2630 = vmatprep.subr.bf16.mxu0 %v1841
    %2631 = vmatpush1.bf16.msra.mxu0 %v1840
    %2632 = vmatprep.subr.bf16.mxu0 %v1839
    %2633 = vmatpush1.bf16.msra.mxu0 %v1838
    %2634 = vmatprep.subr.bf16.mxu0 %v1837
    %2635 = vmatpush1.bf16.msra.mxu0 %v1836
    %2636 = vmatprep.subr.bf16.mxu0 %v1835
    %2637 = vmatpush1.bf16.msra.mxu0 %v1834
    %2638 = vmatprep.subr.bf16.mxu0 %v1833
    %2639 = vmatpush1.bf16.msra.mxu0 %v1832
    %2640 = vmatprep.subr.bf16.mxu0 %v1831
    %2641 = vmatpush1.bf16.msra.mxu0 %v1830
    %2642 = vmatprep.subr.bf16.mxu0 %v1829
    %2643 = vmatpush1.bf16.msra.mxu0 %v1828
    %2644 = vmatprep.subr.bf16.mxu0 %v1859
    %2645 = vmatpush2.bf16.msra.mxu0 %v1858
    %2646 = vmatprep.subr.bf16.mxu0 %v1857
    %2647 = vmatpush2.bf16.msra.mxu0 %v1856
    %2648 = vmatprep.subr.bf16.mxu0 %v1855
    %2649 = vmatpush2.bf16.msra.mxu0 %v1854
    %2650 = vmatprep.subr.bf16.mxu0 %v1853
    %2651 = vmatpush2.bf16.msra.mxu0 %v1852
    %2652 = vmatprep.subr.bf16.mxu0 %v1851
    %2653 = vmatpush2.bf16.msra.mxu0 %v1850
    %2654 = vmatprep.subr.bf16.mxu0 %v1849
    %2655 = vmatpush2.bf16.msra.mxu0 %v1848
    %2656 = vmatprep.subr.bf16.mxu0 %v1847
    %2657 = vmatpush2.bf16.msra.mxu0 %v1846
    %2658 = vmatprep.subr.bf16.mxu0 %v1845
    %2659 = vmatpush2.bf16.msra.mxu0 %v1844
    %2660 = vmatprep.mubr.bf16.mxu0 %v479
    %2661 = vmatmul.mubr.bf16.gmra.mxu0 %v465
    %v2662 = vpop.f32.mrf.mxu0
    %v2663 = vadd.f32 %v431, %v2662
    %v2664 = vpop.f32.mrf.mxu0
    %v2665 = vadd.f32 %v435, %v2664
    %v2666 = vpop.f32.mrf.mxu0
    %v2667 = vpop.f32.mrf.mxu0
    %2668 = vdwg.mxu0
    %2669 = vmatprep.subr.bf16.mxu0 %v1875
    %2670 = vmatpush1.bf16.msra.mxu0 %v1874
    %2671 = vmatprep.subr.bf16.mxu0 %v1873
    %2672 = vmatpush1.bf16.msra.mxu0 %v1872
    %2673 = vmatprep.subr.bf16.mxu0 %v1871
    %2674 = vmatpush1.bf16.msra.mxu0 %v1870
    %2675 = vmatprep.subr.bf16.mxu0 %v1869
    %2676 = vmatpush1.bf16.msra.mxu0 %v1868
    %2677 = vmatprep.subr.bf16.mxu0 %v1867
    %2678 = vmatpush1.bf16.msra.mxu0 %v1866
    %2679 = vmatprep.subr.bf16.mxu0 %v1865
    %2680 = vmatpush1.bf16.msra.mxu0 %v1864
    %2681 = vmatprep.subr.bf16.mxu0 %v1863
    %2682 = vmatpush1.bf16.msra.mxu0 %v1862
    %2683 = vmatprep.subr.bf16.mxu0 %v1861
    %2684 = vmatpush1.bf16.msra.mxu0 %v1860
    %2685 = vmatprep.subr.bf16.mxu0 %v1891
    %2686 = vmatpush2.bf16.msra.mxu0 %v1890
    %2687 = vmatprep.subr.bf16.mxu0 %v1889
    %2688 = vmatpush2.bf16.msra.mxu0 %v1888
    %2689 = vmatprep.subr.bf16.mxu0 %v1887
    %2690 = vmatpush2.bf16.msra.mxu0 %v1886
    %2691 = vmatprep.subr.bf16.mxu0 %v1885
    %2692 = vmatpush2.bf16.msra.mxu0 %v1884
    %2693 = vmatprep.subr.bf16.mxu0 %v1883
    %2694 = vmatpush2.bf16.msra.mxu0 %v1882
    %2695 = vmatprep.subr.bf16.mxu0 %v1881
    %2696 = vmatpush2.bf16.msra.mxu0 %v1880
    %2697 = vmatprep.subr.bf16.mxu0 %v1879
    %2698 = vmatpush2.bf16.msra.mxu0 %v1878
    %2699 = vmatprep.subr.bf16.mxu0 %v1877
    %2700 = vmatpush2.bf16.msra.mxu0 %v1876
    %2701 = vmatprep.mubr.bf16.mxu0 %v489
    %2702 = vmatmul.mubr.bf16.gmra.mxu0 %v487
    %v2703 = vpop.f32.mrf.mxu0
    %v2704 = vadd.f32 %v2663, %v2703
    %v2705 = vpop.f32.mrf.mxu0
    %v2706 = vadd.f32 %v2665, %v2705
    %v2707 = vpop.f32.mrf.mxu0
    %v2708 = vpop.f32.mrf.mxu0
    %2709 = vdwg.mxu0
    %2710 = vmatprep.subr.bf16.mxu0 %v1907
    %2711 = vmatpush1.bf16.msra.mxu0 %v1906
    %2712 = vmatprep.subr.bf16.mxu0 %v1905
    %2713 = vmatpush1.bf16.msra.mxu0 %v1904
    %2714 = vmatprep.subr.bf16.mxu0 %v1903
    %2715 = vmatpush1.bf16.msra.mxu0 %v1902
    %2716 = vmatprep.subr.bf16.mxu0 %v1901
    %2717 = vmatpush1.bf16.msra.mxu0 %v1900
    %2718 = vmatprep.subr.bf16.mxu0 %v1899
    %2719 = vmatpush1.bf16.msra.mxu0 %v1898
    %2720 = vmatprep.subr.bf16.mxu0 %v1897
    %2721 = vmatpush1.bf16.msra.mxu0 %v1896
    %2722 = vmatprep.subr.bf16.mxu0 %v1895
    %2723 = vmatpush1.bf16.msra.mxu0 %v1894
    %2724 = vmatprep.subr.bf16.mxu0 %v1893
    %2725 = vmatpush1.bf16.msra.mxu0 %v1892
    %2726 = vmatprep.subr.bf16.mxu0 %v1923
    %2727 = vmatpush2.bf16.msra.mxu0 %v1922
    %2728 = vmatprep.subr.bf16.mxu0 %v1921
    %2729 = vmatpush2.bf16.msra.mxu0 %v1920
    %2730 = vmatprep.subr.bf16.mxu0 %v1919
    %2731 = vmatpush2.bf16.msra.mxu0 %v1918
    %2732 = vmatprep.subr.bf16.mxu0 %v1917
    %2733 = vmatpush2.bf16.msra.mxu0 %v1916
    %2734 = vmatprep.subr.bf16.mxu0 %v1915
    %2735 = vmatpush2.bf16.msra.mxu0 %v1914
    %2736 = vmatprep.subr.bf16.mxu0 %v1913
    %2737 = vmatpush2.bf16.msra.mxu0 %v1912
    %2738 = vmatprep.subr.bf16.mxu0 %v1911
    %2739 = vmatpush2.bf16.msra.mxu0 %v1910
    %2740 = vmatprep.subr.bf16.mxu0 %v1909
    %2741 = vmatpush2.bf16.msra.mxu0 %v1908
    %2742 = vmatprep.mubr.bf16.mxu0 %v486
    %2743 = vmatmul.mubr.bf16.gmra.mxu0 %v472
    %v2744 = vpop.f32.mrf.mxu0
    %v2745 = vadd.f32 %v2704, %v2744
    %v2746 = vpop.f32.mrf.mxu0
    %v2747 = vadd.f32 %v2706, %v2746
    %v2748 = vpop.f32.mrf.mxu0
    %v2749 = vpop.f32.mrf.mxu0
    %2750 = vdwg.mxu0
    %2751 = vmatprep.subr.bf16.mxu0 %v1939
    %2752 = vmatpush1.bf16.msra.mxu0 %v1938
    %2753 = vmatprep.subr.bf16.mxu0 %v1937
    %2754 = vmatpush1.bf16.msra.mxu0 %v1936
    %2755 = vmatprep.subr.bf16.mxu0 %v1935
    %2756 = vmatpush1.bf16.msra.mxu0 %v1934
    %2757 = vmatprep.subr.bf16.mxu0 %v1933
    %2758 = vmatpush1.bf16.msra.mxu0 %v1932
    %2759 = vmatprep.subr.bf16.mxu0 %v1931
    %2760 = vmatpush1.bf16.msra.mxu0 %v1930
    %2761 = vmatprep.subr.bf16.mxu0 %v1929
    %2762 = vmatpush1.bf16.msra.mxu0 %v1928
    %2763 = vmatprep.subr.bf16.mxu0 %v1927
    %2764 = vmatpush1.bf16.msra.mxu0 %v1926
    %2765 = vmatprep.subr.bf16.mxu0 %v1925
    %2766 = vmatpush1.bf16.msra.mxu0 %v1924
    %2767 = vmatprep.subr.bf16.mxu0 %v1955
    %2768 = vmatpush2.bf16.msra.mxu0 %v1954
    %2769 = vmatprep.subr.bf16.mxu0 %v1953
    %2770 = vmatpush2.bf16.msra.mxu0 %v1952
    %2771 = vmatprep.subr.bf16.mxu0 %v1951
    %2772 = vmatpush2.bf16.msra.mxu0 %v1950
    %2773 = vmatprep.subr.bf16.mxu0 %v1949
    %2774 = vmatpush2.bf16.msra.mxu0 %v1948
    %2775 = vmatprep.subr.bf16.mxu0 %v1947
    %2776 = vmatpush2.bf16.msra.mxu0 %v1946
    %2777 = vmatprep.subr.bf16.mxu0 %v1945
    %2778 = vmatpush2.bf16.msra.mxu0 %v1944
    %2779 = vmatprep.subr.bf16.mxu0 %v1943
    %2780 = vmatpush2.bf16.msra.mxu0 %v1942
    %2781 = vmatprep.subr.bf16.mxu0 %v1941
    %2782 = vmatpush2.bf16.msra.mxu0 %v1940
    %2783 = vmatprep.mubr.bf16.mxu0 %v490
    %2784 = vmatmul.mubr.bf16.gmra.mxu0 %v488
    %v2785 = vpop.f32.mrf.mxu0
    %v2786 = vadd.f32 %v2745, %v2785
    %v2787 = vpop.f32.mrf.mxu0
    %v2788 = vadd.f32 %v2747, %v2787
    %v2789 = vpop.f32.mrf.mxu0
    %v2790 = vpop.f32.mrf.mxu0
    %2791 = vdwg.mxu0
    %2792 = vmatprep.subr.bf16.mxu0 %v1971
    %2793 = vmatpush1.bf16.msra.mxu0 %v1970
    %2794 = vmatprep.subr.bf16.mxu0 %v1969
    %2795 = vmatpush1.bf16.msra.mxu0 %v1968
    %2796 = vmatprep.subr.bf16.mxu0 %v1967
    %2797 = vmatpush1.bf16.msra.mxu0 %v1966
    %2798 = vmatprep.subr.bf16.mxu0 %v1965
    %2799 = vmatpush1.bf16.msra.mxu0 %v1964
    %2800 = vmatprep.subr.bf16.mxu0 %v1963
    %2801 = vmatpush1.bf16.msra.mxu0 %v1962
    %2802 = vmatprep.subr.bf16.mxu0 %v1961
    %2803 = vmatpush1.bf16.msra.mxu0 %v1960
    %2804 = vmatprep.subr.bf16.mxu0 %v1959
    %2805 = vmatpush1.bf16.msra.mxu0 %v1958
    %2806 = vmatprep.subr.bf16.mxu0 %v1957
    %2807 = vmatpush1.bf16.msra.mxu0 %v1956
    %2808 = vmatprep.subr.bf16.mxu0 %v1987
    %2809 = vmatpush2.bf16.msra.mxu0 %v1986
    %2810 = vmatprep.subr.bf16.mxu0 %v1985
    %2811 = vmatpush2.bf16.msra.mxu0 %v1984
    %2812 = vmatprep.subr.bf16.mxu0 %v1983
    %2813 = vmatpush2.bf16.msra.mxu0 %v1982
    %2814 = vmatprep.subr.bf16.mxu0 %v1981
    %2815 = vmatpush2.bf16.msra.mxu0 %v1980
    %2816 = vmatprep.subr.bf16.mxu0 %v1979
    %2817 = vmatpush2.bf16.msra.mxu0 %v1978
    %2818 = vmatprep.subr.bf16.mxu0 %v1977
    %2819 = vmatpush2.bf16.msra.mxu0 %v1976
    %2820 = vmatprep.subr.bf16.mxu0 %v1975
    %2821 = vmatpush2.bf16.msra.mxu0 %v1974
    %2822 = vmatprep.subr.bf16.mxu0 %v1973
    %2823 = vmatpush2.bf16.msra.mxu0 %v1972
    %2824 = vmatprep.mubr.bf16.mxu0 %v528
    %2825 = vmatmul.mubr.bf16.gmra.mxu0 %v514
    %v2826 = vpop.f32.mrf.mxu0
    %v2827 = vadd.f32 %v2786, %v2826
    %v2828 = vpop.f32.mrf.mxu0
    %v2829 = vadd.f32 %v2788, %v2828
    %v2830 = vpop.f32.mrf.mxu0
    %v2831 = vpop.f32.mrf.mxu0
    %2832 = vdwg.mxu0
    %2833 = vmatprep.subr.bf16.mxu0 %v2003
    %2834 = vmatpush1.bf16.msra.mxu0 %v2002
    %2835 = vmatprep.subr.bf16.mxu0 %v2001
    %2836 = vmatpush1.bf16.msra.mxu0 %v2000
    %2837 = vmatprep.subr.bf16.mxu0 %v1999
    %2838 = vmatpush1.bf16.msra.mxu0 %v1998
    %2839 = vmatprep.subr.bf16.mxu0 %v1997
    %2840 = vmatpush1.bf16.msra.mxu0 %v1996
    %2841 = vmatprep.subr.bf16.mxu0 %v1995
    %2842 = vmatpush1.bf16.msra.mxu0 %v1994
    %2843 = vmatprep.subr.bf16.mxu0 %v1993
    %2844 = vmatpush1.bf16.msra.mxu0 %v1992
    %2845 = vmatprep.subr.bf16.mxu0 %v1991
    %2846 = vmatpush1.bf16.msra.mxu0 %v1990
    %2847 = vmatprep.subr.bf16.mxu0 %v1989
    %2848 = vmatpush1.bf16.msra.mxu0 %v1988
    %2849 = vmatprep.subr.bf16.mxu0 %v2019
    %2850 = vmatpush2.bf16.msra.mxu0 %v2018
    %2851 = vmatprep.subr.bf16.mxu0 %v2017
    %2852 = vmatpush2.bf16.msra.mxu0 %v2016
    %2853 = vmatprep.subr.bf16.mxu0 %v2015
    %2854 = vmatpush2.bf16.msra.mxu0 %v2014
    %2855 = vmatprep.subr.bf16.mxu0 %v2013
    %2856 = vmatpush2.bf16.msra.mxu0 %v2012
    %2857 = vmatprep.subr.bf16.mxu0 %v2011
    %2858 = vmatpush2.bf16.msra.mxu0 %v2010
    %2859 = vmatprep.subr.bf16.mxu0 %v2009
    %2860 = vmatpush2.bf16.msra.mxu0 %v2008
    %2861 = vmatprep.subr.bf16.mxu0 %v2007
    %2862 = vmatpush2.bf16.msra.mxu0 %v2006
    %2863 = vmatprep.subr.bf16.mxu0 %v2005
    %2864 = vmatpush2.bf16.msra.mxu0 %v2004
    %2865 = vmatprep.mubr.bf16.mxu0 %v538
    %2866 = vmatmul.mubr.bf16.gmra.mxu0 %v536
    %v2867 = vpop.f32.mrf.mxu0
    %v2868 = vadd.f32 %v2827, %v2867
    %v2869 = vpop.f32.mrf.mxu0
    %v2870 = vadd.f32 %v2829, %v2869
    %v2871 = vpop.f32.mrf.mxu0
    %v2872 = vpop.f32.mrf.mxu0
    %2873 = vdwg.mxu0
    %2874 = vmatprep.subr.bf16.mxu0 %v2035
    %2875 = vmatpush1.bf16.msra.mxu0 %v2034
    %2876 = vmatprep.subr.bf16.mxu0 %v2033
    %2877 = vmatpush1.bf16.msra.mxu0 %v2032
    %2878 = vmatprep.subr.bf16.mxu0 %v2031
    %2879 = vmatpush1.bf16.msra.mxu0 %v2030
    %2880 = vmatprep.subr.bf16.mxu0 %v2029
    %2881 = vmatpush1.bf16.msra.mxu0 %v2028
    %2882 = vmatprep.subr.bf16.mxu0 %v2027
    %2883 = vmatpush1.bf16.msra.mxu0 %v2026
    %2884 = vmatprep.subr.bf16.mxu0 %v2025
    %2885 = vmatpush1.bf16.msra.mxu0 %v2024
    %2886 = vmatprep.subr.bf16.mxu0 %v2023
    %2887 = vmatpush1.bf16.msra.mxu0 %v2022
    %2888 = vmatprep.subr.bf16.mxu0 %v2021
    %2889 = vmatpush1.bf16.msra.mxu0 %v2020
    %2890 = vmatprep.subr.bf16.mxu0 %v2051
    %2891 = vmatpush2.bf16.msra.mxu0 %v2050
    %2892 = vmatprep.subr.bf16.mxu0 %v2049
    %2893 = vmatpush2.bf16.msra.mxu0 %v2048
    %2894 = vmatprep.subr.bf16.mxu0 %v2047
    %2895 = vmatpush2.bf16.msra.mxu0 %v2046
    %2896 = vmatprep.subr.bf16.mxu0 %v2045
    %2897 = vmatpush2.bf16.msra.mxu0 %v2044
    %2898 = vmatprep.subr.bf16.mxu0 %v2043
    %2899 = vmatpush2.bf16.msra.mxu0 %v2042
    %2900 = vmatprep.subr.bf16.mxu0 %v2041
    %2901 = vmatpush2.bf16.msra.mxu0 %v2040
    %2902 = vmatprep.subr.bf16.mxu0 %v2039
    %2903 = vmatpush2.bf16.msra.mxu0 %v2038
    %2904 = vmatprep.subr.bf16.mxu0 %v2037
    %2905 = vmatpush2.bf16.msra.mxu0 %v2036
    %2906 = vmatprep.mubr.bf16.mxu0 %v535
    %2907 = vmatmul.mubr.bf16.gmra.mxu0 %v521
    %v2908 = vpop.f32.mrf.mxu0
    %v2909 = vadd.f32 %v2868, %v2908
    %v2910 = vpop.f32.mrf.mxu0
    %v2911 = vadd.f32 %v2870, %v2910
    %v2912 = vpop.f32.mrf.mxu0
    %v2913 = vpop.f32.mrf.mxu0
    %2914 = vdwg.mxu0
    %2915 = vmatprep.subr.bf16.mxu0 %v2067
    %2916 = vmatpush1.bf16.msra.mxu0 %v2066
    %2917 = vmatprep.subr.bf16.mxu0 %v2065
    %2918 = vmatpush1.bf16.msra.mxu0 %v2064
    %2919 = vmatprep.subr.bf16.mxu0 %v2063
    %2920 = vmatpush1.bf16.msra.mxu0 %v2062
    %2921 = vmatprep.subr.bf16.mxu0 %v2061
    %2922 = vmatpush1.bf16.msra.mxu0 %v2060
    %2923 = vmatprep.subr.bf16.mxu0 %v2059
    %2924 = vmatpush1.bf16.msra.mxu0 %v2058
    %2925 = vmatprep.subr.bf16.mxu0 %v2057
    %2926 = vmatpush1.bf16.msra.mxu0 %v2056
    %2927 = vmatprep.subr.bf16.mxu0 %v2055
    %2928 = vmatpush1.bf16.msra.mxu0 %v2054
    %2929 = vmatprep.subr.bf16.mxu0 %v2053
    %2930 = vmatpush1.bf16.msra.mxu0 %v2052
    %2931 = vmatprep.subr.bf16.mxu0 %v2083
    %2932 = vmatpush2.bf16.msra.mxu0 %v2082
    %2933 = vmatprep.subr.bf16.mxu0 %v2081
    %2934 = vmatpush2.bf16.msra.mxu0 %v2080
    %2935 = vmatprep.subr.bf16.mxu0 %v2079
    %2936 = vmatpush2.bf16.msra.mxu0 %v2078
    %2937 = vmatprep.subr.bf16.mxu0 %v2077
    %2938 = vmatpush2.bf16.msra.mxu0 %v2076
    %2939 = vmatprep.subr.bf16.mxu0 %v2075
    %2940 = vmatpush2.bf16.msra.mxu0 %v2074
    %2941 = vmatprep.subr.bf16.mxu0 %v2073
    %2942 = vmatpush2.bf16.msra.mxu0 %v2072
    %2943 = vmatprep.subr.bf16.mxu0 %v2071
    %2944 = vmatpush2.bf16.msra.mxu0 %v2070
    %2945 = vmatprep.subr.bf16.mxu0 %v2069
    %2946 = vmatpush2.bf16.msra.mxu0 %v2068
    %2947 = vmatprep.mubr.bf16.mxu0 %v539
    %2948 = vmatmul.mubr.bf16.gmra.mxu0 %v537
    %v2949 = vpop.f32.mrf.mxu0
    %v2950 = vadd.f32 %v2909, %v2949
    %v2951 = vpop.f32.mrf.mxu0
    %v2952 = vadd.f32 %v2911, %v2951
    %v2953 = vpop.f32.mrf.mxu0
    %v2954 = vpop.f32.mrf.mxu0
    %2955 = vdwg.mxu0
    %2956 = vmatprep.subr.bf16.mxu0 %v2099
    %2957 = vmatpush1.bf16.msra.mxu0 %v2098
    %2958 = vmatprep.subr.bf16.mxu0 %v2097
    %2959 = vmatpush1.bf16.msra.mxu0 %v2096
    %2960 = vmatprep.subr.bf16.mxu0 %v2095
    %2961 = vmatpush1.bf16.msra.mxu0 %v2094
    %2962 = vmatprep.subr.bf16.mxu0 %v2093
    %2963 = vmatpush1.bf16.msra.mxu0 %v2092
    %2964 = vmatprep.subr.bf16.mxu0 %v2091
    %2965 = vmatpush1.bf16.msra.mxu0 %v2090
    %2966 = vmatprep.subr.bf16.mxu0 %v2089
    %2967 = vmatpush1.bf16.msra.mxu0 %v2088
    %2968 = vmatprep.subr.bf16.mxu0 %v2087
    %2969 = vmatpush1.bf16.msra.mxu0 %v2086
    %2970 = vmatprep.subr.bf16.mxu0 %v2085
    %2971 = vmatpush1.bf16.msra.mxu0 %v2084
    %2972 = vmatprep.subr.bf16.mxu0 %v2115
    %2973 = vmatpush2.bf16.msra.mxu0 %v2114
    %2974 = vmatprep.subr.bf16.mxu0 %v2113
    %2975 = vmatpush2.bf16.msra.mxu0 %v2112
    %2976 = vmatprep.subr.bf16.mxu0 %v2111
    %2977 = vmatpush2.bf16.msra.mxu0 %v2110
    %2978 = vmatprep.subr.bf16.mxu0 %v2109
    %2979 = vmatpush2.bf16.msra.mxu0 %v2108
    %2980 = vmatprep.subr.bf16.mxu0 %v2107
    %2981 = vmatpush2.bf16.msra.mxu0 %v2106
    %2982 = vmatprep.subr.bf16.mxu0 %v2105
    %2983 = vmatpush2.bf16.msra.mxu0 %v2104
    %2984 = vmatprep.subr.bf16.mxu0 %v2103
    %2985 = vmatpush2.bf16.msra.mxu0 %v2102
    %2986 = vmatprep.subr.bf16.mxu0 %v2101
    %2987 = vmatpush2.bf16.msra.mxu0 %v2100
    %2988 = vmatprep.mubr.bf16.mxu0 %v577
    %2989 = vmatmul.mubr.bf16.gmra.mxu0 %v563
    %v2990 = vpop.f32.mrf.mxu0
    %v2991 = vadd.f32 %v2950, %v2990
    %v2992 = vpop.f32.mrf.mxu0
    %v2993 = vadd.f32 %v2952, %v2992
    %v2994 = vpop.f32.mrf.mxu0
    %v2995 = vpop.f32.mrf.mxu0
    %2996 = vdwg.mxu0
    %2997 = vmatprep.subr.bf16.mxu0 %v2131
    %2998 = vmatpush1.bf16.msra.mxu0 %v2130
    %2999 = vmatprep.subr.bf16.mxu0 %v2129
    %3000 = vmatpush1.bf16.msra.mxu0 %v2128
    %3001 = vmatprep.subr.bf16.mxu0 %v2127
    %3002 = vmatpush1.bf16.msra.mxu0 %v2126
    %3003 = vmatprep.subr.bf16.mxu0 %v2125
    %3004 = vmatpush1.bf16.msra.mxu0 %v2124
    %3005 = vmatprep.subr.bf16.mxu0 %v2123
    %3006 = vmatpush1.bf16.msra.mxu0 %v2122
    %3007 = vmatprep.subr.bf16.mxu0 %v2121
    %3008 = vmatpush1.bf16.msra.mxu0 %v2120
    %3009 = vmatprep.subr.bf16.mxu0 %v2119
    %3010 = vmatpush1.bf16.msra.mxu0 %v2118
    %3011 = vmatprep.subr.bf16.mxu0 %v2117
    %3012 = vmatpush1.bf16.msra.mxu0 %v2116
    %3013 = vmatprep.subr.bf16.mxu0 %v2147
    %3014 = vmatpush2.bf16.msra.mxu0 %v2146
    %3015 = vmatprep.subr.bf16.mxu0 %v2145
    %3016 = vmatpush2.bf16.msra.mxu0 %v2144
    %3017 = vmatprep.subr.bf16.mxu0 %v2143
    %3018 = vmatpush2.bf16.msra.mxu0 %v2142
    %3019 = vmatprep.subr.bf16.mxu0 %v2141
    %3020 = vmatpush2.bf16.msra.mxu0 %v2140
    %3021 = vmatprep.subr.bf16.mxu0 %v2139
    %3022 = vmatpush2.bf16.msra.mxu0 %v2138
    %3023 = vmatprep.subr.bf16.mxu0 %v2137
    %3024 = vmatpush2.bf16.msra.mxu0 %v2136
    %3025 = vmatprep.subr.bf16.mxu0 %v2135
    %3026 = vmatpush2.bf16.msra.mxu0 %v2134
    %3027 = vmatprep.subr.bf16.mxu0 %v2133
    %3028 = vmatpush2.bf16.msra.mxu0 %v2132
    %3029 = vmatprep.mubr.bf16.mxu0 %v587
    %3030 = vmatmul.mubr.bf16.gmra.mxu0 %v585
    %v3031 = vpop.f32.mrf.mxu0
    %v3032 = vadd.f32 %v2991, %v3031
    %v3033 = vpop.f32.mrf.mxu0
    %v3034 = vadd.f32 %v2993, %v3033
    %v3035 = vpop.f32.mrf.mxu0
    %v3036 = vpop.f32.mrf.mxu0
    %3037 = vdwg.mxu0
    %3038 = vmatprep.subr.bf16.mxu0 %v2163
    %3039 = vmatpush1.bf16.msra.mxu0 %v2162
    %3040 = vmatprep.subr.bf16.mxu0 %v2161
    %3041 = vmatpush1.bf16.msra.mxu0 %v2160
    %3042 = vmatprep.subr.bf16.mxu0 %v2159
    %3043 = vmatpush1.bf16.msra.mxu0 %v2158
    %3044 = vmatprep.subr.bf16.mxu0 %v2157
    %3045 = vmatpush1.bf16.msra.mxu0 %v2156
    %3046 = vmatprep.subr.bf16.mxu0 %v2155
    %3047 = vmatpush1.bf16.msra.mxu0 %v2154
    %3048 = vmatprep.subr.bf16.mxu0 %v2153
    %3049 = vmatpush1.bf16.msra.mxu0 %v2152
    %3050 = vmatprep.subr.bf16.mxu0 %v2151
    %3051 = vmatpush1.bf16.msra.mxu0 %v2150
    %3052 = vmatprep.subr.bf16.mxu0 %v2149
    %3053 = vmatpush1.bf16.msra.mxu0 %v2148
    %3054 = vmatprep.subr.bf16.mxu0 %v2179
    %3055 = vmatpush2.bf16.msra.mxu0 %v2178
    %3056 = vmatprep.subr.bf16.mxu0 %v2177
    %3057 = vmatpush2.bf16.msra.mxu0 %v2176
    %3058 = vmatprep.subr.bf16.mxu0 %v2175
    %3059 = vmatpush2.bf16.msra.mxu0 %v2174
    %3060 = vmatprep.subr.bf16.mxu0 %v2173
    %3061 = vmatpush2.bf16.msra.mxu0 %v2172
    %3062 = vmatprep.subr.bf16.mxu0 %v2171
    %3063 = vmatpush2.bf16.msra.mxu0 %v2170
    %3064 = vmatprep.subr.bf16.mxu0 %v2169
    %3065 = vmatpush2.bf16.msra.mxu0 %v2168
    %3066 = vmatprep.subr.bf16.mxu0 %v2167
    %3067 = vmatpush2.bf16.msra.mxu0 %v2166
    %3068 = vmatprep.subr.bf16.mxu0 %v2165
    %3069 = vmatpush2.bf16.msra.mxu0 %v2164
    %3070 = vmatprep.mubr.bf16.mxu0 %v584
    %3071 = vmatmul.mubr.bf16.gmra.mxu0 %v570
    %v3072 = vpop.f32.mrf.mxu0
    %v3073 = vadd.f32 %v3032, %v3072
    %v3074 = vpop.f32.mrf.mxu0
    %v3075 = vadd.f32 %v3034, %v3074
    %v3076 = vpop.f32.mrf.mxu0
    %v3077 = vpop.f32.mrf.mxu0
    %3078 = vdwg.mxu0
    %3079 = vmatprep.subr.bf16.mxu0 %v2195
    %3080 = vmatpush1.bf16.msra.mxu0 %v2194
    %3081 = vmatprep.subr.bf16.mxu0 %v2193
    %3082 = vmatpush1.bf16.msra.mxu0 %v2192
    %3083 = vmatprep.subr.bf16.mxu0 %v2191
    %3084 = vmatpush1.bf16.msra.mxu0 %v2190
    %3085 = vmatprep.subr.bf16.mxu0 %v2189
    %3086 = vmatpush1.bf16.msra.mxu0 %v2188
    %3087 = vmatprep.subr.bf16.mxu0 %v2187
    %3088 = vmatpush1.bf16.msra.mxu0 %v2186
    %3089 = vmatprep.subr.bf16.mxu0 %v2185
    %3090 = vmatpush1.bf16.msra.mxu0 %v2184
    %3091 = vmatprep.subr.bf16.mxu0 %v2183
    %3092 = vmatpush1.bf16.msra.mxu0 %v2182
    %3093 = vmatprep.subr.bf16.mxu0 %v2181
    %3094 = vmatpush1.bf16.msra.mxu0 %v2180
    %3095 = vmatprep.subr.bf16.mxu0 %v2211
    %3096 = vmatpush2.bf16.msra.mxu0 %v2210
    %3097 = vmatprep.subr.bf16.mxu0 %v2209
    %3098 = vmatpush2.bf16.msra.mxu0 %v2208
    %3099 = vmatprep.subr.bf16.mxu0 %v2207
    %3100 = vmatpush2.bf16.msra.mxu0 %v2206
    %3101 = vmatprep.subr.bf16.mxu0 %v2205
    %3102 = vmatpush2.bf16.msra.mxu0 %v2204
    %3103 = vmatprep.subr.bf16.mxu0 %v2203
    %3104 = vmatpush2.bf16.msra.mxu0 %v2202
    %3105 = vmatprep.subr.bf16.mxu0 %v2201
    %3106 = vmatpush2.bf16.msra.mxu0 %v2200
    %3107 = vmatprep.subr.bf16.mxu0 %v2199
    %3108 = vmatpush2.bf16.msra.mxu0 %v2198
    %3109 = vmatprep.subr.bf16.mxu0 %v2197
    %3110 = vmatpush2.bf16.msra.mxu0 %v2196
    %3111 = vmatprep.mubr.bf16.mxu0 %v588
    %3112 = vmatmul.mubr.bf16.gmra.mxu0 %v586
    %v3113 = vpop.f32.mrf.mxu0
    %v3114 = vadd.f32 %v3073, %v3113
    %v3115 = vpop.f32.mrf.mxu0
    %v3116 = vadd.f32 %v3075, %v3115
    %v3117 = vpop.f32.mrf.mxu0
    %v3118 = vpop.f32.mrf.mxu0
    %3119 = vdwg.mxu0
    %3120 = vmatprep.subr.bf16.mxu0 %v2227
    %3121 = vmatpush1.bf16.msra.mxu0 %v2226
    %3122 = vmatprep.subr.bf16.mxu0 %v2225
    %3123 = vmatpush1.bf16.msra.mxu0 %v2224
    %3124 = vmatprep.subr.bf16.mxu0 %v2223
    %3125 = vmatpush1.bf16.msra.mxu0 %v2222
    %3126 = vmatprep.subr.bf16.mxu0 %v2221
    %3127 = vmatpush1.bf16.msra.mxu0 %v2220
    %3128 = vmatprep.subr.bf16.mxu0 %v2219
    %3129 = vmatpush1.bf16.msra.mxu0 %v2218
    %3130 = vmatprep.subr.bf16.mxu0 %v2217
    %3131 = vmatpush1.bf16.msra.mxu0 %v2216
    %3132 = vmatprep.subr.bf16.mxu0 %v2215
    %3133 = vmatpush1.bf16.msra.mxu0 %v2214
    %3134 = vmatprep.subr.bf16.mxu0 %v2213
    %3135 = vmatpush1.bf16.msra.mxu0 %v2212
    %3136 = vmatprep.subr.bf16.mxu0 0
    %3137 = vmatpush2.bf16.msra.mxu0 0
    %3138 = vmatprep.subr.bf16.mxu0 0
    %3139 = vmatpush2.bf16.msra.mxu0 0
    %3140 = vmatprep.subr.bf16.mxu0 0
    %3141 = vmatpush2.bf16.msra.mxu0 0
    %3142 = vmatprep.subr.bf16.mxu0 0
    %3143 = vmatpush2.bf16.msra.mxu0 0
    %3144 = vmatprep.subr.bf16.mxu0 0
    %3145 = vmatpush2.bf16.msra.mxu0 0
    %3146 = vmatprep.subr.bf16.mxu0 0
    %3147 = vmatpush2.bf16.msra.mxu0 0
    %3148 = vmatprep.subr.bf16.mxu0 0
    %3149 = vmatpush2.bf16.msra.mxu0 0
    %3150 = vmatprep.subr.bf16.mxu0 0
    %3151 = vmatpush2.bf16.msra.mxu0 0
    %3152 = vmatprep.mubr.bf16.mxu0 0
    %3153 = vmatmul.mubr.bf16.gmra.mxu0 %v602
    %v3154 = vpop.f32.mrf.mxu0
    %v3155 = vadd.f32 %v3114, %v3154
    %v3156 = vpop.f32.mrf.mxu0
    %v3157 = vadd.f32 %v3116, %v3156
    %v3158 = vpop.f32.mrf.mxu0
    %v3159 = vpop.f32.mrf.mxu0
    %3160 = vdwg.mxu0
    %v3161 = vmax.f32 %v3155, 0.0
    %v3162 = vmax.f32 %v3157, 0.0
    %v3163 = vpack.c.bf16 %v3161, %v3161
    %v3164 = vpack.c.bf16 %v3162, %v3162
    %v3165 = vld [vmem:[%s3] sm:$0xf]
    %v3166 = vld [vmem:[%s3 + $0x4] sm:$0xf]
    %v3167 = vld [vmem:[%s3 + $0x8] sm:$0xf]
    %v3168 = vld [vmem:[%s3 + $0xc] sm:$0xf]
    %v3169 = vld [vmem:[%s3 + $0x10] sm:$0xf]
    %v3170 = vld [vmem:[%s3 + $0x14] sm:$0xf]
    %v3171 = vld [vmem:[%s3 + $0x18] sm:$0xf]
    %v3172 = vld [vmem:[%s3 + $0x1c] sm:$0xf]
    %v3173 = vld [vmem:[%s3 + $0x20] sm:$0xf]
    %v3174 = vld [vmem:[%s3 + $0x24] sm:$0xf]
    %v3175 = vld [vmem:[%s3 + $0x28] sm:$0xf]
    %v3176 = vld [vmem:[%s3 + $0x2c] sm:$0xf]
    %v3177 = vld [vmem:[%s3 + $0x30] sm:$0xf]
    %v3178 = vld [vmem:[%s3 + $0x34] sm:$0xf]
    %v3179 = vld [vmem:[%s3 + $0x38] sm:$0xf]
    %v3180 = vld [vmem:[%s3 + $0x3c] sm:$0xf]
    %v3181 = vld [vmem:[%s3 + $0x40] sm:$0xf]
    %v3182 = vld [vmem:[%s3 + $0x44] sm:$0xf]
    %v3183 = vld [vmem:[%s3 + $0x48] sm:$0xf]
    %v3184 = vld [vmem:[%s3 + $0x4c] sm:$0xf]
    %v3185 = vld [vmem:[%s3 + $0x50] sm:$0xf]
    %v3186 = vld [vmem:[%s3 + $0x54] sm:$0xf]
    %v3187 = vld [vmem:[%s3 + $0x58] sm:$0xf]
    %v3188 = vld [vmem:[%s3 + $0x5c] sm:$0xf]
    %v3189 = vld [vmem:[%s3 + $0x60] sm:$0xf]
    %v3190 = vld [vmem:[%s3 + $0x64] sm:$0xf]
    %v3191 = vld [vmem:[%s3 + $0x68] sm:$0xf]
    %v3192 = vld [vmem:[%s3 + $0x6c] sm:$0xf]
    %v3193 = vld [vmem:[%s3 + $0x70] sm:$0xf]
    %v3194 = vld [vmem:[%s3 + $0x74] sm:$0xf]
    %v3195 = vld [vmem:[%s3 + $0x78] sm:$0xf]
    %v3196 = vld [vmem:[%s3 + $0x7c] sm:$0xf]
    %v3197 = vld [vmem:[%s4] sm:$0x1]
    %v3199 = vlaneseq
    %v3200 = vshrl.u32 %v3199, 7
    %v3201 = vsub.s32 0, %v3200
    %v3202 = vrot.slane %v3197, %v3201
    %v3236 = vunpack.c.l.b16 %v3165
    %v3237 = vunpack.c.l.b16 %v3166
    %v3238 = vunpack.c.l.b16 %v3167
    %v3239 = vunpack.c.l.b16 %v3168
    %v3240 = vunpack.c.l.b16 %v3169
    %v3241 = vunpack.c.l.b16 %v3170
    %v3242 = vunpack.c.l.b16 %v3171
    %v3243 = vunpack.c.l.b16 %v3172
    %v3244 = vunpack.c.l.b16 %v3173
    %v3245 = vunpack.c.l.b16 %v3174
    %v3246 = vunpack.c.l.b16 %v3175
    %v3247 = vunpack.c.l.b16 %v3176
    %v3248 = vunpack.c.l.b16 %v3177
    %v3249 = vunpack.c.l.b16 %v3178
    %v3250 = vunpack.c.l.b16 %v3179
    %v3251 = vunpack.c.l.b16 %v3180
    %v3252 = vunpack.c.l.b16 %v3181
    %v3253 = vunpack.c.l.b16 %v3182
    %v3254 = vunpack.c.l.b16 %v3183
    %v3255 = vunpack.c.l.b16 %v3184
    %v3256 = vunpack.c.l.b16 %v3185
    %v3257 = vunpack.c.l.b16 %v3186
    %v3258 = vunpack.c.l.b16 %v3187
    %v3259 = vunpack.c.l.b16 %v3188
    %v3260 = vunpack.c.l.b16 %v3189
    %v3261 = vunpack.c.l.b16 %v3190
    %v3262 = vunpack.c.l.b16 %v3191
    %v3263 = vunpack.c.l.b16 %v3192
    %v3264 = vunpack.c.l.b16 %v3193
    %v3265 = vunpack.c.l.b16 %v3194
    %v3266 = vunpack.c.l.b16 %v3195
    %v3267 = vunpack.c.l.b16 %v3196
    %v3268 = vpack.c.b16 %v3237, %v3236
    %v3269 = vpack.c.b16 %v3239, %v3238
    %v3270 = vpack.c.b16 %v3241, %v3240
    %v3271 = vpack.c.b16 %v3243, %v3242
    %v3272 = vpack.c.b16 %v3245, %v3244
    %v3273 = vpack.c.b16 %v3247, %v3246
    %v3274 = vpack.c.b16 %v3249, %v3248
    %v3275 = vpack.c.b16 %v3251, %v3250
    %v3276 = vpack.c.b16 %v3253, %v3252
    %v3277 = vpack.c.b16 %v3255, %v3254
    %v3278 = vpack.c.b16 %v3257, %v3256
    %v3279 = vpack.c.b16 %v3259, %v3258
    %v3280 = vpack.c.b16 %v3261, %v3260
    %v3281 = vpack.c.b16 %v3263, %v3262
    %v3282 = vpack.c.b16 %v3265, %v3264
    %v3283 = vpack.c.b16 %v3267, %v3266
    %3300 = vmatprep.subr.bf16.mxu0 0
    %3301 = vmatpush1.bf16.msra.mxu0 %v3275
    %3302 = vmatprep.subr.bf16.mxu0 0
    %3303 = vmatpush1.bf16.msra.mxu0 %v3274
    %3304 = vmatprep.subr.bf16.mxu0 0
    %3305 = vmatpush1.bf16.msra.mxu0 %v3273
    %3306 = vmatprep.subr.bf16.mxu0 0
    %3307 = vmatpush1.bf16.msra.mxu0 %v3272
    %3308 = vmatprep.subr.bf16.mxu0 0
    %3309 = vmatpush1.bf16.msra.mxu0 %v3271
    %3310 = vmatprep.subr.bf16.mxu0 0
    %3311 = vmatpush1.bf16.msra.mxu0 %v3270
    %3312 = vmatprep.subr.bf16.mxu0 0
    %3313 = vmatpush1.bf16.msra.mxu0 %v3269
    %3314 = vmatprep.subr.bf16.mxu0 0
    %3315 = vmatpush1.bf16.msra.mxu0 %v3268
    %3316 = vmatprep.subr.bf16.mxu0 0
    %3317 = vmatpush2.bf16.msra.mxu0 %v3283
    %3318 = vmatprep.subr.bf16.mxu0 0
    %3319 = vmatpush2.bf16.msra.mxu0 %v3282
    %3320 = vmatprep.subr.bf16.mxu0 0
    %3321 = vmatpush2.bf16.msra.mxu0 %v3281
    %3322 = vmatprep.subr.bf16.mxu0 0
    %3323 = vmatpush2.bf16.msra.mxu0 %v3280
    %3324 = vmatprep.subr.bf16.mxu0 0
    %3325 = vmatpush2.bf16.msra.mxu0 %v3279
    %3326 = vmatprep.subr.bf16.mxu0 0
    %3327 = vmatpush2.bf16.msra.mxu0 %v3278
    %3328 = vmatprep.subr.bf16.mxu0 0
    %3329 = vmatpush2.bf16.msra.mxu0 %v3277
    %3330 = vmatprep.subr.bf16.mxu0 0
    %3331 = vmatpush2.bf16.msra.mxu0 %v3276
    %3332 = vmatprep.mubr.bf16.mxu0 %v3164
    %3333 = vmatmul.mubr.bf16.gmra.mxu0 %v3163
    %v3334 = vpop.f32.mrf.mxu0
    %v3335 = vadd.f32 %v3202, %v3334
    %v3336 = vpop.f32.mrf.mxu0
    %v3337 = vpop.f32.mrf.mxu0
    %v3338 = vpop.f32.mrf.mxu0
    %3339 = vdwg.mxu0
    %3340 = vst [vmem:[#allocation2] sm:$0x3] %v3335
    // Predicated region
    $region22: #{qnetwork_forward.5} parent=1 // pred_check
      _
    $region23: #{qnetwork_forward.5} parent=1 // pred_check_branch
      %3342 = sbr.rel (0) target = $region25
    $region24: #{qnetwork_forward.5} parent=1 // pred_region
      %s3344 = ssub.s32 32, 32
      %3345 = vsyncadd [#allocation3], %s3344
      %s3347 = sshll.u32 [#allocation2], 4
      %s3348 = int_to_ptr.vmem [resolvable:$true] %s3347
      %3350 = dma.vmem_to_hbm [thread:$0]  %s3348, 32, %s5, [#allocation3]
    $region25: #{qnetwork_forward.5} parent=1 // pred_fallthru
      _
    // Predicated region
    $region26: #{qnetwork_forward.5} parent=1 // pred_check
      _
    $region27: #{qnetwork_forward.5} parent=1 // pred_check_branch
      %3352 = sbr.rel (0) target = $region29
    $region28: #{qnetwork_forward.5} parent=1 // pred_region
      %3353 = dma.done [#allocation3], 32
    $region29: #{qnetwork_forward.5} parent=1 // pred_fallthru
      _
    %3354 = vsyncpa [#allocation3], 1

</llo_original>
